<compile_context>
chip_gen: v7x
topology: tpu7x:2x2x1
jax: 0.10.0
libtpu: 0.0.40
codegen_flags: <defaults>
</compile_context>

<pallas_src>
import functools

import jax
import jax.numpy as jnp
from jax.experimental import pallas as pl
from jax.experimental.pallas import tpu as pltpu

MATMUL_DTYPE = jnp.bfloat16  # MXU operand dtype (f32 accumulation everywhere)

_COMPILER_PARAMS = pltpu.CompilerParams(
    dimension_semantics=("parallel",),
    vmem_limit_bytes=32 * 1024 * 1024,
)


# ----------------------------------------------------------------------------
# In-kernel helpers (plain traced functions, shared by the fused kernels)
# ----------------------------------------------------------------------------

def _layernorm_f32(x, a, b, eps):
    # a_2 * (x - mu) / (std + eps) + b_2  with UNBIASED std (torch x.std(-1)).
    d = x.shape[-1]
    mu = jnp.mean(x, axis=-1, keepdims=True)
    diff = x - mu
    var = jnp.sum(diff * diff, axis=-1, keepdims=True) * (1.0 / (d - 1))
    inv = 1.0 / (jnp.sqrt(var) + eps)          # narrow (rows,1) divide
    return diff * inv * a + b


def _softmax_rows_f32(s):
    m = jnp.max(s, axis=-1, keepdims=True)
    e = jnp.exp(s - m)
    return e * (1.0 / jnp.sum(e, axis=-1, keepdims=True))   # (rows,1) reciprocal


def _mha_core(q, k, v, mask, num_heads, lo_dtype):
    # q: (Tq, D) f32 (already scaled by 1/sqrt(dk)); k, v: (Tk, D) f32;
    # mask: (Tm, Tk) f32 with Tm in {1, Tq}.  D stays lane-dense; heads are
    # static slices of the lane axis.
    d = q.shape[-1]
    dk = d // num_heads
    q_lo = q.astype(lo_dtype)
    k_lo = k.astype(lo_dtype)
    v_lo = v.astype(lo_dtype)
    ctx = []
    for h in range(num_heads):
        sl = slice(h * dk, (h + 1) * dk)
        s = jax.lax.dot_general(
            q_lo[:, sl], k_lo[:, sl],
            (((1,), (1,)), ((), ())),
            preferred_element_type=jnp.float32)              # (Tq, Tk) f32
        s = jnp.where(mask == 0.0, jnp.float32(-1e9), s)     # exact masked_fill
        p = _softmax_rows_f32(s)
        ctx.append(jnp.dot(p.astype(lo_dtype), v_lo[:, sl],
                           preferred_element_type=jnp.float32))
    return jnp.concatenate(ctx, axis=-1)                     # (Tq, D) lane-dense


# ----------------------------------------------------------------------------
# Fused sublayer kernels
# ----------------------------------------------------------------------------

def self_attn_sublayer_kernel(x_ref, mask_ref, ln_a_ref, ln_b_ref,
                              wqkv_ref, bqkv_ref, wo_ref, bo_ref, o_ref,
                              *, num_heads, eps):
    # out = x + Wo(attn(LN(x))) for one batch element.
    x = x_ref[0]                                             # (T, D) f32
    d = x.shape[-1]
    dk = d // num_heads
    y = _layernorm_f32(x, ln_a_ref[...], ln_b_ref[...], eps)

    wqkv = wqkv_ref[...]                                     # (D, 3D) bf16
    qkv = jnp.dot(y.astype(wqkv.dtype), wqkv,
                  preferred_element_type=jnp.float32) + bqkv_ref[...]
    q = qkv[:, :d] * (dk ** -0.5)                            # scale folded into q
    k = qkv[:, d:2 * d]
    v = qkv[:, 2 * d:]

    ctx = _mha_core(q, k, v, mask_ref[0], num_heads, wqkv.dtype)
    wo = wo_ref[...]
    o = jnp.dot(ctx.astype(wo.dtype), wo,
                preferred_element_type=jnp.float32) + bo_ref[...]
    o_ref[0] = (x + o).astype(o_ref.dtype)                   # residual in-kernel


def src_attn_sublayer_kernel(x_ref, mem_ref, mask_ref, ln_a_ref, ln_b_ref,
                             wqkv_ref, bqkv_ref, wo_ref, bo_ref, o_ref,
                             *, num_heads, eps):
    # out = x + Wo(attn(q=LN(x), k=v=memory)) for one batch element.
    x = x_ref[0]                                             # (T, D) f32
    mem = mem_ref[0]                                         # (S, D) f32
    d = x.shape[-1]
    dk = d // num_heads
    y = _layernorm_f32(x, ln_a_ref[...], ln_b_ref[...], eps)

    wqkv = wqkv_ref[...]                                     # (D, 3D) bf16
    bqkv = bqkv_ref[...]
    q = jnp.dot(y.astype(wqkv.dtype), wqkv[:, :d],
                preferred_element_type=jnp.float32) + bqkv[:, :d]
    kv = jnp.dot(mem.astype(wqkv.dtype), wqkv[:, d:],
                 preferred_element_type=jnp.float32) + bqkv[:, d:]
    q = q * (dk ** -0.5)

    # TODO(synk): for very long encoder length S switch to a flash-style
    # K-tiled online softmax instead of the full (T, S) f32 scores block.
    ctx = _mha_core(q, kv[:, :d], kv[:, d:], mask_ref[0], num_heads, wqkv.dtype)
    wo = wo_ref[...]
    o = jnp.dot(ctx.astype(wo.dtype), wo,
                preferred_element_type=jnp.float32) + bo_ref[...]
    o_ref[0] = (x + o).astype(o_ref.dtype)


def ffn_sublayer_kernel(x_ref, ln_a_ref, ln_b_ref, w1_ref, b1_ref,
                        w2_ref, b2_ref, o_ref, *, eps):
    # out = x + W2 relu(W1 LN(x) + b1) + b2 for one row tile.
    x = x_ref[...]                                           # (tile_m, D) f32
    y = _layernorm_f32(x, ln_a_ref[...], ln_b_ref[...], eps)
    w1 = w1_ref[...]
    h = jnp.dot(y.astype(w1.dtype), w1,
                preferred_element_type=jnp.float32) + b1_ref[...]
    h = jnp.maximum(h, 0.0)
    w2 = w2_ref[...]
    f = jnp.dot(h.astype(w2.dtype), w2,
                preferred_element_type=jnp.float32) + b2_ref[...]
    o_ref[...] = (x + f).astype(o_ref.dtype)


def final_norm_kernel(x_ref, a_ref, b_ref, o_ref, *, eps):
    o_ref[...] = _layernorm_f32(x_ref[...], a_ref[...], b_ref[...],
                                eps).astype(o_ref.dtype)


# ----------------------------------------------------------------------------
# pallas_call wrappers
# ----------------------------------------------------------------------------

def _row_tile(m, cap=512):
    # Bound the row tile (v7x: 64 MiB VMEM) while keeping it a multiple of 8.
    if m <= cap:
        return m
    t = cap - (cap % 8)
    while t > 0:
        if m % t == 0:
            return t
        t -= 8
    return m


def _const2d(shape):
    return pl.BlockSpec(shape, lambda *_: (0, 0))


def self_attn_sublayer(x, mask, p, ln_a, ln_b, num_heads, eps=1e-6):
    B, T, D = x.shape
    Tm, Tk = mask.shape[1], mask.shape[2]
    wqkv = p["wqkv"].astype(MATMUL_DTYPE)
    wo = p["wo"].astype(MATMUL_DTYPE)
    return pl.pallas_call(
        functools.partial(self_attn_sublayer_kernel, num_heads=num_heads, eps=eps),
        out_shape=jax.ShapeDtypeStruct((B, T, D), x.dtype),
        grid=(B,),
        in_specs=[
            pl.BlockSpec((1, T, D), lambda b: (b, 0, 0)),
            pl.BlockSpec((1, Tm, Tk), lambda b: (b, 0, 0)),
            _const2d((1, D)), _const2d((1, D)),
            _const2d((D, 3 * D)), _const2d((1, 3 * D)),
            _const2d((D, D)), _const2d((1, D)),
        ],
        out_specs=pl.BlockSpec((1, T, D), lambda b: (b, 0, 0)),
        compiler_params=_COMPILER_PARAMS,
    )(x, mask, ln_a, ln_b, wqkv, p["bqkv"], wo, p["bo"])


def src_attn_sublayer(x, memory, mask, p, ln_a, ln_b, num_heads, eps=1e-6):
    B, T, D = x.shape
    S = memory.shape[1]
    Tm, Tk = mask.shape[1], mask.shape[2]
    wqkv = p["wqkv"].astype(MATMUL_DTYPE)
    wo = p["wo"].astype(MATMUL_DTYPE)
    return pl.pallas_call(
        functools.partial(src_attn_sublayer_kernel, num_heads=num_heads, eps=eps),
        out_shape=jax.ShapeDtypeStruct((B, T, D), x.dtype),
        grid=(B,),
        in_specs=[
            pl.BlockSpec((1, T, D), lambda b: (b, 0, 0)),
            pl.BlockSpec((1, S, D), lambda b: (b, 0, 0)),
            pl.BlockSpec((1, Tm, Tk), lambda b: (b, 0, 0)),
            _const2d((1, D)), _const2d((1, D)),
            _const2d((D, 3 * D)), _const2d((1, 3 * D)),
            _const2d((D, D)), _const2d((1, D)),
        ],
        out_specs=pl.BlockSpec((1, T, D), lambda b: (b, 0, 0)),
        compiler_params=_COMPILER_PARAMS,
    )(x, memory, mask, ln_a, ln_b, wqkv, p["bqkv"], wo, p["bo"])


def ffn_sublayer(x, ln_a, ln_b, w1, b1, w2, b2, eps=1e-6):
    B, T, D = x.shape
    d_ff = w1.shape[1]
    M = B * T
    tm = _row_tile(M)
    x2d = x.reshape(M, D)
    out = pl.pallas_call(
        functools.partial(ffn_sublayer_kernel, eps=eps),
        out_shape=jax.ShapeDtypeStruct((M, D), x.dtype),
        grid=(M // tm,),
        in_specs=[
            pl.BlockSpec((tm, D), lambda i: (i, 0)),
            _const2d((1, D)), _const2d((1, D)),
            _const2d((D, d_ff)), _const2d((1, d_ff)),
            _const2d((d_ff, D)), _const2d((1, D)),
        ],
        out_specs=pl.BlockSpec((tm, D), lambda i: (i, 0)),
        compiler_params=_COMPILER_PARAMS,
    )(x2d, ln_a, ln_b, w1.astype(MATMUL_DTYPE), b1, w2.astype(MATMUL_DTYPE), b2)
    return out.reshape(B, T, D)


def final_layernorm(x, a, b, eps=1e-6):
    B, T, D = x.shape
    M = B * T
    tm = _row_tile(M)
    out = pl.pallas_call(
        functools.partial(final_norm_kernel, eps=eps),
        out_shape=jax.ShapeDtypeStruct((M, D), x.dtype),
        grid=(M // tm,),
        in_specs=[
            pl.BlockSpec((tm, D), lambda i: (i, 0)),
            _const2d((1, D)), _const2d((1, D)),
        ],
        out_specs=pl.BlockSpec((tm, D), lambda i: (i, 0)),
        compiler_params=_COMPILER_PARAMS,
    )(x.reshape(M, D), a, b)
    return out.reshape(B, T, D)


# ----------------------------------------------------------------------------
# Decoder forward: 3 fused pallas_calls per layer + 1 final LayerNorm
# ----------------------------------------------------------------------------

def decoder_forward(x, memory, src_mask, tgt_mask, params, num_heads, eps=1e-6):
    # TODO(synk): dropout inside SublayerConnection is the identity (eval mode).
    for lp in params["layers"]:
        x = self_attn_sublayer(x, tgt_mask, lp["self_attn"],
                               lp["ln0_a"], lp["ln0_b"], num_heads, eps)
        x = src_attn_sublayer(x, memory, src_mask, lp["src_attn"],
                              lp["ln1_a"], lp["ln1_b"], num_heads, eps)
        x = ffn_sublayer(x, lp["ln2_a"], lp["ln2_b"],
                         lp["w1"], lp["b1"], lp["w2"], lp["b2"], eps)
    return final_layernorm(x, params["norm_a"], params["norm_b"], eps)


# ----------------------------------------------------------------------------
# Deterministic parameter init (q|k|v weights stored fused as (D, 3D))
# ----------------------------------------------------------------------------

def init_params(key, N, D, d_ff):
    def dense(k, din, dout):
        w = 0.02 * jax.random.normal(k, (din, dout), jnp.float32)
        b = jnp.zeros((1, dout), jnp.float32)
        return w, b

    def attn_params(k):
        ks = jax.random.split(k, 4)
        wq, bq = dense(ks[0], D, D)
        wk, bk = dense(ks[1], D, D)
        wv, bv = dense(ks[2], D, D)
        wo, bo = dense(ks[3], D, D)
        return dict(wqkv=jnp.concatenate([wq, wk, wv], axis=1),
                    bqkv=jnp.concatenate([bq, bk, bv], axis=1),
                    wo=wo, bo=bo)

    layers = []
    for _ in range(N):
        keys = jax.random.split(key, 5)
        key = keys[-1]
        w1, b1 = dense(keys[2], D, d_ff)
        w2, b2 = dense(keys[3], d_ff, D)
        layers.append(dict(
            self_attn=attn_params(keys[0]),
            src_attn=attn_params(keys[1]),
            w1=w1, b1=b1, w2=w2, b2=b2,
            ln0_a=jnp.ones((1, D), jnp.float32), ln0_b=jnp.zeros((1, D), jnp.float32),
            ln1_a=jnp.ones((1, D), jnp.float32), ln1_b=jnp.zeros((1, D), jnp.float32),
            ln2_a=jnp.ones((1, D), jnp.float32), ln2_b=jnp.zeros((1, D), jnp.float32),
        ))
    return dict(layers=layers,
                norm_a=jnp.ones((1, D), jnp.float32),
                norm_b=jnp.zeros((1, D), jnp.float32))


if __name__ == "__main__":
    B, T, S, D, H, DFF, NLAYERS = 2, 8, 8, 32, 4, 64, 2

    key = jax.random.PRNGKey(0)
    kx, km, kp = jax.random.split(key, 3)

    x = jax.random.normal(kx, (B, T, D), jnp.float32)        # target-side embeddings
    memory = jax.random.normal(km, (B, S, D), jnp.float32)   # encoder output
    src_mask = jnp.ones((B, 1, S), jnp.float32)              # all source positions valid
    tgt_mask = jnp.broadcast_to(jnp.tril(jnp.ones((T, T), jnp.float32)),
                                (B, T, T))                   # causal

    params = init_params(kp, NLAYERS, D, DFF)

    fwd = jax.jit(functools.partial(decoder_forward, params=params, num_heads=H))
    out = jax.block_until_ready(fwd(x, memory, src_mask, tgt_mask))
    assert out.shape == (B, T, D)
    print("KERNEL_OK")
</pallas_src>

<mosaic_0001>
module attributes {stable_mosaic.version = 11 : i64} {
  func.func @self_attn_sublayer_kernel(%arg0: i32, %arg1: memref<1x8x32xf32, #tpu.memory_space<vmem>>, %arg2: memref<1x8x8xf32, #tpu.memory_space<vmem>>, %arg3: memref<1x32xf32, #tpu.memory_space<vmem>>, %arg4: memref<1x32xf32, #tpu.memory_space<vmem>>, %arg5: memref<32x96xbf16, #tpu.memory_space<vmem>>, %arg6: memref<1x96xf32, #tpu.memory_space<vmem>>, %arg7: memref<32x32xbf16, #tpu.memory_space<vmem>>, %arg8: memref<1x32xf32, #tpu.memory_space<vmem>>, %arg9: memref<1x8x32xf32, #tpu.memory_space<vmem>>) attributes {dimension_semantics = [#tpu.dimension_semantics<parallel>], iteration_bounds = array<i64: 2>, scalar_prefetch = 0 : i64, scratch_operands = 0 : i64, tpu.core_type = #tpu.core_type<tc>, window_params = [{transform_indices = @transform_0, window_bounds = array<i64: 1, 8, 32>}, {transform_indices = @transform_1, window_bounds = array<i64: 1, 8, 8>}, {pipeline_mode = #tpu.pipeline_mode<synchronous>, transform_indices = @transform_2, window_bounds = array<i64: 1, 32>}, {pipeline_mode = #tpu.pipeline_mode<synchronous>, transform_indices = @transform_3, window_bounds = array<i64: 1, 32>}, {pipeline_mode = #tpu.pipeline_mode<synchronous>, transform_indices = @transform_4, window_bounds = array<i64: 32, 96>}, {pipeline_mode = #tpu.pipeline_mode<synchronous>, transform_indices = @transform_5, window_bounds = array<i64: 1, 96>}, {pipeline_mode = #tpu.pipeline_mode<synchronous>, transform_indices = @transform_6, window_bounds = array<i64: 32, 32>}, {pipeline_mode = #tpu.pipeline_mode<synchronous>, transform_indices = @transform_7, window_bounds = array<i64: 1, 32>}, {transform_indices = @transform_8, window_bounds = array<i64: 1, 8, 32>}]} {
    %c0 = arith.constant 0 : index
    %c0_0 = arith.constant 0 : index
    %c0_1 = arith.constant 0 : index
    %0 = vector.load %arg1[%c0, %c0_0, %c0_1] : memref<1x8x32xf32, #tpu.memory_space<vmem>>, vector<1x8x32xf32>
    %1 = vector.shape_cast %0 : vector<1x8x32xf32> to vector<8x32xf32>
    %c0_2 = arith.constant 0 : index
    %c0_3 = arith.constant 0 : index
    %2 = vector.load %arg3[%c0_2, %c0_3] : memref<1x32xf32, #tpu.memory_space<vmem>>, vector<1x32xf32>
    %c0_4 = arith.constant 0 : index
    %c0_5 = arith.constant 0 : index
    %3 = vector.load %arg4[%c0_4, %c0_5] : memref<1x32xf32, #tpu.memory_space<vmem>>, vector<1x32xf32>
    %cst = arith.constant dense<0.000000e+00> : vector<8xf32>
    %4 = vector.multi_reduction <add>, %1, %cst [1] : vector<8x32xf32> to vector<8xf32>
    %5 = vector.shape_cast %4 : vector<8xf32> to vector<8x1xf32>
    %cst_6 = arith.constant 3.200000e+01 : f32
    %6 = vector.broadcast %cst_6 : f32 to vector<8x1xf32>
    %7 = arith.divf %5, %6 : vector<8x1xf32>
    %8 = vector.broadcast %7 : vector<8x1xf32> to vector<8x32xf32>
    %9 = arith.subf %1, %8 : vector<8x32xf32>
    %10 = arith.mulf %9, %9 : vector<8x32xf32>
    %cst_7 = arith.constant dense<0.000000e+00> : vector<8xf32>
    %11 = vector.multi_reduction <add>, %10, %cst_7 [1] : vector<8x32xf32> to vector<8xf32>
    %12 = vector.shape_cast %11 : vector<8xf32> to vector<8x1xf32>
    %cst_8 = arith.constant 0.0322580636 : f32
    %13 = vector.broadcast %cst_8 : f32 to vector<8x1xf32>
    %14 = arith.mulf %12, %13 : vector<8x1xf32>
    %15 = math.sqrt %14 : vector<8x1xf32>
    %cst_9 = arith.constant 9.99999997E-7 : f32
    %16 = vector.broadcast %cst_9 : f32 to vector<8x1xf32>
    %17 = arith.addf %15, %16 : vector<8x1xf32>
    %cst_10 = arith.constant 1.000000e+00 : f32
    %18 = vector.broadcast %cst_10 : f32 to vector<8x1xf32>
    %19 = arith.divf %18, %17 : vector<8x1xf32>
    %20 = vector.broadcast %19 : vector<8x1xf32> to vector<8x32xf32>
    %21 = arith.mulf %9, %20 : vector<8x32xf32>
    %22 = vector.broadcast %2 : vector<1x32xf32> to vector<8x32xf32>
    %23 = arith.mulf %21, %22 : vector<8x32xf32>
    %24 = vector.broadcast %3 : vector<1x32xf32> to vector<8x32xf32>
    %25 = arith.addf %23, %24 : vector<8x32xf32>
    %c0_11 = arith.constant 0 : index
    %c0_12 = arith.constant 0 : index
    %26 = vector.load %arg5[%c0_11, %c0_12] : memref<32x96xbf16, #tpu.memory_space<vmem>>, vector<32x96xbf16>
    %27 = arith.truncf %25 : vector<8x32xf32> to vector<8x32xbf16>
    %cst_13 = arith.constant dense<0.000000e+00> : vector<8x96xf32>
    %28 = tpu.matmul %27, %26, %cst_13 {dimension_numbers = #tpu.dot_dimension_numbers<[1], [0], [0], [1], [0, 0, 1, 1], [], []>} : vector<8x32xbf16>, vector<32x96xbf16>, vector<8x96xf32> -> vector<8x96xf32>
    %c0_14 = arith.constant 0 : index
    %c0_15 = arith.constant 0 : index
    %29 = vector.load %arg6[%c0_14, %c0_15] : memref<1x96xf32, #tpu.memory_space<vmem>>, vector<1x96xf32>
    %30 = vector.broadcast %29 : vector<1x96xf32> to vector<8x96xf32>
    %31 = arith.addf %28, %30 : vector<8x96xf32>
    %32 = vector.extract_strided_slice %31 {offsets = [0, 0], sizes = [8, 32], strides = [1, 1]} : vector<8x96xf32> to vector<8x32xf32>
    %cst_16 = arith.constant 0.353553385 : f32
    %33 = vector.broadcast %cst_16 : f32 to vector<8x32xf32>
    %34 = arith.mulf %32, %33 : vector<8x32xf32>
    %35 = vector.extract_strided_slice %31 {offsets = [0, 32], sizes = [8, 32], strides = [1, 1]} : vector<8x96xf32> to vector<8x32xf32>
    %36 = vector.extract_strided_slice %31 {offsets = [0, 64], sizes = [8, 32], strides = [1, 1]} : vector<8x96xf32> to vector<8x32xf32>
    %c0_17 = arith.constant 0 : index
    %c0_18 = arith.constant 0 : index
    %c0_19 = arith.constant 0 : index
    %37 = vector.load %arg2[%c0_17, %c0_18, %c0_19] : memref<1x8x8xf32, #tpu.memory_space<vmem>>, vector<1x8x8xf32>
    %38 = vector.shape_cast %37 : vector<1x8x8xf32> to vector<8x8xf32>
    %39 = arith.truncf %34 : vector<8x32xf32> to vector<8x32xbf16>
    %40 = arith.truncf %35 : vector<8x32xf32> to vector<8x32xbf16>
    %41 = arith.truncf %36 : vector<8x32xf32> to vector<8x32xbf16>
    %42 = vector.extract_strided_slice %39 {offsets = [0, 0], sizes = [8, 8], strides = [1, 1]} : vector<8x32xbf16> to vector<8x8xbf16>
    %43 = vector.extract_strided_slice %40 {offsets = [0, 0], sizes = [8, 8], strides = [1, 1]} : vector<8x32xbf16> to vector<8x8xbf16>
    %cst_20 = arith.constant dense<0.000000e+00> : vector<8x8xf32>
    %44 = tpu.matmul %42, %43, %cst_20 {dimension_numbers = #tpu.dot_dimension_numbers<[1], [1], [0], [0], [0, 0, 1, 0], [], []>} : vector<8x8xbf16>, vector<8x8xbf16>, vector<8x8xf32> -> vector<8x8xf32>
    %cst_21 = arith.constant 0.000000e+00 : f32
    %45 = vector.broadcast %cst_21 : f32 to vector<8x8xf32>
    %46 = arith.cmpf oeq, %38, %45 : vector<8x8xf32>
    %cst_22 = arith.constant -1.000000e+09 : f32
    %47 = vector.broadcast %cst_22 : f32 to vector<8x8xf32>
    %48 = arith.select %46, %47, %44 : vector<8x8xi1>, vector<8x8xf32>
    %cst_23 = arith.constant dense<0xFF800000> : vector<8xf32>
    %49 = vector.multi_reduction <maximumf>, %48, %cst_23 [1] : vector<8x8xf32> to vector<8xf32>
    %50 = vector.shape_cast %49 : vector<8xf32> to vector<8x1xf32>
    %51 = vector.broadcast %50 : vector<8x1xf32> to vector<8x8xf32>
    %52 = arith.subf %48, %51 : vector<8x8xf32>
    %53 = math.exp %52 : vector<8x8xf32>
    %cst_24 = arith.constant dense<0.000000e+00> : vector<8xf32>
    %54 = vector.multi_reduction <add>, %53, %cst_24 [1] : vector<8x8xf32> to vector<8xf32>
    %55 = vector.shape_cast %54 : vector<8xf32> to vector<8x1xf32>
    %cst_25 = arith.constant 1.000000e+00 : f32
    %56 = vector.broadcast %cst_25 : f32 to vector<8x1xf32>
    %57 = arith.divf %56, %55 : vector<8x1xf32>
    %58 = vector.broadcast %57 : vector<8x1xf32> to vector<8x8xf32>
    %59 = arith.mulf %53, %58 : vector<8x8xf32>
    %60 = arith.truncf %59 : vector<8x8xf32> to vector<8x8xbf16>
    %61 = vector.extract_strided_slice %41 {offsets = [0, 0], sizes = [8, 8], strides = [1, 1]} : vector<8x32xbf16> to vector<8x8xbf16>
    %cst_26 = arith.constant dense<0.000000e+00> : vector<8x8xf32>
    %62 = tpu.matmul %60, %61, %cst_26 {dimension_numbers = #tpu.dot_dimension_numbers<[1], [0], [0], [1], [0, 0, 1, 1], [], []>} : vector<8x8xbf16>, vector<8x8xbf16>, vector<8x8xf32> -> vector<8x8xf32>
    %63 = vector.extract_strided_slice %39 {offsets = [0, 8], sizes = [8, 8], strides = [1, 1]} : vector<8x32xbf16> to vector<8x8xbf16>
    %64 = vector.extract_strided_slice %40 {offsets = [0, 8], sizes = [8, 8], strides = [1, 1]} : vector<8x32xbf16> to vector<8x8xbf16>
    %cst_27 = arith.constant dense<0.000000e+00> : vector<8x8xf32>
    %65 = tpu.matmul %63, %64, %cst_27 {dimension_numbers = #tpu.dot_dimension_numbers<[1], [1], [0], [0], [0, 0, 1, 0], [], []>} : vector<8x8xbf16>, vector<8x8xbf16>, vector<8x8xf32> -> vector<8x8xf32>
    %cst_28 = arith.constant 0.000000e+00 : f32
    %66 = vector.broadcast %cst_28 : f32 to vector<8x8xf32>
    %67 = arith.cmpf oeq, %38, %66 : vector<8x8xf32>
    %cst_29 = arith.constant -1.000000e+09 : f32
    %68 = vector.broadcast %cst_29 : f32 to vector<8x8xf32>
    %69 = arith.select %67, %68, %65 : vector<8x8xi1>, vector<8x8xf32>
    %cst_30 = arith.constant dense<0xFF800000> : vector<8xf32>
    %70 = vector.multi_reduction <maximumf>, %69, %cst_30 [1] : vector<8x8xf32> to vector<8xf32>
    %71 = vector.shape_cast %70 : vector<8xf32> to vector<8x1xf32>
    %72 = vector.broadcast %71 : vector<8x1xf32> to vector<8x8xf32>
    %73 = arith.subf %69, %72 : vector<8x8xf32>
    %74 = math.exp %73 : vector<8x8xf32>
    %cst_31 = arith.constant dense<0.000000e+00> : vector<8xf32>
    %75 = vector.multi_reduction <add>, %74, %cst_31 [1] : vector<8x8xf32> to vector<8xf32>
    %76 = vector.shape_cast %75 : vector<8xf32> to vector<8x1xf32>
    %cst_32 = arith.constant 1.000000e+00 : f32
    %77 = vector.broadcast %cst_32 : f32 to vector<8x1xf32>
    %78 = arith.divf %77, %76 : vector<8x1xf32>
    %79 = vector.broadcast %78 : vector<8x1xf32> to vector<8x8xf32>
    %80 = arith.mulf %74, %79 : vector<8x8xf32>
    %81 = arith.truncf %80 : vector<8x8xf32> to vector<8x8xbf16>
    %82 = vector.extract_strided_slice %41 {offsets = [0, 8], sizes = [8, 8], strides = [1, 1]} : vector<8x32xbf16> to vector<8x8xbf16>
    %cst_33 = arith.constant dense<0.000000e+00> : vector<8x8xf32>
    %83 = tpu.matmul %81, %82, %cst_33 {dimension_numbers = #tpu.dot_dimension_numbers<[1], [0], [0], [1], [0, 0, 1, 1], [], []>} : vector<8x8xbf16>, vector<8x8xbf16>, vector<8x8xf32> -> vector<8x8xf32>
    %84 = vector.extract_strided_slice %39 {offsets = [0, 16], sizes = [8, 8], strides = [1, 1]} : vector<8x32xbf16> to vector<8x8xbf16>
    %85 = vector.extract_strided_slice %40 {offsets = [0, 16], sizes = [8, 8], strides = [1, 1]} : vector<8x32xbf16> to vector<8x8xbf16>
    %cst_34 = arith.constant dense<0.000000e+00> : vector<8x8xf32>
    %86 = tpu.matmul %84, %85, %cst_34 {dimension_numbers = #tpu.dot_dimension_numbers<[1], [1], [0], [0], [0, 0, 1, 0], [], []>} : vector<8x8xbf16>, vector<8x8xbf16>, vector<8x8xf32> -> vector<8x8xf32>
    %cst_35 = arith.constant 0.000000e+00 : f32
    %87 = vector.broadcast %cst_35 : f32 to vector<8x8xf32>
    %88 = arith.cmpf oeq, %38, %87 : vector<8x8xf32>
    %cst_36 = arith.constant -1.000000e+09 : f32
    %89 = vector.broadcast %cst_36 : f32 to vector<8x8xf32>
    %90 = arith.select %88, %89, %86 : vector<8x8xi1>, vector<8x8xf32>
    %cst_37 = arith.constant dense<0xFF800000> : vector<8xf32>
    %91 = vector.multi_reduction <maximumf>, %90, %cst_37 [1] : vector<8x8xf32> to vector<8xf32>
    %92 = vector.shape_cast %91 : vector<8xf32> to vector<8x1xf32>
    %93 = vector.broadcast %92 : vector<8x1xf32> to vector<8x8xf32>
    %94 = arith.subf %90, %93 : vector<8x8xf32>
    %95 = math.exp %94 : vector<8x8xf32>
    %cst_38 = arith.constant dense<0.000000e+00> : vector<8xf32>
    %96 = vector.multi_reduction <add>, %95, %cst_38 [1] : vector<8x8xf32> to vector<8xf32>
    %97 = vector.shape_cast %96 : vector<8xf32> to vector<8x1xf32>
    %cst_39 = arith.constant 1.000000e+00 : f32
    %98 = vector.broadcast %cst_39 : f32 to vector<8x1xf32>
    %99 = arith.divf %98, %97 : vector<8x1xf32>
    %100 = vector.broadcast %99 : vector<8x1xf32> to vector<8x8xf32>
    %101 = arith.mulf %95, %100 : vector<8x8xf32>
    %102 = arith.truncf %101 : vector<8x8xf32> to vector<8x8xbf16>
    %103 = vector.extract_strided_slice %41 {offsets = [0, 16], sizes = [8, 8], strides = [1, 1]} : vector<8x32xbf16> to vector<8x8xbf16>
    %cst_40 = arith.constant dense<0.000000e+00> : vector<8x8xf32>
    %104 = tpu.matmul %102, %103, %cst_40 {dimension_numbers = #tpu.dot_dimension_numbers<[1], [0], [0], [1], [0, 0, 1, 1], [], []>} : vector<8x8xbf16>, vector<8x8xbf16>, vector<8x8xf32> -> vector<8x8xf32>
    %105 = vector.extract_strided_slice %39 {offsets = [0, 24], sizes = [8, 8], strides = [1, 1]} : vector<8x32xbf16> to vector<8x8xbf16>
    %106 = vector.extract_strided_slice %40 {offsets = [0, 24], sizes = [8, 8], strides = [1, 1]} : vector<8x32xbf16> to vector<8x8xbf16>
    %cst_41 = arith.constant dense<0.000000e+00> : vector<8x8xf32>
    %107 = tpu.matmul %105, %106, %cst_41 {dimension_numbers = #tpu.dot_dimension_numbers<[1], [1], [0], [0], [0, 0, 1, 0], [], []>} : vector<8x8xbf16>, vector<8x8xbf16>, vector<8x8xf32> -> vector<8x8xf32>
    %cst_42 = arith.constant 0.000000e+00 : f32
    %108 = vector.broadcast %cst_42 : f32 to vector<8x8xf32>
    %109 = arith.cmpf oeq, %38, %108 : vector<8x8xf32>
    %cst_43 = arith.constant -1.000000e+09 : f32
    %110 = vector.broadcast %cst_43 : f32 to vector<8x8xf32>
    %111 = arith.select %109, %110, %107 : vector<8x8xi1>, vector<8x8xf32>
    %cst_44 = arith.constant dense<0xFF800000> : vector<8xf32>
    %112 = vector.multi_reduction <maximumf>, %111, %cst_44 [1] : vector<8x8xf32> to vector<8xf32>
    %113 = vector.shape_cast %112 : vector<8xf32> to vector<8x1xf32>
    %114 = vector.broadcast %113 : vector<8x1xf32> to vector<8x8xf32>
    %115 = arith.subf %111, %114 : vector<8x8xf32>
    %116 = math.exp %115 : vector<8x8xf32>
    %cst_45 = arith.constant dense<0.000000e+00> : vector<8xf32>
    %117 = vector.multi_reduction <add>, %116, %cst_45 [1] : vector<8x8xf32> to vector<8xf32>
    %118 = vector.shape_cast %117 : vector<8xf32> to vector<8x1xf32>
    %cst_46 = arith.constant 1.000000e+00 : f32
    %119 = vector.broadcast %cst_46 : f32 to vector<8x1xf32>
    %120 = arith.divf %119, %118 : vector<8x1xf32>
    %121 = vector.broadcast %120 : vector<8x1xf32> to vector<8x8xf32>
    %122 = arith.mulf %116, %121 : vector<8x8xf32>
    %123 = arith.truncf %122 : vector<8x8xf32> to vector<8x8xbf16>
    %124 = vector.extract_strided_slice %41 {offsets = [0, 24], sizes = [8, 8], strides = [1, 1]} : vector<8x32xbf16> to vector<8x8xbf16>
    %cst_47 = arith.constant dense<0.000000e+00> : vector<8x8xf32>
    %125 = tpu.matmul %123, %124, %cst_47 {dimension_numbers = #tpu.dot_dimension_numbers<[1], [0], [0], [1], [0, 0, 1, 1], [], []>} : vector<8x8xbf16>, vector<8x8xbf16>, vector<8x8xf32> -> vector<8x8xf32>
    %126 = tpu.concatenate %62, %83, %104, %125 in 1 : vector<8x8xf32>, vector<8x8xf32>, vector<8x8xf32>, vector<8x8xf32> -> vector<8x32xf32>
    %c0_48 = arith.constant 0 : index
    %c0_49 = arith.constant 0 : index
    %127 = vector.load %arg7[%c0_48, %c0_49] : memref<32x32xbf16, #tpu.memory_space<vmem>>, vector<32x32xbf16>
    %128 = arith.truncf %126 : vector<8x32xf32> to vector<8x32xbf16>
    %cst_50 = arith.constant dense<0.000000e+00> : vector<8x32xf32>
    %129 = tpu.matmul %128, %127, %cst_50 {dimension_numbers = #tpu.dot_dimension_numbers<[1], [0], [0], [1], [0, 0, 1, 1], [], []>} : vector<8x32xbf16>, vector<32x32xbf16>, vector<8x32xf32> -> vector<8x32xf32>
    %c0_51 = arith.constant 0 : index
    %c0_52 = arith.constant 0 : index
    %130 = vector.load %arg8[%c0_51, %c0_52] : memref<1x32xf32, #tpu.memory_space<vmem>>, vector<1x32xf32>
    %131 = vector.broadcast %130 : vector<1x32xf32> to vector<8x32xf32>
    %132 = arith.addf %129, %131 : vector<8x32xf32>
    %133 = arith.addf %1, %132 : vector<8x32xf32>
    %c0_53 = arith.constant 0 : index
    %c0_54 = arith.constant 0 : index
    %c0_55 = arith.constant 0 : index
    %134 = vector.load %arg9[%c0_53, %c0_54, %c0_55] : memref<1x8x32xf32, #tpu.memory_space<vmem>>, vector<1x8x32xf32>
    %135 = vector.shape_cast %134 : vector<1x8x32xf32> to vector<8x32xf32>
    %136 = vector.shape_cast %133 : vector<8x32xf32> to vector<1x8x32xf32>
    tpu.vector_store %arg9[%c0_53, %c0_54, %c0_55], %136 {strides = array<i32>} : memref<1x8x32xf32, #tpu.memory_space<vmem>>, vector<1x8x32xf32>,
    return
  }
  func.func @transform_0(%arg0: i32) -> (i32, i32, i32) {
    %c0_i32 = arith.constant 0 : i32
    %c0_i32_0 = arith.constant 0 : i32
    %c0_i32_1 = arith.constant 0 : i32
    return %arg0, %c0_i32, %c0_i32_0 : i32, i32, i32
  }
  func.func @transform_1(%arg0: i32) -> (i32, i32, i32) {
    %c0_i32 = arith.constant 0 : i32
    %c0_i32_0 = arith.constant 0 : i32
    %c0_i32_1 = arith.constant 0 : i32
    return %arg0, %c0_i32, %c0_i32_0 : i32, i32, i32
  }
  func.func @transform_2(%arg0: i32) -> (i32, i32) {
    %c0_i32 = arith.constant 0 : i32
    %c0_i32_0 = arith.constant 0 : i32
    %c0_i32_1 = arith.constant 0 : i32
    return %c0_i32, %c0_i32_0 : i32, i32
  }
  func.func @transform_3(%arg0: i32) -> (i32, i32) {
    %c0_i32 = arith.constant 0 : i32
    %c0_i32_0 = arith.constant 0 : i32
    %c0_i32_1 = arith.constant 0 : i32
    return %c0_i32, %c0_i32_0 : i32, i32
  }
  func.func @transform_4(%arg0: i32) -> (i32, i32) {
    %c0_i32 = arith.constant 0 : i32
    %c0_i32_0 = arith.constant 0 : i32
    %c0_i32_1 = arith.constant 0 : i32
    return %c0_i32, %c0_i32_0 : i32, i32
  }
  func.func @transform_5(%arg0: i32) -> (i32, i32) {
    %c0_i32 = arith.constant 0 : i32
    %c0_i32_0 = arith.constant 0 : i32
    %c0_i32_1 = arith.constant 0 : i32
    return %c0_i32, %c0_i32_0 : i32, i32
  }
  func.func @transform_6(%arg0: i32) -> (i32, i32) {
    %c0_i32 = arith.constant 0 : i32
    %c0_i32_0 = arith.constant 0 : i32
    %c0_i32_1 = arith.constant 0 : i32
    return %c0_i32, %c0_i32_0 : i32, i32
  }
  func.func @transform_7(%arg0: i32) -> (i32, i32) {
    %c0_i32 = arith.constant 0 : i32
    %c0_i32_0 = arith.constant 0 : i32
    %c0_i32_1 = arith.constant 0 : i32
    return %c0_i32, %c0_i32_0 : i32, i32
  }
  func.func @transform_8(%arg0: i32) -> (i32, i32, i32) {
    %c0_i32 = arith.constant 0 : i32
    %c0_i32_0 = arith.constant 0 : i32
    %c0_i32_1 = arith.constant 0 : i32
    return %arg0, %c0_i32, %c0_i32_0 : i32, i32, i32
  }
}

module attributes {stable_mosaic.version = 11 : i64} {
  func.func @src_attn_sublayer_kernel(%arg0: i32, %arg1: memref<1x8x32xf32, #tpu.memory_space<vmem>>, %arg2: memref<1x8x32xf32, #tpu.memory_space<vmem>>, %arg3: memref<1x1x8xf32, #tpu.memory_space<vmem>>, %arg4: memref<1x32xf32, #tpu.memory_space<vmem>>, %arg5: memref<1x32xf32, #tpu.memory_space<vmem>>, %arg6: memref<32x96xbf16, #tpu.memory_space<vmem>>, %arg7: memref<1x96xf32, #tpu.memory_space<vmem>>, %arg8: memref<32x32xbf16, #tpu.memory_space<vmem>>, %arg9: memref<1x32xf32, #tpu.memory_space<vmem>>, %arg10: memref<1x8x32xf32, #tpu.memory_space<vmem>>) attributes {dimension_semantics = [#tpu.dimension_semantics<parallel>], iteration_bounds = array<i64: 2>, scalar_prefetch = 0 : i64, scratch_operands = 0 : i64, tpu.core_type = #tpu.core_type<tc>, window_params = [{transform_indices = @transform_0, window_bounds = array<i64: 1, 8, 32>}, {transform_indices = @transform_1, window_bounds = array<i64: 1, 8, 32>}, {transform_indices = @transform_2, window_bounds = array<i64: 1, 1, 8>}, {pipeline_mode = #tpu.pipeline_mode<synchronous>, transform_indices = @transform_3, window_bounds = array<i64: 1, 32>}, {pipeline_mode = #tpu.pipeline_mode<synchronous>, transform_indices = @transform_4, window_bounds = array<i64: 1, 32>}, {pipeline_mode = #tpu.pipeline_mode<synchronous>, transform_indices = @transform_5, window_bounds = array<i64: 32, 96>}, {pipeline_mode = #tpu.pipeline_mode<synchronous>, transform_indices = @transform_6, window_bounds = array<i64: 1, 96>}, {pipeline_mode = #tpu.pipeline_mode<synchronous>, transform_indices = @transform_7, window_bounds = array<i64: 32, 32>}, {pipeline_mode = #tpu.pipeline_mode<synchronous>, transform_indices = @transform_8, window_bounds = array<i64: 1, 32>}, {transform_indices = @transform_9, window_bounds = array<i64: 1, 8, 32>}]} {
    %c0 = arith.constant 0 : index
    %c0_0 = arith.constant 0 : index
    %c0_1 = arith.constant 0 : index
    %0 = vector.load %arg1[%c0, %c0_0, %c0_1] : memref<1x8x32xf32, #tpu.memory_space<vmem>>, vector<1x8x32xf32>
    %1 = vector.shape_cast %0 : vector<1x8x32xf32> to vector<8x32xf32>
    %c0_2 = arith.constant 0 : index
    %c0_3 = arith.constant 0 : index
    %c0_4 = arith.constant 0 : index
    %2 = vector.load %arg2[%c0_2, %c0_3, %c0_4] : memref<1x8x32xf32, #tpu.memory_space<vmem>>, vector<1x8x32xf32>
    %3 = vector.shape_cast %2 : vector<1x8x32xf32> to vector<8x32xf32>
    %c0_5 = arith.constant 0 : index
    %c0_6 = arith.constant 0 : index
    %4 = vector.load %arg4[%c0_5, %c0_6] : memref<1x32xf32, #tpu.memory_space<vmem>>, vector<1x32xf32>
    %c0_7 = arith.constant 0 : index
    %c0_8 = arith.constant 0 : index
    %5 = vector.load %arg5[%c0_7, %c0_8] : memref<1x32xf32, #tpu.memory_space<vmem>>, vector<1x32xf32>
    %cst = arith.constant dense<0.000000e+00> : vector<8xf32>
    %6 = vector.multi_reduction <add>, %1, %cst [1] : vector<8x32xf32> to vector<8xf32>
    %7 = vector.shape_cast %6 : vector<8xf32> to vector<8x1xf32>
    %cst_9 = arith.constant 3.200000e+01 : f32
    %8 = vector.broadcast %cst_9 : f32 to vector<8x1xf32>
    %9 = arith.divf %7, %8 : vector<8x1xf32>
    %10 = vector.broadcast %9 : vector<8x1xf32> to vector<8x32xf32>
    %11 = arith.subf %1, %10 : vector<8x32xf32>
    %12 = arith.mulf %11, %11 : vector<8x32xf32>
    %cst_10 = arith.constant dense<0.000000e+00> : vector<8xf32>
    %13 = vector.multi_reduction <add>, %12, %cst_10 [1] : vector<8x32xf32> to vector<8xf32>
    %14 = vector.shape_cast %13 : vector<8xf32> to vector<8x1xf32>
    %cst_11 = arith.constant 0.0322580636 : f32
    %15 = vector.broadcast %cst_11 : f32 to vector<8x1xf32>
    %16 = arith.mulf %14, %15 : vector<8x1xf32>
    %17 = math.sqrt %16 : vector<8x1xf32>
    %cst_12 = arith.constant 9.99999997E-7 : f32
    %18 = vector.broadcast %cst_12 : f32 to vector<8x1xf32>
    %19 = arith.addf %17, %18 : vector<8x1xf32>
    %cst_13 = arith.constant 1.000000e+00 : f32
    %20 = vector.broadcast %cst_13 : f32 to vector<8x1xf32>
    %21 = arith.divf %20, %19 : vector<8x1xf32>
    %22 = vector.broadcast %21 : vector<8x1xf32> to vector<8x32xf32>
    %23 = arith.mulf %11, %22 : vector<8x32xf32>
    %24 = vector.broadcast %4 : vector<1x32xf32> to vector<8x32xf32>
    %25 = arith.mulf %23, %24 : vector<8x32xf32>
    %26 = vector.broadcast %5 : vector<1x32xf32> to vector<8x32xf32>
    %27 = arith.addf %25, %26 : vector<8x32xf32>
    %c0_14 = arith.constant 0 : index
    %c0_15 = arith.constant 0 : index
    %28 = vector.load %arg6[%c0_14, %c0_15] : memref<32x96xbf16, #tpu.memory_space<vmem>>, vector<32x96xbf16>
    %c0_16 = arith.constant 0 : index
    %c0_17 = arith.constant 0 : index
    %29 = vector.load %arg7[%c0_16, %c0_17] : memref<1x96xf32, #tpu.memory_space<vmem>>, vector<1x96xf32>
    %30 = arith.truncf %27 : vector<8x32xf32> to vector<8x32xbf16>
    %31 = vector.extract_strided_slice %28 {offsets = [0, 0], sizes = [32, 32], strides = [1, 1]} : vector<32x96xbf16> to vector<32x32xbf16>
    %cst_18 = arith.constant dense<0.000000e+00> : vector<8x32xf32>
    %32 = tpu.matmul %30, %31, %cst_18 {dimension_numbers = #tpu.dot_dimension_numbers<[1], [0], [0], [1], [0, 0, 1, 1], [], []>} : vector<8x32xbf16>, vector<32x32xbf16>, vector<8x32xf32> -> vector<8x32xf32>
    %33 = vector.extract_strided_slice %29 {offsets = [0, 0], sizes = [1, 32], strides = [1, 1]} : vector<1x96xf32> to vector<1x32xf32>
    %34 = vector.broadcast %33 : vector<1x32xf32> to vector<8x32xf32>
    %35 = arith.addf %32, %34 : vector<8x32xf32>
    %36 = arith.truncf %3 : vector<8x32xf32> to vector<8x32xbf16>
    %37 = vector.extract_strided_slice %28 {offsets = [0, 32], sizes = [32, 64], strides = [1, 1]} : vector<32x96xbf16> to vector<32x64xbf16>
    %cst_19 = arith.constant dense<0.000000e+00> : vector<8x64xf32>
    %38 = tpu.matmul %36, %37, %cst_19 {dimension_numbers = #tpu.dot_dimension_numbers<[1], [0], [0], [1], [0, 0, 1, 1], [], []>} : vector<8x32xbf16>, vector<32x64xbf16>, vector<8x64xf32> -> vector<8x64xf32>
    %39 = vector.extract_strided_slice %29 {offsets = [0, 32], sizes = [1, 64], strides = [1, 1]} : vector<1x96xf32> to vector<1x64xf32>
    %40 = vector.broadcast %39 : vector<1x64xf32> to vector<8x64xf32>
    %41 = arith.addf %38, %40 : vector<8x64xf32>
    %cst_20 = arith.constant 0.353553385 : f32
    %42 = vector.broadcast %cst_20 : f32 to vector<8x32xf32>
    %43 = arith.mulf %35, %42 : vector<8x32xf32>
    %44 = vector.extract_strided_slice %41 {offsets = [0, 0], sizes = [8, 32], strides = [1, 1]} : vector<8x64xf32> to vector<8x32xf32>
    %45 = vector.extract_strided_slice %41 {offsets = [0, 32], sizes = [8, 32], strides = [1, 1]} : vector<8x64xf32> to vector<8x32xf32>
    %c0_21 = arith.constant 0 : index
    %c0_22 = arith.constant 0 : index
    %c0_23 = arith.constant 0 : index
    %46 = vector.load %arg3[%c0_21, %c0_22, %c0_23] : memref<1x1x8xf32, #tpu.memory_space<vmem>>, vector<1x1x8xf32>
    %47 = vector.shape_cast %46 : vector<1x1x8xf32> to vector<1x8xf32>
    %48 = arith.truncf %43 : vector<8x32xf32> to vector<8x32xbf16>
    %49 = arith.truncf %44 : vector<8x32xf32> to vector<8x32xbf16>
    %50 = arith.truncf %45 : vector<8x32xf32> to vector<8x32xbf16>
    %51 = vector.extract_strided_slice %48 {offsets = [0, 0], sizes = [8, 8], strides = [1, 1]} : vector<8x32xbf16> to vector<8x8xbf16>
    %52 = vector.extract_strided_slice %49 {offsets = [0, 0], sizes = [8, 8], strides = [1, 1]} : vector<8x32xbf16> to vector<8x8xbf16>
    %cst_24 = arith.constant dense<0.000000e+00> : vector<8x8xf32>
    %53 = tpu.matmul %51, %52, %cst_24 {dimension_numbers = #tpu.dot_dimension_numbers<[1], [1], [0], [0], [0, 0, 1, 0], [], []>} : vector<8x8xbf16>, vector<8x8xbf16>, vector<8x8xf32> -> vector<8x8xf32>
    %cst_25 = arith.constant 0.000000e+00 : f32
    %54 = vector.broadcast %cst_25 : f32 to vector<1x8xf32>
    %55 = arith.cmpf oeq, %47, %54 : vector<1x8xf32>
    %cst_26 = arith.constant -1.000000e+09 : f32
    %56 = vector.shape_cast %55 : vector<1x8xi1> to vector<1x8xi1>
    %57 = vector.broadcast %56 : vector<1x8xi1> to vector<8x8xi1>
    %58 = vector.broadcast %cst_26 : f32 to vector<8x8xf32>
    %59 = arith.select %57, %58, %53 : vector<8x8xi1>, vector<8x8xf32>
    %cst_27 = arith.constant dense<0xFF800000> : vector<8xf32>
    %60 = vector.multi_reduction <maximumf>, %59, %cst_27 [1] : vector<8x8xf32> to vector<8xf32>
    %61 = vector.shape_cast %60 : vector<8xf32> to vector<8x1xf32>
    %62 = vector.broadcast %61 : vector<8x1xf32> to vector<8x8xf32>
    %63 = arith.subf %59, %62 : vector<8x8xf32>
    %64 = math.exp %63 : vector<8x8xf32>
    %cst_28 = arith.constant dense<0.000000e+00> : vector<8xf32>
    %65 = vector.multi_reduction <add>, %64, %cst_28 [1] : vector<8x8xf32> to vector<8xf32>
    %66 = vector.shape_cast %65 : vector<8xf32> to vector<8x1xf32>
    %cst_29 = arith.constant 1.000000e+00 : f32
    %67 = vector.broadcast %cst_29 : f32 to vector<8x1xf32>
    %68 = arith.divf %67, %66 : vector<8x1xf32>
    %69 = vector.broadcast %68 : vector<8x1xf32> to vector<8x8xf32>
    %70 = arith.mulf %64, %69 : vector<8x8xf32>
    %71 = arith.truncf %70 : vector<8x8xf32> to vector<8x8xbf16>
    %72 = vector.extract_strided_slice %50 {offsets = [0, 0], sizes = [8, 8], strides = [1, 1]} : vector<8x32xbf16> to vector<8x8xbf16>
    %cst_30 = arith.constant dense<0.000000e+00> : vector<8x8xf32>
    %73 = tpu.matmul %71, %72, %cst_30 {dimension_numbers = #tpu.dot_dimension_numbers<[1], [0], [0], [1], [0, 0, 1, 1], [], []>} : vector<8x8xbf16>, vector<8x8xbf16>, vector<8x8xf32> -> vector<8x8xf32>
    %74 = vector.extract_strided_slice %48 {offsets = [0, 8], sizes = [8, 8], strides = [1, 1]} : vector<8x32xbf16> to vector<8x8xbf16>
    %75 = vector.extract_strided_slice %49 {offsets = [0, 8], sizes = [8, 8], strides = [1, 1]} : vector<8x32xbf16> to vector<8x8xbf16>
    %cst_31 = arith.constant dense<0.000000e+00> : vector<8x8xf32>
    %76 = tpu.matmul %74, %75, %cst_31 {dimension_numbers = #tpu.dot_dimension_numbers<[1], [1], [0], [0], [0, 0, 1, 0], [], []>} : vector<8x8xbf16>, vector<8x8xbf16>, vector<8x8xf32> -> vector<8x8xf32>
    %cst_32 = arith.constant 0.000000e+00 : f32
    %77 = vector.broadcast %cst_32 : f32 to vector<1x8xf32>
    %78 = arith.cmpf oeq, %47, %77 : vector<1x8xf32>
    %cst_33 = arith.constant -1.000000e+09 : f32
    %79 = vector.shape_cast %78 : vector<1x8xi1> to vector<1x8xi1>
    %80 = vector.broadcast %79 : vector<1x8xi1> to vector<8x8xi1>
    %81 = vector.broadcast %cst_33 : f32 to vector<8x8xf32>
    %82 = arith.select %80, %81, %76 : vector<8x8xi1>, vector<8x8xf32>
    %cst_34 = arith.constant dense<0xFF800000> : vector<8xf32>
    %83 = vector.multi_reduction <maximumf>, %82, %cst_34 [1] : vector<8x8xf32> to vector<8xf32>
    %84 = vector.shape_cast %83 : vector<8xf32> to vector<8x1xf32>
    %85 = vector.broadcast %84 : vector<8x1xf32> to vector<8x8xf32>
    %86 = arith.subf %82, %85 : vector<8x8xf32>
    %87 = math.exp %86 : vector<8x8xf32>
    %cst_35 = arith.constant dense<0.000000e+00> : vector<8xf32>
    %88 = vector.multi_reduction <add>, %87, %cst_35 [1] : vector<8x8xf32> to vector<8xf32>
    %89 = vector.shape_cast %88 : vector<8xf32> to vector<8x1xf32>
    %cst_36 = arith.constant 1.000000e+00 : f32
    %90 = vector.broadcast %cst_36 : f32 to vector<8x1xf32>
    %91 = arith.divf %90, %89 : vector<8x1xf32>
    %92 = vector.broadcast %91 : vector<8x1xf32> to vector<8x8xf32>
    %93 = arith.mulf %87, %92 : vector<8x8xf32>
    %94 = arith.truncf %93 : vector<8x8xf32> to vector<8x8xbf16>
    %95 = vector.extract_strided_slice %50 {offsets = [0, 8], sizes = [8, 8], strides = [1, 1]} : vector<8x32xbf16> to vector<8x8xbf16>
    %cst_37 = arith.constant dense<0.000000e+00> : vector<8x8xf32>
    %96 = tpu.matmul %94, %95, %cst_37 {dimension_numbers = #tpu.dot_dimension_numbers<[1], [0], [0], [1], [0, 0, 1, 1], [], []>} : vector<8x8xbf16>, vector<8x8xbf16>, vector<8x8xf32> -> vector<8x8xf32>
    %97 = vector.extract_strided_slice %48 {offsets = [0, 16], sizes = [8, 8], strides = [1, 1]} : vector<8x32xbf16> to vector<8x8xbf16>
    %98 = vector.extract_strided_slice %49 {offsets = [0, 16], sizes = [8, 8], strides = [1, 1]} : vector<8x32xbf16> to vector<8x8xbf16>
    %cst_38 = arith.constant dense<0.000000e+00> : vector<8x8xf32>
    %99 = tpu.matmul %97, %98, %cst_38 {dimension_numbers = #tpu.dot_dimension_numbers<[1], [1], [0], [0], [0, 0, 1, 0], [], []>} : vector<8x8xbf16>, vector<8x8xbf16>, vector<8x8xf32> -> vector<8x8xf32>
    %cst_39 = arith.constant 0.000000e+00 : f32
    %100 = vector.broadcast %cst_39 : f32 to vector<1x8xf32>
    %101 = arith.cmpf oeq, %47, %100 : vector<1x8xf32>
    %cst_40 = arith.constant -1.000000e+09 : f32
    %102 = vector.shape_cast %101 : vector<1x8xi1> to vector<1x8xi1>
    %103 = vector.broadcast %102 : vector<1x8xi1> to vector<8x8xi1>
    %104 = vector.broadcast %cst_40 : f32 to vector<8x8xf32>
    %105 = arith.select %103, %104, %99 : vector<8x8xi1>, vector<8x8xf32>
    %cst_41 = arith.constant dense<0xFF800000> : vector<8xf32>
    %106 = vector.multi_reduction <maximumf>, %105, %cst_41 [1] : vector<8x8xf32> to vector<8xf32>
    %107 = vector.shape_cast %106 : vector<8xf32> to vector<8x1xf32>
    %108 = vector.broadcast %107 : vector<8x1xf32> to vector<8x8xf32>
    %109 = arith.subf %105, %108 : vector<8x8xf32>
    %110 = math.exp %109 : vector<8x8xf32>
    %cst_42 = arith.constant dense<0.000000e+00> : vector<8xf32>
    %111 = vector.multi_reduction <add>, %110, %cst_42 [1] : vector<8x8xf32> to vector<8xf32>
    %112 = vector.shape_cast %111 : vector<8xf32> to vector<8x1xf32>
    %cst_43 = arith.constant 1.000000e+00 : f32
    %113 = vector.broadcast %cst_43 : f32 to vector<8x1xf32>
    %114 = arith.divf %113, %112 : vector<8x1xf32>
    %115 = vector.broadcast %114 : vector<8x1xf32> to vector<8x8xf32>
    %116 = arith.mulf %110, %115 : vector<8x8xf32>
    %117 = arith.truncf %116 : vector<8x8xf32> to vector<8x8xbf16>
    %118 = vector.extract_strided_slice %50 {offsets = [0, 16], sizes = [8, 8], strides = [1, 1]} : vector<8x32xbf16> to vector<8x8xbf16>
    %cst_44 = arith.constant dense<0.000000e+00> : vector<8x8xf32>
    %119 = tpu.matmul %117, %118, %cst_44 {dimension_numbers = #tpu.dot_dimension_numbers<[1], [0], [0], [1], [0, 0, 1, 1], [], []>} : vector<8x8xbf16>, vector<8x8xbf16>, vector<8x8xf32> -> vector<8x8xf32>
    %120 = vector.extract_strided_slice %48 {offsets = [0, 24], sizes = [8, 8], strides = [1, 1]} : vector<8x32xbf16> to vector<8x8xbf16>
    %121 = vector.extract_strided_slice %49 {offsets = [0, 24], sizes = [8, 8], strides = [1, 1]} : vector<8x32xbf16> to vector<8x8xbf16>
    %cst_45 = arith.constant dense<0.000000e+00> : vector<8x8xf32>
    %122 = tpu.matmul %120, %121, %cst_45 {dimension_numbers = #tpu.dot_dimension_numbers<[1], [1], [0], [0], [0, 0, 1, 0], [], []>} : vector<8x8xbf16>, vector<8x8xbf16>, vector<8x8xf32> -> vector<8x8xf32>
    %cst_46 = arith.constant 0.000000e+00 : f32
    %123 = vector.broadcast %cst_46 : f32 to vector<1x8xf32>
    %124 = arith.cmpf oeq, %47, %123 : vector<1x8xf32>
    %cst_47 = arith.constant -1.000000e+09 : f32
    %125 = vector.shape_cast %124 : vector<1x8xi1> to vector<1x8xi1>
    %126 = vector.broadcast %125 : vector<1x8xi1> to vector<8x8xi1>
    %127 = vector.broadcast %cst_47 : f32 to vector<8x8xf32>
    %128 = arith.select %126, %127, %122 : vector<8x8xi1>, vector<8x8xf32>
    %cst_48 = arith.constant dense<0xFF800000> : vector<8xf32>
    %129 = vector.multi_reduction <maximumf>, %128, %cst_48 [1] : vector<8x8xf32> to vector<8xf32>
    %130 = vector.shape_cast %129 : vector<8xf32> to vector<8x1xf32>
    %131 = vector.broadcast %130 : vector<8x1xf32> to vector<8x8xf32>
    %132 = arith.subf %128, %131 : vector<8x8xf32>
    %133 = math.exp %132 : vector<8x8xf32>
    %cst_49 = arith.constant dense<0.000000e+00> : vector<8xf32>
    %134 = vector.multi_reduction <add>, %133, %cst_49 [1] : vector<8x8xf32> to vector<8xf32>
    %135 = vector.shape_cast %134 : vector<8xf32> to vector<8x1xf32>
    %cst_50 = arith.constant 1.000000e+00 : f32
    %136 = vector.broadcast %cst_50 : f32 to vector<8x1xf32>
    %137 = arith.divf %136, %135 : vector<8x1xf32>
    %138 = vector.broadcast %137 : vector<8x1xf32> to vector<8x8xf32>
    %139 = arith.mulf %133, %138 : vector<8x8xf32>
    %140 = arith.truncf %139 : vector<8x8xf32> to vector<8x8xbf16>
    %141 = vector.extract_strided_slice %50 {offsets = [0, 24], sizes = [8, 8], strides = [1, 1]} : vector<8x32xbf16> to vector<8x8xbf16>
    %cst_51 = arith.constant dense<0.000000e+00> : vector<8x8xf32>
    %142 = tpu.matmul %140, %141, %cst_51 {dimension_numbers = #tpu.dot_dimension_numbers<[1], [0], [0], [1], [0, 0, 1, 1], [], []>} : vector<8x8xbf16>, vector<8x8xbf16>, vector<8x8xf32> -> vector<8x8xf32>
    %143 = tpu.concatenate %73, %96, %119, %142 in 1 : vector<8x8xf32>, vector<8x8xf32>, vector<8x8xf32>, vector<8x8xf32> -> vector<8x32xf32>
    %c0_52 = arith.constant 0 : index
    %c0_53 = arith.constant 0 : index
    %144 = vector.load %arg8[%c0_52, %c0_53] : memref<32x32xbf16, #tpu.memory_space<vmem>>, vector<32x32xbf16>
    %145 = arith.truncf %143 : vector<8x32xf32> to vector<8x32xbf16>
    %cst_54 = arith.constant dense<0.000000e+00> : vector<8x32xf32>
    %146 = tpu.matmul %145, %144, %cst_54 {dimension_numbers = #tpu.dot_dimension_numbers<[1], [0], [0], [1], [0, 0, 1, 1], [], []>} : vector<8x32xbf16>, vector<32x32xbf16>, vector<8x32xf32> -> vector<8x32xf32>
    %c0_55 = arith.constant 0 : index
    %c0_56 = arith.constant 0 : index
    %147 = vector.load %arg9[%c0_55, %c0_56] : memref<1x32xf32, #tpu.memory_space<vmem>>, vector<1x32xf32>
    %148 = vector.broadcast %147 : vector<1x32xf32> to vector<8x32xf32>
    %149 = arith.addf %146, %148 : vector<8x32xf32>
    %150 = arith.addf %1, %149 : vector<8x32xf32>
    %c0_57 = arith.constant 0 : index
    %c0_58 = arith.constant 0 : index
    %c0_59 = arith.constant 0 : index
    %151 = vector.load %arg10[%c0_57, %c0_58, %c0_59] : memref<1x8x32xf32, #tpu.memory_space<vmem>>, vector<1x8x32xf32>
    %152 = vector.shape_cast %151 : vector<1x8x32xf32> to vector<8x32xf32>
    %153 = vector.shape_cast %150 : vector<8x32xf32> to vector<1x8x32xf32>
    tpu.vector_store %arg10[%c0_57, %c0_58, %c0_59], %153 {strides = array<i32>} : memref<1x8x32xf32, #tpu.memory_space<vmem>>, vector<1x8x32xf32>,
    return
  }
  func.func @transform_0(%arg0: i32) -> (i32, i32, i32) {
    %c0_i32 = arith.constant 0 : i32
    %c0_i32_0 = arith.constant 0 : i32
    %c0_i32_1 = arith.constant 0 : i32
    return %arg0, %c0_i32, %c0_i32_0 : i32, i32, i32
  }
  func.func @transform_1(%arg0: i32) -> (i32, i32, i32) {
    %c0_i32 = arith.constant 0 : i32
    %c0_i32_0 = arith.constant 0 : i32
    %c0_i32_1 = arith.constant 0 : i32
    return %arg0, %c0_i32, %c0_i32_0 : i32, i32, i32
  }
  func.func @transform_2(%arg0: i32) -> (i32, i32, i32) {
    %c0_i32 = arith.constant 0 : i32
    %c0_i32_0 = arith.constant 0 : i32
    %c0_i32_1 = arith.constant 0 : i32
    return %arg0, %c0_i32, %c0_i32_0 : i32, i32, i32
  }
  func.func @transform_3(%arg0: i32) -> (i32, i32) {
    %c0_i32 = arith.constant 0 : i32
    %c0_i32_0 = arith.constant 0 : i32
    %c0_i32_1 = arith.constant 0 : i32
    return %c0_i32, %c0_i32_0 : i32, i32
  }
  func.func @transform_4(%arg0: i32) -> (i32, i32) {
    %c0_i32 = arith.constant 0 : i32
    %c0_i32_0 = arith.constant 0 : i32
    %c0_i32_1 = arith.constant 0 : i32
    return %c0_i32, %c0_i32_0 : i32, i32
  }
  func.func @transform_5(%arg0: i32) -> (i32, i32) {
    %c0_i32 = arith.constant 0 : i32
    %c0_i32_0 = arith.constant 0 : i32
    %c0_i32_1 = arith.constant 0 : i32
    return %c0_i32, %c0_i32_0 : i32, i32
  }
  func.func @transform_6(%arg0: i32) -> (i32, i32) {
    %c0_i32 = arith.constant 0 : i32
    %c0_i32_0 = arith.constant 0 : i32
    %c0_i32_1 = arith.constant 0 : i32
    return %c0_i32, %c0_i32_0 : i32, i32
  }
  func.func @transform_7(%arg0: i32) -> (i32, i32) {
    %c0_i32 = arith.constant 0 : i32
    %c0_i32_0 = arith.constant 0 : i32
    %c0_i32_1 = arith.constant 0 : i32
    return %c0_i32, %c0_i32_0 : i32, i32
  }
  func.func @transform_8(%arg0: i32) -> (i32, i32) {
    %c0_i32 = arith.constant 0 : i32
    %c0_i32_0 = arith.constant 0 : i32
    %c0_i32_1 = arith.constant 0 : i32
    return %c0_i32, %c0_i32_0 : i32, i32
  }
  func.func @transform_9(%arg0: i32) -> (i32, i32, i32) {
    %c0_i32 = arith.constant 0 : i32
    %c0_i32_0 = arith.constant 0 : i32
    %c0_i32_1 = arith.constant 0 : i32
    return %arg0, %c0_i32, %c0_i32_0 : i32, i32, i32
  }
}

module attributes {stable_mosaic.version = 11 : i64} {
  func.func @ffn_sublayer_kernel(%arg0: i32, %arg1: memref<16x32xf32, #tpu.memory_space<vmem>>, %arg2: memref<1x32xf32, #tpu.memory_space<vmem>>, %arg3: memref<1x32xf32, #tpu.memory_space<vmem>>, %arg4: memref<32x64xbf16, #tpu.memory_space<vmem>>, %arg5: memref<1x64xf32, #tpu.memory_space<vmem>>, %arg6: memref<64x32xbf16, #tpu.memory_space<vmem>>, %arg7: memref<1x32xf32, #tpu.memory_space<vmem>>, %arg8: memref<16x32xf32, #tpu.memory_space<vmem>>) attributes {dimension_semantics = [#tpu.dimension_semantics<parallel>], iteration_bounds = array<i64: 1>, scalar_prefetch = 0 : i64, scratch_operands = 0 : i64, tpu.core_type = #tpu.core_type<tc>, window_params = [{transform_indices = @transform_0, window_bounds = array<i64: 16, 32>}, {pipeline_mode = #tpu.pipeline_mode<synchronous>, transform_indices = @transform_1, window_bounds = array<i64: 1, 32>}, {pipeline_mode = #tpu.pipeline_mode<synchronous>, transform_indices = @transform_2, window_bounds = array<i64: 1, 32>}, {pipeline_mode = #tpu.pipeline_mode<synchronous>, transform_indices = @transform_3, window_bounds = array<i64: 32, 64>}, {pipeline_mode = #tpu.pipeline_mode<synchronous>, transform_indices = @transform_4, window_bounds = array<i64: 1, 64>}, {pipeline_mode = #tpu.pipeline_mode<synchronous>, transform_indices = @transform_5, window_bounds = array<i64: 64, 32>}, {pipeline_mode = #tpu.pipeline_mode<synchronous>, transform_indices = @transform_6, window_bounds = array<i64: 1, 32>}, {transform_indices = @transform_7, window_bounds = array<i64: 16, 32>}]} {
    %c0 = arith.constant 0 : index
    %c0_0 = arith.constant 0 : index
    %0 = vector.load %arg1[%c0, %c0_0] : memref<16x32xf32, #tpu.memory_space<vmem>>, vector<16x32xf32>
    %c0_1 = arith.constant 0 : index
    %c0_2 = arith.constant 0 : index
    %1 = vector.load %arg2[%c0_1, %c0_2] : memref<1x32xf32, #tpu.memory_space<vmem>>, vector<1x32xf32>
    %c0_3 = arith.constant 0 : index
    %c0_4 = arith.constant 0 : index
    %2 = vector.load %arg3[%c0_3, %c0_4] : memref<1x32xf32, #tpu.memory_space<vmem>>, vector<1x32xf32>
    %cst = arith.constant dense<0.000000e+00> : vector<16xf32>
    %3 = vector.multi_reduction <add>, %0, %cst [1] : vector<16x32xf32> to vector<16xf32>
    %4 = vector.shape_cast %3 : vector<16xf32> to vector<16x1xf32>
    %cst_5 = arith.constant 3.200000e+01 : f32
    %5 = vector.broadcast %cst_5 : f32 to vector<16x1xf32>
    %6 = arith.divf %4, %5 : vector<16x1xf32>
    %7 = vector.broadcast %6 : vector<16x1xf32> to vector<16x32xf32>
    %8 = arith.subf %0, %7 : vector<16x32xf32>
    %9 = arith.mulf %8, %8 : vector<16x32xf32>
    %cst_6 = arith.constant dense<0.000000e+00> : vector<16xf32>
    %10 = vector.multi_reduction <add>, %9, %cst_6 [1] : vector<16x32xf32> to vector<16xf32>
    %11 = vector.shape_cast %10 : vector<16xf32> to vector<16x1xf32>
    %cst_7 = arith.constant 0.0322580636 : f32
    %12 = vector.broadcast %cst_7 : f32 to vector<16x1xf32>
    %13 = arith.mulf %11, %12 : vector<16x1xf32>
    %14 = math.sqrt %13 : vector<16x1xf32>
    %cst_8 = arith.constant 9.99999997E-7 : f32
    %15 = vector.broadcast %cst_8 : f32 to vector<16x1xf32>
    %16 = arith.addf %14, %15 : vector<16x1xf32>
    %cst_9 = arith.constant 1.000000e+00 : f32
    %17 = vector.broadcast %cst_9 : f32 to vector<16x1xf32>
    %18 = arith.divf %17, %16 : vector<16x1xf32>
    %19 = vector.broadcast %18 : vector<16x1xf32> to vector<16x32xf32>
    %20 = arith.mulf %8, %19 : vector<16x32xf32>
    %21 = vector.broadcast %1 : vector<1x32xf32> to vector<16x32xf32>
    %22 = arith.mulf %20, %21 : vector<16x32xf32>
    %23 = vector.broadcast %2 : vector<1x32xf32> to vector<16x32xf32>
    %24 = arith.addf %22, %23 : vector<16x32xf32>
    %c0_10 = arith.constant 0 : index
    %c0_11 = arith.constant 0 : index
    %25 = vector.load %arg4[%c0_10, %c0_11] : memref<32x64xbf16, #tpu.memory_space<vmem>>, vector<32x64xbf16>
    %26 = arith.truncf %24 : vector<16x32xf32> to vector<16x32xbf16>
    %cst_12 = arith.constant dense<0.000000e+00> : vector<16x64xf32>
    %27 = tpu.matmul %26, %25, %cst_12 {dimension_numbers = #tpu.dot_dimension_numbers<[1], [0], [0], [1], [0, 0, 1, 1], [], []>} : vector<16x32xbf16>, vector<32x64xbf16>, vector<16x64xf32> -> vector<16x64xf32>
    %c0_13 = arith.constant 0 : index
    %c0_14 = arith.constant 0 : index
    %28 = vector.load %arg5[%c0_13, %c0_14] : memref<1x64xf32, #tpu.memory_space<vmem>>, vector<1x64xf32>
    %29 = vector.broadcast %28 : vector<1x64xf32> to vector<16x64xf32>
    %30 = arith.addf %27, %29 : vector<16x64xf32>
    %cst_15 = arith.constant 0.000000e+00 : f32
    %31 = vector.broadcast %cst_15 : f32 to vector<16x64xf32>
    %32 = arith.maximumf %30, %31 : vector<16x64xf32>
    %c0_16 = arith.constant 0 : index
    %c0_17 = arith.constant 0 : index
    %33 = vector.load %arg6[%c0_16, %c0_17] : memref<64x32xbf16, #tpu.memory_space<vmem>>, vector<64x32xbf16>
    %34 = arith.truncf %32 : vector<16x64xf32> to vector<16x64xbf16>
    %cst_18 = arith.constant dense<0.000000e+00> : vector<16x32xf32>
    %35 = tpu.matmul %34, %33, %cst_18 {dimension_numbers = #tpu.dot_dimension_numbers<[1], [0], [0], [1], [0, 0, 1, 1], [], []>} : vector<16x64xbf16>, vector<64x32xbf16>, vector<16x32xf32> -> vector<16x32xf32>
    %c0_19 = arith.constant 0 : index
    %c0_20 = arith.constant 0 : index
    %36 = vector.load %arg7[%c0_19, %c0_20] : memref<1x32xf32, #tpu.memory_space<vmem>>, vector<1x32xf32>
    %37 = vector.broadcast %36 : vector<1x32xf32> to vector<16x32xf32>
    %38 = arith.addf %35, %37 : vector<16x32xf32>
    %39 = arith.addf %0, %38 : vector<16x32xf32>
    %c0_21 = arith.constant 0 : index
    %c0_22 = arith.constant 0 : index
    %40 = vector.load %arg8[%c0_21, %c0_22] : memref<16x32xf32, #tpu.memory_space<vmem>>, vector<16x32xf32>
    tpu.vector_store %arg8[%c0_21, %c0_22], %39 {strides = array<i32>} : memref<16x32xf32, #tpu.memory_space<vmem>>, vector<16x32xf32>,
    return
  }
  func.func @transform_0(%arg0: i32) -> (i32, i32) {
    %c0_i32 = arith.constant 0 : i32
    %c0_i32_0 = arith.constant 0 : i32
    return %arg0, %c0_i32 : i32, i32
  }
  func.func @transform_1(%arg0: i32) -> (i32, i32) {
    %c0_i32 = arith.constant 0 : i32
    %c0_i32_0 = arith.constant 0 : i32
    %c0_i32_1 = arith.constant 0 : i32
    return %c0_i32, %c0_i32_0 : i32, i32
  }
  func.func @transform_2(%arg0: i32) -> (i32, i32) {
    %c0_i32 = arith.constant 0 : i32
    %c0_i32_0 = arith.constant 0 : i32
    %c0_i32_1 = arith.constant 0 : i32
    return %c0_i32, %c0_i32_0 : i32, i32
  }
  func.func @transform_3(%arg0: i32) -> (i32, i32) {
    %c0_i32 = arith.constant 0 : i32
    %c0_i32_0 = arith.constant 0 : i32
    %c0_i32_1 = arith.constant 0 : i32
    return %c0_i32, %c0_i32_0 : i32, i32
  }
  func.func @transform_4(%arg0: i32) -> (i32, i32) {
    %c0_i32 = arith.constant 0 : i32
    %c0_i32_0 = arith.constant 0 : i32
    %c0_i32_1 = arith.constant 0 : i32
    return %c0_i32, %c0_i32_0 : i32, i32
  }
  func.func @transform_5(%arg0: i32) -> (i32, i32) {
    %c0_i32 = arith.constant 0 : i32
    %c0_i32_0 = arith.constant 0 : i32
    %c0_i32_1 = arith.constant 0 : i32
    return %c0_i32, %c0_i32_0 : i32, i32
  }
  func.func @transform_6(%arg0: i32) -> (i32, i32) {
    %c0_i32 = arith.constant 0 : i32
    %c0_i32_0 = arith.constant 0 : i32
    %c0_i32_1 = arith.constant 0 : i32
    return %c0_i32, %c0_i32_0 : i32, i32
  }
  func.func @transform_7(%arg0: i32) -> (i32, i32) {
    %c0_i32 = arith.constant 0 : i32
    %c0_i32_0 = arith.constant 0 : i32
    return %arg0, %c0_i32 : i32, i32
  }
}

module attributes {stable_mosaic.version = 11 : i64} {
  func.func @final_norm_kernel(%arg0: i32, %arg1: memref<16x32xf32, #tpu.memory_space<vmem>>, %arg2: memref<1x32xf32, #tpu.memory_space<vmem>>, %arg3: memref<1x32xf32, #tpu.memory_space<vmem>>, %arg4: memref<16x32xf32, #tpu.memory_space<vmem>>) attributes {dimension_semantics = [#tpu.dimension_semantics<parallel>], iteration_bounds = array<i64: 1>, scalar_prefetch = 0 : i64, scratch_operands = 0 : i64, tpu.core_type = #tpu.core_type<tc>, window_params = [{transform_indices = @transform_0, window_bounds = array<i64: 16, 32>}, {pipeline_mode = #tpu.pipeline_mode<synchronous>, transform_indices = @transform_1, window_bounds = array<i64: 1, 32>}, {pipeline_mode = #tpu.pipeline_mode<synchronous>, transform_indices = @transform_2, window_bounds = array<i64: 1, 32>}, {transform_indices = @transform_3, window_bounds = array<i64: 16, 32>}]} {
    %c0 = arith.constant 0 : index
    %c0_0 = arith.constant 0 : index
    %0 = vector.load %arg1[%c0, %c0_0] : memref<16x32xf32, #tpu.memory_space<vmem>>, vector<16x32xf32>
    %c0_1 = arith.constant 0 : index
    %c0_2 = arith.constant 0 : index
    %1 = vector.load %arg2[%c0_1, %c0_2] : memref<1x32xf32, #tpu.memory_space<vmem>>, vector<1x32xf32>
    %c0_3 = arith.constant 0 : index
    %c0_4 = arith.constant 0 : index
    %2 = vector.load %arg3[%c0_3, %c0_4] : memref<1x32xf32, #tpu.memory_space<vmem>>, vector<1x32xf32>
    %cst = arith.constant dense<0.000000e+00> : vector<16xf32>
    %3 = vector.multi_reduction <add>, %0, %cst [1] : vector<16x32xf32> to vector<16xf32>
    %4 = vector.shape_cast %3 : vector<16xf32> to vector<16x1xf32>
    %cst_5 = arith.constant 3.200000e+01 : f32
    %5 = vector.broadcast %cst_5 : f32 to vector<16x1xf32>
    %6 = arith.divf %4, %5 : vector<16x1xf32>
    %7 = vector.broadcast %6 : vector<16x1xf32> to vector<16x32xf32>
    %8 = arith.subf %0, %7 : vector<16x32xf32>
    %9 = arith.mulf %8, %8 : vector<16x32xf32>
    %cst_6 = arith.constant dense<0.000000e+00> : vector<16xf32>
    %10 = vector.multi_reduction <add>, %9, %cst_6 [1] : vector<16x32xf32> to vector<16xf32>
    %11 = vector.shape_cast %10 : vector<16xf32> to vector<16x1xf32>
    %cst_7 = arith.constant 0.0322580636 : f32
    %12 = vector.broadcast %cst_7 : f32 to vector<16x1xf32>
    %13 = arith.mulf %11, %12 : vector<16x1xf32>
    %14 = math.sqrt %13 : vector<16x1xf32>
    %cst_8 = arith.constant 9.99999997E-7 : f32
    %15 = vector.broadcast %cst_8 : f32 to vector<16x1xf32>
    %16 = arith.addf %14, %15 : vector<16x1xf32>
    %cst_9 = arith.constant 1.000000e+00 : f32
    %17 = vector.broadcast %cst_9 : f32 to vector<16x1xf32>
    %18 = arith.divf %17, %16 : vector<16x1xf32>
    %19 = vector.broadcast %18 : vector<16x1xf32> to vector<16x32xf32>
    %20 = arith.mulf %8, %19 : vector<16x32xf32>
    %21 = vector.broadcast %1 : vector<1x32xf32> to vector<16x32xf32>
    %22 = arith.mulf %20, %21 : vector<16x32xf32>
    %23 = vector.broadcast %2 : vector<1x32xf32> to vector<16x32xf32>
    %24 = arith.addf %22, %23 : vector<16x32xf32>
    %c0_10 = arith.constant 0 : index
    %c0_11 = arith.constant 0 : index
    %25 = vector.load %arg4[%c0_10, %c0_11] : memref<16x32xf32, #tpu.memory_space<vmem>>, vector<16x32xf32>
    tpu.vector_store %arg4[%c0_10, %c0_11], %24 {strides = array<i32>} : memref<16x32xf32, #tpu.memory_space<vmem>>, vector<16x32xf32>,
    return
  }
  func.func @transform_0(%arg0: i32) -> (i32, i32) {
    %c0_i32 = arith.constant 0 : i32
    %c0_i32_0 = arith.constant 0 : i32
    return %arg0, %c0_i32 : i32, i32
  }
  func.func @transform_1(%arg0: i32) -> (i32, i32) {
    %c0_i32 = arith.constant 0 : i32
    %c0_i32_0 = arith.constant 0 : i32
    %c0_i32_1 = arith.constant 0 : i32
    return %c0_i32, %c0_i32_0 : i32, i32
  }
  func.func @transform_2(%arg0: i32) -> (i32, i32) {
    %c0_i32 = arith.constant 0 : i32
    %c0_i32_0 = arith.constant 0 : i32
    %c0_i32_1 = arith.constant 0 : i32
    return %c0_i32, %c0_i32_0 : i32, i32
  }
  func.func @transform_3(%arg0: i32) -> (i32, i32) {
    %c0_i32 = arith.constant 0 : i32
    %c0_i32_0 = arith.constant 0 : i32
    return %arg0, %c0_i32 : i32, i32
  }
}

</mosaic_0001>

<llo_original>
// kernel: decoder_forward.13
$region0: #{decoder_forward.13}
  #allocation0 [shape = 'u32[]', space=smem, size = 0x4, offset = 0x4, fixed_abs, tag = 'smem constant byte address 0x4 - core index']
  #allocation1 [shape = 'u32[144,128]{1,0:T(1,128)}', space=vmem, size = 0x12000, scoped, tag = 'internal scratch']
  %s0 = inlined_call_operand.vmem [shape: f32[16,32], index: 0, kind: input, shape index: {}]
  %s1 = inlined_call_operand.vmem [shape: f32[1,32], index: 1, kind: input, shape index: {}]
  %s2 = inlined_call_operand.vmem [shape: f32[1,32], index: 2, kind: input, shape index: {}]
  %s3 = inlined_call_operand.hbm [shape: f32[16,32], index: 3, kind: output, shape index: {}]
  %s4 = sld [smem:[#allocation0]]
  $region22: #{decoder_forward.13} parent=0
    _
  %s6 = ssub.s32 1, %s4
  %s7 = scalar_select 0, %s6, %s4
  $region1: #{decoder_forward.13} parent=0
    #allocation2 [shape = 'u8[8192]{0}', space=vmem, size = 0x2000, scoped, tag = 'output window, operand 0, single buffered']
    #allocation3 [shape = 's32[1]{0}', space=sflag, size = 0x4, scoped, tag = 'scoped memory for decoder_forward.13']
    %8 = vsyncpa [#allocation3], 0
    // Predicated region
    $region2: #{decoder_forward.13} parent=1 // pred_check
      _
    $region3: #{decoder_forward.13} parent=1 // pred_check_branch
      %10 = sbr.rel (0) target = $region5
    $region4: #{decoder_forward.13} parent=1 // pred_region
      _
    $region5: #{decoder_forward.13} parent=1 // pred_fallthru
      _
    // Predicated region
    $region6: #{decoder_forward.13} parent=1 // pred_check
      _
    $region7: #{decoder_forward.13} parent=1 // pred_check_branch
      %12 = sbr.rel (0) target = $region9
    $region8: #{decoder_forward.13} parent=1 // pred_region
      _
    $region9: #{decoder_forward.13} parent=1 // pred_fallthru
      _
    // Predicated region
    $region10: #{decoder_forward.13} parent=1 // pred_check
      _
    $region11: #{decoder_forward.13} parent=1 // pred_check_branch
      %14 = sbr.rel (0) target = $region13
    $region12: #{decoder_forward.13} parent=1 // pred_region
      _
    $region13: #{decoder_forward.13} parent=1 // pred_fallthru
      _
    %v15 = vld [vmem:[%s0] sm:$0xff]
    %v16 = vld [vmem:[%s0 + $0x8] sm:$0xff]
    %v17 = vld [vmem:[%s1] sm:$0x1]
    %v18 = vld [vmem:[%s2] sm:$0x1]
    %vm19 = vcmask 261120
    %v20 = vsel %vm19, %v15, 0.0
    %21 = vadd.xlane.f32.xlu0 %v20
    %v22 = vpop.xlane.xlu0 %21
    %v23 = vsel %vm19, %v16, 0.0
    %24 = vadd.xlane.f32.xlu0 %v23
    %v25 = vpop.xlane.xlu0 %24
    %v26 = vrcp.pop 32.0
    %v27 = vmul.f32 %v22, %v26
    %v28 = vmul.f32 %v25, %v26
    %v29 = vsub.f32 %v15, %v27
    %v30 = vsub.f32 %v16, %v28
    %v31 = vmul.f32 %v29, %v29
    %v32 = vmul.f32 %v30, %v30
    %v33 = vsel %vm19, %v31, 0.0
    %34 = vadd.xlane.f32.xlu0 %v33
    %v35 = vpop.xlane.xlu0 %34
    %v36 = vsel %vm19, %v32, 0.0
    %37 = vadd.xlane.f32.xlu0 %v36
    %v38 = vpop.xlane.xlu0 %37
    %v39 = vmul.f32 %v35, 0.032258064
    %v40 = vmul.f32 %v38, 0.032258064
    %v41 = vrsqrt.pop %v39
    %v42 = vmul.f32 %v39, %v41
    %vm43 = vcmp.eq.f32.partialorder %v39, inf
    %v44 = vsel %vm43, %v39, %v42
    %vm45 = vcmp.eq.f32.partialorder %v39, 0.0
    %v46 = vand.u32 %v39, 2147483648
    %v47 = vsel %vm45, %v46, %v44
    %v48 = vrsqrt.pop %v40
    %v49 = vmul.f32 %v40, %v48
    %vm50 = vcmp.eq.f32.partialorder %v40, inf
    %v51 = vsel %vm50, %v40, %v49
    %vm52 = vcmp.eq.f32.partialorder %v40, 0.0
    %v53 = vand.u32 %v40, 2147483648
    %v54 = vsel %vm52, %v53, %v51
    %v55 = vadd.f32 %v47, 1e-06
    %v56 = vadd.f32 %v54, 1e-06
    %v57 = vrcp.pop %v55
    %v58 = vmul.f32 1.0, %v57
    %v59 = vrcp.pop %v56
    %v60 = vmul.f32 1.0, %v59
    %v61 = vmul.f32 %v29, %v58
    %v62 = vmul.f32 %v30, %v60
    %v64 = vlaneseq
    %v65 = vshrl.u32 %v64, 7
    %v66 = vsub.s32 0, %v65
    %v67 = vrot.slane %v17, %v66
    %v69 = vmul.f32 %v61, %v67
    %v70 = vmul.f32 %v62, %v67
    %v72 = vlaneseq
    %v73 = vshrl.u32 %v72, 7
    %v74 = vsub.s32 0, %v73
    %v75 = vrot.slane %v18, %v74
    %v77 = vadd.f32 %v69, %v75
    %v78 = vadd.f32 %v70, %v75
    %79 = vst.msk [vmem:[#allocation2] sm:$0xff] %vm19, %v77
    %80 = vst.msk [vmem:[#allocation2 + $0x8] sm:$0xff] %vm19, %v78
    // Predicated region
    $region14: #{decoder_forward.13} parent=1 // pred_check
      _
    $region15: #{decoder_forward.13} parent=1 // pred_check_branch
      %82 = sbr.rel (0) target = $region17
    $region16: #{decoder_forward.13} parent=1 // pred_region
      %s84 = ssub.s32 256, 256
      %85 = vsyncadd [#allocation3], %s84
      %s86 = sshll.u32 [#allocation2], 4
      %s87 = int_to_ptr.vmem [resolvable:$true] %s86
      %92 = dma.vmem_to_hbm [thread:$0]  %s87, 256, %s3, [#allocation3], 128, 128, 8
    $region17: #{decoder_forward.13} parent=1 // pred_fallthru
      _
    // Predicated region
    $region18: #{decoder_forward.13} parent=1 // pred_check
      _
    $region19: #{decoder_forward.13} parent=1 // pred_check_branch
      %94 = sbr.rel (0) target = $region21
    $region20: #{decoder_forward.13} parent=1 // pred_region
      %95 = dma.done [#allocation3], 256
    $region21: #{decoder_forward.13} parent=1 // pred_fallthru
      _
    %96 = vsyncpa [#allocation3], 1

// kernel: decoder_forward.9
$region0: #{decoder_forward.9}
  #allocation0 [shape = 'u32[]', space=smem, size = 0x4, offset = 0x4, fixed_abs, tag = 'smem constant byte address 0x4 - core index']
  #allocation1 [shape = 'u32[144,128]{1,0:T(1,128)}', space=vmem, size = 0x12000, scoped, tag = 'internal scratch']
  %s0 = inlined_call_operand.vmem [shape: f32[16,32], index: 0, kind: input, shape index: {}]
  %s1 = inlined_call_operand.vmem [shape: f32[1,32], index: 1, kind: input, shape index: {}]
  %s2 = inlined_call_operand.vmem [shape: f32[1,32], index: 2, kind: input, shape index: {}, may-alias: {2,6}]
  %s3 = inlined_call_operand.vmem [shape: bf16[32,64], index: 3, kind: input, shape index: {}]
  %s4 = inlined_call_operand.vmem [shape: f32[1,64], index: 4, kind: input, shape index: {}]
  %s5 = inlined_call_operand.vmem [shape: bf16[64,32], index: 5, kind: input, shape index: {}]
  %s6 = inlined_call_operand.vmem [shape: f32[1,32], index: 6, kind: input, shape index: {}, may-alias: {2,6}]
  %s7 = inlined_call_operand.vmem [shape: f32[16,32], index: 7, kind: output, shape index: {}]
  %s8 = sld [smem:[#allocation0]]
  $region38: #{decoder_forward.9} parent=0
    _
  %s10 = ssub.s32 1, %s8
  %s11 = scalar_select 0, %s10, %s8
  // Predicated region
  $region2: #{decoder_forward.9} parent=0 // pred_check
    _
  $region3: #{decoder_forward.9} parent=0 // pred_check_branch
    %13 = sbr.rel (0) target = $region5
  $region4: #{decoder_forward.9} parent=0 // pred_region
    _
  $region5: #{decoder_forward.9} parent=0 // pred_fallthru
    _
  // Predicated region
  $region6: #{decoder_forward.9} parent=0 // pred_check
    _
  $region7: #{decoder_forward.9} parent=0 // pred_check_branch
    %15 = sbr.rel (0) target = $region9
  $region8: #{decoder_forward.9} parent=0 // pred_region
    _
  $region9: #{decoder_forward.9} parent=0 // pred_fallthru
    _
  // Predicated region
  $region10: #{decoder_forward.9} parent=0 // pred_check
    _
  $region11: #{decoder_forward.9} parent=0 // pred_check_branch
    %17 = sbr.rel (0) target = $region13
  $region12: #{decoder_forward.9} parent=0 // pred_region
    _
  $region13: #{decoder_forward.9} parent=0 // pred_fallthru
    _
  // Predicated region
  $region14: #{decoder_forward.9} parent=0 // pred_check
    _
  $region15: #{decoder_forward.9} parent=0 // pred_check_branch
    %19 = sbr.rel (0) target = $region17
  $region16: #{decoder_forward.9} parent=0 // pred_region
    _
  $region17: #{decoder_forward.9} parent=0 // pred_fallthru
    _
  // Predicated region
  $region18: #{decoder_forward.9} parent=0 // pred_check
    _
  $region19: #{decoder_forward.9} parent=0 // pred_check_branch
    %21 = sbr.rel (0) target = $region21
  $region20: #{decoder_forward.9} parent=0 // pred_region
    _
  $region21: #{decoder_forward.9} parent=0 // pred_fallthru
    _
  // Predicated region
  $region22: #{decoder_forward.9} parent=0 // pred_check
    _
  $region23: #{decoder_forward.9} parent=0 // pred_check_branch
    %23 = sbr.rel (0) target = $region25
  $region24: #{decoder_forward.9} parent=0 // pred_region
    _
  $region25: #{decoder_forward.9} parent=0 // pred_fallthru
    _
  // Predicated region
  $region26: #{decoder_forward.9} parent=0 // pred_check
    _
  $region27: #{decoder_forward.9} parent=0 // pred_check_branch
    %25 = sbr.rel (0) target = $region29
  $region28: #{decoder_forward.9} parent=0 // pred_region
    _
  $region29: #{decoder_forward.9} parent=0 // pred_fallthru
    _
  %v27 = vld [vmem:[%s0] sm:$0xff]
  %v28 = vld [vmem:[%s0 + $0x8] sm:$0xff]
  %v29 = vld [vmem:[%s1] sm:$0x1]
  %v30 = vld [vmem:[%s2] sm:$0x1]
  %vm31 = vcmask 261120
  %v32 = vsel %vm31, %v27, 0.0
  %33 = vadd.xlane.f32.xlu0 %v32
  %v34 = vpop.xlane.xlu0 %33
  %v35 = vsel %vm31, %v28, 0.0
  %36 = vadd.xlane.f32.xlu0 %v35
  %v37 = vpop.xlane.xlu0 %36
  %v38 = vrcp.pop 32.0
  %v39 = vmul.f32 %v34, %v38
  %v40 = vmul.f32 %v37, %v38
  %v41 = vsub.f32 %v27, %v39
  %v42 = vsub.f32 %v28, %v40
  %v43 = vmul.f32 %v41, %v41
  %v44 = vmul.f32 %v42, %v42
  %v45 = vsel %vm31, %v43, 0.0
  %46 = vadd.xlane.f32.xlu0 %v45
  %v47 = vpop.xlane.xlu0 %46
  %v48 = vsel %vm31, %v44, 0.0
  %49 = vadd.xlane.f32.xlu0 %v48
  %v50 = vpop.xlane.xlu0 %49
  %v51 = vmul.f32 %v47, 0.032258064
  %v52 = vmul.f32 %v50, 0.032258064
  %v53 = vrsqrt.pop %v51
  %v54 = vmul.f32 %v51, %v53
  %vm55 = vcmp.eq.f32.partialorder %v51, inf
  %v56 = vsel %vm55, %v51, %v54
  %vm57 = vcmp.eq.f32.partialorder %v51, 0.0
  %v58 = vand.u32 %v51, 2147483648
  %v59 = vsel %vm57, %v58, %v56
  %v60 = vrsqrt.pop %v52
  %v61 = vmul.f32 %v52, %v60
  %vm62 = vcmp.eq.f32.partialorder %v52, inf
  %v63 = vsel %vm62, %v52, %v61
  %vm64 = vcmp.eq.f32.partialorder %v52, 0.0
  %v65 = vand.u32 %v52, 2147483648
  %v66 = vsel %vm64, %v65, %v63
  %v67 = vadd.f32 %v59, 1e-06
  %v68 = vadd.f32 %v66, 1e-06
  %v69 = vrcp.pop %v67
  %v70 = vmul.f32 1.0, %v69
  %v71 = vrcp.pop %v68
  %v72 = vmul.f32 1.0, %v71
  %v73 = vmul.f32 %v41, %v70
  %v74 = vmul.f32 %v42, %v72
  %v76 = vlaneseq
  %v77 = vshrl.u32 %v76, 7
  %v78 = vsub.s32 0, %v77
  %v79 = vrot.slane %v29, %v78
  %v81 = vmul.f32 %v73, %v79
  %v82 = vmul.f32 %v74, %v79
  %v84 = vlaneseq
  %v85 = vshrl.u32 %v84, 7
  %v86 = vsub.s32 0, %v85
  %v87 = vrot.slane %v30, %v86
  %v89 = vadd.f32 %v81, %v87
  %v90 = vadd.f32 %v82, %v87
  %v91 = vld [vmem:[%s3] sm:$0xf]
  %v92 = vld [vmem:[%s3 + $0x4] sm:$0xf]
  %v93 = vld [vmem:[%s3 + $0x8] sm:$0xf]
  %v94 = vld [vmem:[%s3 + $0xc] sm:$0xf]
  %v95 = vpack.c.bf16 %v90, %v89
  %v96 = vld [vmem:[%s4] sm:$0x1]
  %v98 = vlaneseq
  %v99 = vshrl.u32 %v98, 7
  %v100 = vsub.s32 0, %v99
  %v101 = vrot.slane %v96, %v100
  %v107 = vunpack.c.l.b16 %v91
  %v108 = vunpack.c.l.b16 %v92
  %v109 = vunpack.c.l.b16 %v93
  %v110 = vunpack.c.l.b16 %v94
  %v111 = vpack.c.b16 %v108, %v107
  %v112 = vpack.c.b16 %v110, %v109
  %v116 = vsel %vm31, %v95, 0
  %118 = vmatprep.subr.bf16.mxu0 0
  %119 = vmatpush1.bf16.msra.mxu0 %v111
  %120 = vmatprep.subr.bf16.mxu0 0
  %121 = vmatpush1.bf16.msra.mxu0 %v112
  %122 = vmatprep.subr.bf16.mxu0 0
  %123 = vmatpush1.bf16.msra.mxu0 0
  %124 = vmatprep.subr.bf16.mxu0 0
  %125 = vmatpush1.bf16.msra.mxu0 0
  %126 = vmatprep.subr.bf16.mxu0 0
  %127 = vmatpush1.bf16.msra.mxu0 0
  %128 = vmatprep.subr.bf16.mxu0 0
  %129 = vmatpush1.bf16.msra.mxu0 0
  %130 = vmatprep.subr.bf16.mxu0 0
  %131 = vmatpush1.bf16.msra.mxu0 0
  %132 = vmatprep.subr.bf16.mxu0 0
  %133 = vmatpush1.bf16.msra.mxu0 0
  %134 = vmatprep.subr.bf16.mxu0 0
  %135 = vmatpush1.bf16.msra.mxu0 0
  %136 = vmatprep.subr.bf16.mxu0 0
  %137 = vmatpush1.bf16.msra.mxu0 0
  %138 = vmatprep.subr.bf16.mxu0 0
  %139 = vmatpush1.bf16.msra.mxu0 0
  %140 = vmatprep.subr.bf16.mxu0 0
  %141 = vmatpush1.bf16.msra.mxu0 0
  %142 = vmatprep.subr.bf16.mxu0 0
  %143 = vmatpush1.bf16.msra.mxu0 0
  %144 = vmatprep.subr.bf16.mxu0 0
  %145 = vmatpush1.bf16.msra.mxu0 0
  %146 = vmatprep.subr.bf16.mxu0 0
  %147 = vmatpush1.bf16.msra.mxu0 0
  %148 = vmatprep.subr.bf16.mxu0 0
  %149 = vmatpush1.bf16.msra.mxu0 0
  %150 = vmatprep.mubr.bf16.mxu0 0
  %151 = vmatmul.mubr.bf16.gmra.mrb[0].mxu0 %v116
  %v152 = vpop.f32.mrb[0].mxu0
  %v153 = vadd.f32 %v101, %v152
  %v154 = vpop.f32.mrb[0].mxu0
  %v155 = vpop.f32.mrb[0].mxu0
  %v156 = vadd.f32 %v101, %v155
  %v157 = vpop.f32.mrb[0].mxu0
  %158 = vdwg.mxu0
  %v159 = vmax.f32 %v153, 0.0
  %v160 = vmax.f32 %v156, 0.0
  %v161 = vld [vmem:[%s5] sm:$0xf]
  %v162 = vld [vmem:[%s5 + $0x4] sm:$0xf]
  %v163 = vld [vmem:[%s5 + $0x8] sm:$0xf]
  %v164 = vld [vmem:[%s5 + $0xc] sm:$0xf]
  %v165 = vld [vmem:[%s5 + $0x10] sm:$0xf]
  %v166 = vld [vmem:[%s5 + $0x14] sm:$0xf]
  %v167 = vld [vmem:[%s5 + $0x18] sm:$0xf]
  %v168 = vld [vmem:[%s5 + $0x1c] sm:$0xf]
  %v169 = vpack.c.bf16 %v160, %v159
  %v170 = vld [vmem:[%s6] sm:$0x1]
  %v172 = vlaneseq
  %v173 = vshrl.u32 %v172, 7
  %v174 = vsub.s32 0, %v173
  %v175 = vrot.slane %v170, %v174
  %v185 = vunpack.c.l.b16 %v161
  %v186 = vunpack.c.l.b16 %v162
  %v187 = vunpack.c.l.b16 %v163
  %v188 = vunpack.c.l.b16 %v164
  %v189 = vunpack.c.l.b16 %v165
  %v190 = vunpack.c.l.b16 %v166
  %v191 = vunpack.c.l.b16 %v167
  %v192 = vunpack.c.l.b16 %v168
  %v193 = vpack.c.b16 %v186, %v185
  %v194 = vpack.c.b16 %v188, %v187
  %v195 = vpack.c.b16 %v190, %v189
  %v196 = vpack.c.b16 %v192, %v191
  %vm201 = vcmask 523264
  %v203 = vsel %vm201, %v169, 0
  %205 = vmatprep.subr.bf16.mxu0 0
  %206 = vmatpush1.bf16.msra.mxu0 %v193
  %207 = vmatprep.subr.bf16.mxu0 0
  %208 = vmatpush1.bf16.msra.mxu0 %v194
  %209 = vmatprep.subr.bf16.mxu0 0
  %210 = vmatpush1.bf16.msra.mxu0 %v195
  %211 = vmatprep.subr.bf16.mxu0 0
  %212 = vmatpush1.bf16.msra.mxu0 %v196
  %213 = vmatprep.subr.bf16.mxu0 0
  %214 = vmatpush1.bf16.msra.mxu0 0
  %215 = vmatprep.subr.bf16.mxu0 0
  %216 = vmatpush1.bf16.msra.mxu0 0
  %217 = vmatprep.subr.bf16.mxu0 0
  %218 = vmatpush1.bf16.msra.mxu0 0
  %219 = vmatprep.subr.bf16.mxu0 0
  %220 = vmatpush1.bf16.msra.mxu0 0
  %221 = vmatprep.subr.bf16.mxu0 0
  %222 = vmatpush1.bf16.msra.mxu0 0
  %223 = vmatprep.subr.bf16.mxu0 0
  %224 = vmatpush1.bf16.msra.mxu0 0
  %225 = vmatprep.subr.bf16.mxu0 0
  %226 = vmatpush1.bf16.msra.mxu0 0
  %227 = vmatprep.subr.bf16.mxu0 0
  %228 = vmatpush1.bf16.msra.mxu0 0
  %229 = vmatprep.subr.bf16.mxu0 0
  %230 = vmatpush1.bf16.msra.mxu0 0
  %231 = vmatprep.subr.bf16.mxu0 0
  %232 = vmatpush1.bf16.msra.mxu0 0
  %233 = vmatprep.subr.bf16.mxu0 0
  %234 = vmatpush1.bf16.msra.mxu0 0
  %235 = vmatprep.subr.bf16.mxu0 0
  %236 = vmatpush1.bf16.msra.mxu0 0
  %237 = vmatprep.mubr.bf16.mxu0 0
  %238 = vmatmul.mubr.bf16.gmra.mrb[0].mxu0 %v203
  %v239 = vpop.f32.mrb[0].mxu0
  %v240 = vadd.f32 %v175, %v239
  %v241 = vpop.f32.mrb[0].mxu0
  %v242 = vpop.f32.mrb[0].mxu0
  %v243 = vadd.f32 %v175, %v242
  %v244 = vpop.f32.mrb[0].mxu0
  %245 = vdwg.mxu0
  %v246 = vadd.f32 %v27, %v240
  %v247 = vadd.f32 %v28, %v243
  %248 = vst.msk [vmem:[%s7] sm:$0xff] %vm31, %v246
  %249 = vst.msk [vmem:[%s7 + $0x8] sm:$0xff] %vm31, %v247
  // Predicated region
  $region30: #{decoder_forward.9} parent=0 // pred_check
    _
  $region31: #{decoder_forward.9} parent=0 // pred_check_branch
    %251 = sbr.rel (0) target = $region33
  $region32: #{decoder_forward.9} parent=0 // pred_region
    _
  $region33: #{decoder_forward.9} parent=0 // pred_fallthru
    _
  // Predicated region
  $region34: #{decoder_forward.9} parent=0 // pred_check
    _
  $region35: #{decoder_forward.9} parent=0 // pred_check_branch
    %253 = sbr.rel (0) target = $region37
  $region36: #{decoder_forward.9} parent=0 // pred_region
    _
  $region37: #{decoder_forward.9} parent=0 // pred_fallthru
    _

// kernel: decoder_forward.7
$region0: #{decoder_forward.7}
  #allocation0 [shape = 'u32[]', space=smem, size = 0x4, offset = 0x4, fixed_abs, tag = 'smem constant byte address 0x4 - core index']
  #allocation1 [shape = 'u32[144,128]{1,0:T(1,128)}', space=vmem, size = 0x12000, scoped, tag = 'internal scratch']
  %s0 = inlined_call_operand.vmem [shape: f32[2,8,32], index: 0, kind: input, shape index: {}]
  %s1 = inlined_call_operand.vmem [shape: f32[2,8,8], index: 1, kind: input, shape index: {}]
  %s2 = inlined_call_operand.vmem [shape: f32[1,32], index: 2, kind: input, shape index: {}]
  %s3 = inlined_call_operand.vmem [shape: f32[1,32], index: 3, kind: input, shape index: {}, may-alias: {3,7}]
  %s4 = inlined_call_operand.vmem [shape: bf16[32,96], index: 4, kind: input, shape index: {}]
  %s5 = inlined_call_operand.vmem [shape: f32[1,96], index: 5, kind: input, shape index: {}]
  %s6 = inlined_call_operand.vmem [shape: bf16[32,32], index: 6, kind: input, shape index: {}]
  %s7 = inlined_call_operand.vmem [shape: f32[1,32], index: 7, kind: input, shape index: {}, may-alias: {3,7}]
  %s8 = inlined_call_operand.vmem [shape: f32[2,8,32], index: 8, kind: output, shape index: {}]
  %s9 = sld [smem:[#allocation0]]
  $region65: #{decoder_forward.7} parent=0
    _
  %s11 = ssub.s32 1, %s9
  %s12 = scalar_select 0, %s11, %s9
  loop: start=0, step=1, limit=4
  $region2: #{decoder_forward.7} parent=0 // loop_pre_header
    _
  $region3: #{decoder_forward.7} parent=0 // loop_header
    %s14 = sphi 0, %s18
    %p15 = scmp.ge.s32.totalorder %s14, 4
    %s24 = sphi 0, %s26
    %s27 = sphi 0, %s24
    %s28 = sphi 0, %s27
    %s44 = sphi 0, %s28
    %s50 = sphi 0, %s52
    %s53 = sphi 0, %s50
    %s54 = sphi 0, %s53
    %s70 = sphi 0, %s54
    %s74 = sphi 0, %s74
    %s76 = sphi 0, %s74
    %s77 = sphi 0, %s76
    %s91 = sphi 0, %s77
    %s95 = sphi 0, %s95
    %s97 = sphi 0, %s95
    %s98 = sphi 0, %s97
    %s112 = sphi 0, %s98
    %s116 = sphi 0, %s116
    %s118 = sphi 0, %s116
    %s119 = sphi 0, %s118
    %s133 = sphi 0, %s119
    %s137 = sphi 0, %s137
    %s139 = sphi 0, %s137
    %s140 = sphi 0, %s139
    %s154 = sphi 0, %s140
    %s158 = sphi 0, %s158
    %s160 = sphi 0, %s158
    %s161 = sphi 0, %s160
    %s175 = sphi 0, %s161
    %s179 = sphi 0, %s179
    %s181 = sphi 0, %s179
    %s182 = sphi 0, %s181
    %s196 = sphi 0, %s182
    %s202 = sphi 0, %s204
    %s205 = sphi 0, %s202
    %s206 = sphi 0, %s205
    %s222 = sphi 0, %s206
  $region4: #{decoder_forward.7} parent=0 // loop_header_branch
    %17 = sbr.rel (%p15) target = $region8
  $region5: #{decoder_forward.7} parent=0 // loop_body
    %s19 = ssub.s32 %s14, 1
    %s20 = ssub.s32 %s14, 2
    %s21 = sadd.s32 %s14, 1
    %s22 = ssub.s32 %s14, %s21
    %p23 = scmp.eq.s32.totalorder %s22, 0
    %s25 = sadd.s32 %s24, 1
    %s26 = scalar_select %p23, %s24, %s25
    %p29 = pneg %p23
    %p30 = scmp.eq.s32.totalorder %s14, 1
    %p31 = por %p29, %p30
    %p32 = scmp.ne.s32.totalorder %s24, %s27
    %p33 = scmp.eq.s32.totalorder %s14, 0
    %p34 = por %p32, %p33
    %p35 = scmp.ne.s32.totalorder %s24, %s27
    %p36 = scmp.eq.s32.totalorder %s19, 1
    %p37 = por %p35, %p36
    %p38 = scmp.ne.s32.totalorder %s27, %s28
    %p39 = scmp.eq.s32.totalorder %s19, 0
    %p40 = por %p38, %p39
    %p41 = scmp.ne.s32.totalorder %s27, %s28
    %p42 = scmp.eq.s32.totalorder %s20, 1
    %p43 = por %p41, %p42
    %p45 = scmp.ne.s32.totalorder %s28, %s44
    %p46 = scmp.eq.s32.totalorder %s20, 0
    %p47 = por %p45, %p46
    %s48 = ssub.s32 %s14, %s21
    %p49 = scmp.eq.s32.totalorder %s48, 0
    %s51 = sadd.s32 %s50, 1
    %s52 = scalar_select %p49, %s50, %s51
    %p55 = pneg %p49
    %p56 = scmp.eq.s32.totalorder %s14, 1
    %p57 = por %p55, %p56
    %p58 = scmp.ne.s32.totalorder %s50, %s53
    %p59 = scmp.eq.s32.totalorder %s14, 0
    %p60 = por %p58, %p59
    %p61 = scmp.ne.s32.totalorder %s50, %s53
    %p62 = scmp.eq.s32.totalorder %s19, 1
    %p63 = por %p61, %p62
    %p64 = scmp.ne.s32.totalorder %s53, %s54
    %p65 = scmp.eq.s32.totalorder %s19, 0
    %p66 = por %p64, %p65
    %p67 = scmp.ne.s32.totalorder %s53, %s54
    %p68 = scmp.eq.s32.totalorder %s20, 1
    %p69 = por %p67, %p68
    %p71 = scmp.ne.s32.totalorder %s54, %s70
    %p72 = scmp.eq.s32.totalorder %s20, 0
    %p73 = por %p71, %p72
    %s75 = sadd.s32 %s74, 1
    %p78 = scmp.eq.s32.totalorder %s14, 1
    %p79 = scmp.ne.s32.totalorder %s74, %s76
    %p80 = scmp.eq.s32.totalorder %s14, 0
    %p81 = por %p79, %p80
    %p82 = scmp.ne.s32.totalorder %s74, %s76
    %p83 = scmp.eq.s32.totalorder %s19, 1
    %p84 = por %p82, %p83
    %p85 = scmp.ne.s32.totalorder %s76, %s77
    %p86 = scmp.eq.s32.totalorder %s19, 0
    %p87 = por %p85, %p86
    %p88 = scmp.ne.s32.totalorder %s76, %s77
    %p89 = scmp.eq.s32.totalorder %s20, 1
    %p90 = por %p88, %p89
    %p92 = scmp.ne.s32.totalorder %s77, %s91
    %p93 = scmp.eq.s32.totalorder %s20, 0
    %p94 = por %p92, %p93
    %s96 = sadd.s32 %s95, 1
    %p99 = scmp.eq.s32.totalorder %s14, 1
    %p100 = scmp.ne.s32.totalorder %s95, %s97
    %p101 = scmp.eq.s32.totalorder %s14, 0
    %p102 = por %p100, %p101
    %p103 = scmp.ne.s32.totalorder %s95, %s97
    %p104 = scmp.eq.s32.totalorder %s19, 1
    %p105 = por %p103, %p104
    %p106 = scmp.ne.s32.totalorder %s97, %s98
    %p107 = scmp.eq.s32.totalorder %s19, 0
    %p108 = por %p106, %p107
    %p109 = scmp.ne.s32.totalorder %s97, %s98
    %p110 = scmp.eq.s32.totalorder %s20, 1
    %p111 = por %p109, %p110
    %p113 = scmp.ne.s32.totalorder %s98, %s112
    %p114 = scmp.eq.s32.totalorder %s20, 0
    %p115 = por %p113, %p114
    %s117 = sadd.s32 %s116, 1
    %p120 = scmp.eq.s32.totalorder %s14, 1
    %p121 = scmp.ne.s32.totalorder %s116, %s118
    %p122 = scmp.eq.s32.totalorder %s14, 0
    %p123 = por %p121, %p122
    %p124 = scmp.ne.s32.totalorder %s116, %s118
    %p125 = scmp.eq.s32.totalorder %s19, 1
    %p126 = por %p124, %p125
    %p127 = scmp.ne.s32.totalorder %s118, %s119
    %p128 = scmp.eq.s32.totalorder %s19, 0
    %p129 = por %p127, %p128
    %p130 = scmp.ne.s32.totalorder %s118, %s119
    %p131 = scmp.eq.s32.totalorder %s20, 1
    %p132 = por %p130, %p131
    %p134 = scmp.ne.s32.totalorder %s119, %s133
    %p135 = scmp.eq.s32.totalorder %s20, 0
    %p136 = por %p134, %p135
    %s138 = sadd.s32 %s137, 1
    %p141 = scmp.eq.s32.totalorder %s14, 1
    %p142 = scmp.ne.s32.totalorder %s137, %s139
    %p143 = scmp.eq.s32.totalorder %s14, 0
    %p144 = por %p142, %p143
    %p145 = scmp.ne.s32.totalorder %s137, %s139
    %p146 = scmp.eq.s32.totalorder %s19, 1
    %p147 = por %p145, %p146
    %p148 = scmp.ne.s32.totalorder %s139, %s140
    %p149 = scmp.eq.s32.totalorder %s19, 0
    %p150 = por %p148, %p149
    %p151 = scmp.ne.s32.totalorder %s139, %s140
    %p152 = scmp.eq.s32.totalorder %s20, 1
    %p153 = por %p151, %p152
    %p155 = scmp.ne.s32.totalorder %s140, %s154
    %p156 = scmp.eq.s32.totalorder %s20, 0
    %p157 = por %p155, %p156
    %s159 = sadd.s32 %s158, 1
    %p162 = scmp.eq.s32.totalorder %s14, 1
    %p163 = scmp.ne.s32.totalorder %s158, %s160
    %p164 = scmp.eq.s32.totalorder %s14, 0
    %p165 = por %p163, %p164
    %p166 = scmp.ne.s32.totalorder %s158, %s160
    %p167 = scmp.eq.s32.totalorder %s19, 1
    %p168 = por %p166, %p167
    %p169 = scmp.ne.s32.totalorder %s160, %s161
    %p170 = scmp.eq.s32.totalorder %s19, 0
    %p171 = por %p169, %p170
    %p172 = scmp.ne.s32.totalorder %s160, %s161
    %p173 = scmp.eq.s32.totalorder %s20, 1
    %p174 = por %p172, %p173
    %p176 = scmp.ne.s32.totalorder %s161, %s175
    %p177 = scmp.eq.s32.totalorder %s20, 0
    %p178 = por %p176, %p177
    %s180 = sadd.s32 %s179, 1
    %p183 = scmp.eq.s32.totalorder %s14, 1
    %p184 = scmp.ne.s32.totalorder %s179, %s181
    %p185 = scmp.eq.s32.totalorder %s14, 0
    %p186 = por %p184, %p185
    %p187 = scmp.ne.s32.totalorder %s179, %s181
    %p188 = scmp.eq.s32.totalorder %s19, 1
    %p189 = por %p187, %p188
    %p190 = scmp.ne.s32.totalorder %s181, %s182
    %p191 = scmp.eq.s32.totalorder %s19, 0
    %p192 = por %p190, %p191
    %p193 = scmp.ne.s32.totalorder %s181, %s182
    %p194 = scmp.eq.s32.totalorder %s20, 1
    %p195 = por %p193, %p194
    %p197 = scmp.ne.s32.totalorder %s182, %s196
    %p198 = scmp.eq.s32.totalorder %s20, 0
    %p199 = por %p197, %p198
    %s200 = ssub.s32 %s14, %s21
    %p201 = scmp.eq.s32.totalorder %s200, 0
    %s203 = sadd.s32 %s202, 1
    %s204 = scalar_select %p201, %s202, %s203
    %p207 = pneg %p201
    %p208 = scmp.eq.s32.totalorder %s14, 1
    %p209 = por %p207, %p208
    %p210 = scmp.ne.s32.totalorder %s202, %s205
    %p211 = scmp.eq.s32.totalorder %s14, 0
    %p212 = por %p210, %p211
    %p213 = scmp.ne.s32.totalorder %s202, %s205
    %p214 = scmp.eq.s32.totalorder %s19, 1
    %p215 = por %p213, %p214
    %p216 = scmp.ne.s32.totalorder %s205, %s206
    %p217 = scmp.eq.s32.totalorder %s19, 0
    %p218 = por %p216, %p217
    %p219 = scmp.ne.s32.totalorder %s205, %s206
    %p220 = scmp.eq.s32.totalorder %s20, 1
    %p221 = por %p219, %p220
    %p223 = scmp.ne.s32.totalorder %s206, %s222
    %p224 = scmp.eq.s32.totalorder %s20, 0
    %p225 = por %p223, %p224
    %p226 = scmp.le.s32.totalorder 1, %s14
    %p227 = scmp.lt.s32.totalorder %s14, 3
    %p228 = pnand %p226, %p227
    %p229 = pneg %p228
    // Predicated region
    $region9: #{decoder_forward.7} parent=5 // pred_check
      _
    $region10: #{decoder_forward.7} parent=5 // pred_check_branch
      %231 = sbr.rel (%p228) target = $region12
    $region11: #{decoder_forward.7} parent=5 // pred_region
      %s232 = ssub.s32 %s14, 1
      // Predicated region
      $region13: #{decoder_forward.7} parent=11 // pred_check
        %p233 = pneg %p87
      $region14: #{decoder_forward.7} parent=11 // pred_check_branch
        %235 = sbr.rel (%p233) target = $region16
      $region15: #{decoder_forward.7} parent=11 // pred_region
        _
      $region16: #{decoder_forward.7} parent=11 // pred_fallthru
        _
      // Predicated region
      $region17: #{decoder_forward.7} parent=11 // pred_check
        %p236 = pneg %p108
      $region18: #{decoder_forward.7} parent=11 // pred_check_branch
        %238 = sbr.rel (%p236) target = $region20
      $region19: #{decoder_forward.7} parent=11 // pred_region
        _
      $region20: #{decoder_forward.7} parent=11 // pred_fallthru
        _
      // Predicated region
      $region21: #{decoder_forward.7} parent=11 // pred_check
        %p239 = pneg %p129
      $region22: #{decoder_forward.7} parent=11 // pred_check_branch
        %241 = sbr.rel (%p239) target = $region24
      $region23: #{decoder_forward.7} parent=11 // pred_region
        _
      $region24: #{decoder_forward.7} parent=11 // pred_fallthru
        _
      // Predicated region
      $region25: #{decoder_forward.7} parent=11 // pred_check
        %p242 = pneg %p150
      $region26: #{decoder_forward.7} parent=11 // pred_check_branch
        %244 = sbr.rel (%p242) target = $region28
      $region27: #{decoder_forward.7} parent=11 // pred_region
        _
      $region28: #{decoder_forward.7} parent=11 // pred_fallthru
        _
      // Predicated region
      $region29: #{decoder_forward.7} parent=11 // pred_check
        %p245 = pneg %p171
      $region30: #{decoder_forward.7} parent=11 // pred_check_branch
        %247 = sbr.rel (%p245) target = $region32
      $region31: #{decoder_forward.7} parent=11 // pred_region
        _
      $region32: #{decoder_forward.7} parent=11 // pred_fallthru
        _
      // Predicated region
      $region33: #{decoder_forward.7} parent=11 // pred_check
        %p248 = pneg %p192
      $region34: #{decoder_forward.7} parent=11 // pred_check_branch
        %250 = sbr.rel (%p248) target = $region36
      $region35: #{decoder_forward.7} parent=11 // pred_region
        _
      $region36: #{decoder_forward.7} parent=11 // pred_fallthru
        _
    $region12: #{decoder_forward.7} parent=5 // pred_fallthru
      _
    %p251 = scmp.lt.s32.totalorder %s14, 2
    // Predicated region
    $region37: #{decoder_forward.7} parent=5 // pred_check
      %p252 = pneg %p251
    $region38: #{decoder_forward.7} parent=5 // pred_check_branch
      %254 = sbr.rel (%p252) target = $region40
    $region39: #{decoder_forward.7} parent=5 // pred_region
      // Predicated region
      $region41: #{decoder_forward.7} parent=39 // pred_check
        %p255 = pneg %p34
      $region42: #{decoder_forward.7} parent=39 // pred_check_branch
        %257 = sbr.rel (%p255) target = $region44
      $region43: #{decoder_forward.7} parent=39 // pred_region
        %p258 = scmp.lt.s32.totalorder %s14, 1
        %s259 = scalar_select %p258, %s14, 1
        %s260 = smul.addr %s259, 8
        %s261 = scalar_lea.vmem %s0, %s260
      $region44: #{decoder_forward.7} parent=39 // pred_fallthru
        _
      // Predicated region
      $region45: #{decoder_forward.7} parent=39 // pred_check
        %p262 = pneg %p60
      $region46: #{decoder_forward.7} parent=39 // pred_check_branch
        %264 = sbr.rel (%p262) target = $region48
      $region47: #{decoder_forward.7} parent=39 // pred_region
        %p265 = scmp.lt.s32.totalorder %s14, 1
        %s266 = scalar_select %p265, %s14, 1
        %s267 = smul.addr %s266, 8
        %s268 = scalar_lea.vmem %s1, %s267
      $region48: #{decoder_forward.7} parent=39 // pred_fallthru
        _
    $region40: #{decoder_forward.7} parent=5 // pred_fallthru
      _
    %p269 = scmp.le.s32.totalorder 1, %s14
    %p270 = scmp.lt.s32.totalorder %s14, 3
    %p271 = pnand %p269, %p270
    %p272 = pneg %p271
    // Predicated region
    $region49: #{decoder_forward.7} parent=5 // pred_check
      _
    $region50: #{decoder_forward.7} parent=5 // pred_check_branch
      %274 = sbr.rel (%p271) target = $region52
    $region51: #{decoder_forward.7} parent=5 // pred_region
      %s275 = ssub.s32 %s14, 1
      %p276 = scmp.lt.s32.totalorder %s19, 1
      %s277 = scalar_select %p276, %s19, 1
      %s278 = smul.addr %s277, 8
      %s279 = scalar_lea.vmem %s0, %s278
      %p280 = pneg %p40
      %p281 = pneg %p37
      %p282 = scmp.lt.s32.totalorder %s19, 1
      %s283 = scalar_select %p282, %s19, 1
      %s284 = smul.addr %s283, 8
      %s285 = scalar_lea.vmem %s1, %s284
      %p286 = pneg %p66
      %p287 = pneg %p63
      %p288 = pneg %p87
      %p289 = pneg %p84
      %p290 = pneg %p108
      %p291 = pneg %p105
      %p292 = pneg %p129
      %p293 = pneg %p126
      %p294 = pneg %p150
      %p295 = pneg %p147
      %p296 = pneg %p171
      %p297 = pneg %p168
      %p298 = pneg %p192
      %p299 = pneg %p189
      %p300 = pneg %p218
      %p301 = pneg %p215
      %p302 = scmp.lt.s32.totalorder %s19, 1
      %s303 = scalar_select %p302, %s19, 1
      %s304 = smul.addr %s303, 8
      %s305 = scalar_lea.vmem %s8, %s304
      %p306 = scmp.lt.s32.totalorder %s19, 1
      %s307 = scalar_select %p306, %s19, 1
      %s308 = smul.addr %s307, 8
      %s309 = scalar_lea.vmem %s0, %s308
      %p310 = scmp.lt.s32.totalorder %s19, 1
      %s311 = scalar_select %p310, %s19, 1
      %s312 = smul.addr %s311, 8
      %s313 = scalar_lea.vmem %s1, %s312
      %p314 = scmp.lt.s32.totalorder %s19, 1
      %s315 = scalar_select %p314, %s19, 1
      %s316 = smul.addr %s315, 8
      %s317 = scalar_lea.vmem %s8, %s316
      %v319 = vld [vmem:[%s309] sm:$0xff]
      %v320 = vld [vmem:[%s2] sm:$0x1]
      %v321 = vld [vmem:[%s3] sm:$0x1]
      %vm322 = vcmask 261120
      %v323 = vsel %vm322, %v319, 0.0
      %324 = vadd.xlane.f32.xlu0 %v323
      %v325 = vpop.xlane.xlu0 %324
      %v326 = vrcp.pop 32.0
      %v327 = vmul.f32 %v325, %v326
      %v328 = vsub.f32 %v319, %v327
      %v329 = vmul.f32 %v328, %v328
      %v330 = vsel %vm322, %v329, 0.0
      %331 = vadd.xlane.f32.xlu0 %v330
      %v332 = vpop.xlane.xlu0 %331
      %v333 = vmul.f32 %v332, 0.032258064
      %v334 = vrsqrt.pop %v333
      %v335 = vmul.f32 %v333, %v334
      %vm336 = vcmp.eq.f32.partialorder %v333, inf
      %v337 = vsel %vm336, %v333, %v335
      %vm338 = vcmp.eq.f32.partialorder %v333, 0.0
      %v339 = vand.u32 %v333, 2147483648
      %v340 = vsel %vm338, %v339, %v337
      %v341 = vadd.f32 %v340, 1e-06
      %v342 = vrcp.pop %v341
      %v343 = vmul.f32 1.0, %v342
      %v344 = vmul.f32 %v328, %v343
      %v346 = vlaneseq
      %v347 = vshrl.u32 %v346, 7
      %v348 = vsub.s32 0, %v347
      %v349 = vrot.slane %v320, %v348
      %v351 = vmul.f32 %v344, %v349
      %v353 = vlaneseq
      %v354 = vshrl.u32 %v353, 7
      %v355 = vsub.s32 0, %v354
      %v356 = vrot.slane %v321, %v355
      %v358 = vadd.f32 %v351, %v356
      %v359 = vld [vmem:[%s4] sm:$0xf]
      %v360 = vld [vmem:[%s4 + $0x4] sm:$0xf]
      %v361 = vld [vmem:[%s4 + $0x8] sm:$0xf]
      %v362 = vld [vmem:[%s4 + $0xc] sm:$0xf]
      %v363 = vpack.c.bf16 %v358, %v358
      %v364 = vld [vmem:[%s5] sm:$0x1]
      %v366 = vlaneseq
      %v367 = vshrl.u32 %v366, 7
      %v368 = vsub.s32 0, %v367
      %v369 = vrot.slane %v364, %v368
      %v375 = vunpack.c.l.b16 %v359
      %v376 = vunpack.c.l.b16 %v360
      %v377 = vunpack.c.l.b16 %v361
      %v378 = vunpack.c.l.b16 %v362
      %v379 = vpack.c.b16 %v376, %v375
      %v380 = vpack.c.b16 %v378, %v377
      %v384 = vsel %vm322, %v363, 0
      %386 = vmatprep.subr.bf16.mxu0 0
      %387 = vmatpush1.bf16.msra.mxu0 %v379
      %388 = vmatprep.subr.bf16.mxu0 0
      %389 = vmatpush1.bf16.msra.mxu0 %v380
      %390 = vmatprep.subr.bf16.mxu0 0
      %391 = vmatpush1.bf16.msra.mxu0 0
      %392 = vmatprep.subr.bf16.mxu0 0
      %393 = vmatpush1.bf16.msra.mxu0 0
      %394 = vmatprep.subr.bf16.mxu0 0
      %395 = vmatpush1.bf16.msra.mxu0 0
      %396 = vmatprep.subr.bf16.mxu0 0
      %397 = vmatpush1.bf16.msra.mxu0 0
      %398 = vmatprep.subr.bf16.mxu0 0
      %399 = vmatpush1.bf16.msra.mxu0 0
      %400 = vmatprep.subr.bf16.mxu0 0
      %401 = vmatpush1.bf16.msra.mxu0 0
      %402 = vmatprep.subr.bf16.mxu0 0
      %403 = vmatpush1.bf16.msra.mxu0 0
      %404 = vmatprep.subr.bf16.mxu0 0
      %405 = vmatpush1.bf16.msra.mxu0 0
      %406 = vmatprep.subr.bf16.mxu0 0
      %407 = vmatpush1.bf16.msra.mxu0 0
      %408 = vmatprep.subr.bf16.mxu0 0
      %409 = vmatpush1.bf16.msra.mxu0 0
      %410 = vmatprep.subr.bf16.mxu0 0
      %411 = vmatpush1.bf16.msra.mxu0 0
      %412 = vmatprep.subr.bf16.mxu0 0
      %413 = vmatpush1.bf16.msra.mxu0 0
      %414 = vmatprep.subr.bf16.mxu0 0
      %415 = vmatpush1.bf16.msra.mxu0 0
      %416 = vmatprep.subr.bf16.mxu0 0
      %417 = vmatpush1.bf16.msra.mxu0 0
      %418 = vmatprep.mubr.bf16.mxu0 0
      %419 = vmatmul.mubr.bf16.gmra.mrb[0].mxu0 %v384
      %v420 = vpop.f32.mrb[0].mxu0
      %v421 = vadd.f32 %v369, %v420
      %v422 = vpop.f32.mrb[0].mxu0
      %v423 = vpop.f32.mrb[0].mxu0
      %v424 = vpop.f32.mrb[0].mxu0
      %425 = vdwg.mxu0
      %v426 = vmul.f32 %v421, 0.35355338
      %v427 = vld [vmem:[%s313] sm:$0xff]
      %v428 = vpack.c.bf16 %v426, %v426
      %v429 = vpack.c.bf16 %v421, %v421
      %431 = vrot.lane.b32.xlu0 %v429, 96
      %v432 = vpop.permute.xlu0 %431
      %vm433 = vcmask 64512
      %v435 = vsel %vm433, %v428, 0
      %v438 = vsel %vm433, %v432, 0
      %440 = vmatprep.subr.bf16.mxu0 0
      %441 = vmatpush1.bf16.xpose.msra.mxu0 %v438
      %442 = vmatprep.subr.bf16.mxu0 0
      %443 = vmatpush1.bf16.xpose.msra.mxu0 0
      %444 = vmatprep.subr.bf16.mxu0 0
      %445 = vmatpush1.bf16.xpose.msra.mxu0 0
      %446 = vmatprep.subr.bf16.mxu0 0
      %447 = vmatpush1.bf16.xpose.msra.mxu0 0
      %448 = vmatprep.subr.bf16.mxu0 0
      %449 = vmatpush1.bf16.xpose.msra.mxu0 0
      %450 = vmatprep.subr.bf16.mxu0 0
      %451 = vmatpush1.bf16.xpose.msra.mxu0 0
      %452 = vmatprep.subr.bf16.mxu0 0
      %453 = vmatpush1.bf16.xpose.msra.mxu0 0
      %454 = vmatprep.subr.bf16.mxu0 0
      %455 = vmatpush1.bf16.xpose.msra.mxu0 0
      %456 = vmatprep.subr.bf16.mxu0 0
      %457 = vmatpush1.bf16.xpose.msra.mxu0 0
      %458 = vmatprep.subr.bf16.mxu0 0
      %459 = vmatpush1.bf16.xpose.msra.mxu0 0
      %460 = vmatprep.subr.bf16.mxu0 0
      %461 = vmatpush1.bf16.xpose.msra.mxu0 0
      %462 = vmatprep.subr.bf16.mxu0 0
      %463 = vmatpush1.bf16.xpose.msra.mxu0 0
      %464 = vmatprep.subr.bf16.mxu0 0
      %465 = vmatpush1.bf16.xpose.msra.mxu0 0
      %466 = vmatprep.subr.bf16.mxu0 0
      %467 = vmatpush1.bf16.xpose.msra.mxu0 0
      %468 = vmatprep.subr.bf16.mxu0 0
      %469 = vmatpush1.bf16.xpose.msra.mxu0 0
      %470 = vmatprep.subr.bf16.mxu0 0
      %471 = vmatpush1.bf16.xpose.msra.mxu0 0
      %472 = vmatprep.mubr.bf16.mxu0 0
      %473 = vmatmul.mubr.bf16.gmra.mrb[0].mxu0 %v435
      %v474 = vpop.f32.mrb[0].mxu0
      %v475 = vadd.f32 0.0, %v474
      %v476 = vpop.f32.mrb[0].mxu0
      %v477 = vpop.f32.mrb[0].mxu0
      %v478 = vpop.f32.mrb[0].mxu0
      %479 = vdwg.mxu0
      %vm480 = vcmp.eq.f32.partialorder %v427, 0.0
      %v481 = vsel %vm480, -1e+09, %v475
      %v482 = vsel %vm433, %v481, -inf
      %483 = vmax.xlane.f32.xlu0 %v482
      %v484 = vpop.xlane.xlu0 %483
      %v485 = vsub.f32 %v481, %v484
      %v486 = vmul.f32 %v485, 1.442695
      %v487 = vpow.pop %v486
      %v488 = vsel %vm433, %v487, 0.0
      %489 = vadd.xlane.f32.xlu0 %v488
      %v490 = vpop.xlane.xlu0 %489
      %v491 = vrcp.pop %v490
      %v492 = vmul.f32 1.0, %v491
      %v493 = vmul.f32 %v487, %v492
      %v494 = vpack.c.bf16 %v493, %v493
      %495 = vrot.lane.b32.xlu0 %v429, 64
      %v496 = vpop.permute.xlu0 %495
      %v498 = vsel %vm433, %v494, 0
      %vm500 = vcmask 1043456
      %v502 = vsel %vm500, %v496, 0
      %504 = vmatprep.subr.bf16.mxu0 0
      %505 = vmatpush1.bf16.msra.mxu0 %v502
      %506 = vmatprep.subr.bf16.mxu0 0
      %507 = vmatpush1.bf16.msra.mxu0 0
      %508 = vmatprep.subr.bf16.mxu0 0
      %509 = vmatpush1.bf16.msra.mxu0 0
      %510 = vmatprep.subr.bf16.mxu0 0
      %511 = vmatpush1.bf16.msra.mxu0 0
      %512 = vmatprep.subr.bf16.mxu0 0
      %513 = vmatpush1.bf16.msra.mxu0 0
      %514 = vmatprep.subr.bf16.mxu0 0
      %515 = vmatpush1.bf16.msra.mxu0 0
      %516 = vmatprep.subr.bf16.mxu0 0
      %517 = vmatpush1.bf16.msra.mxu0 0
      %518 = vmatprep.subr.bf16.mxu0 0
      %519 = vmatpush1.bf16.msra.mxu0 0
      %520 = vmatprep.subr.bf16.mxu0 0
      %521 = vmatpush1.bf16.msra.mxu0 0
      %522 = vmatprep.subr.bf16.mxu0 0
      %523 = vmatpush1.bf16.msra.mxu0 0
      %524 = vmatprep.subr.bf16.mxu0 0
      %525 = vmatpush1.bf16.msra.mxu0 0
      %526 = vmatprep.subr.bf16.mxu0 0
      %527 = vmatpush1.bf16.msra.mxu0 0
      %528 = vmatprep.subr.bf16.mxu0 0
      %529 = vmatpush1.bf16.msra.mxu0 0
      %530 = vmatprep.subr.bf16.mxu0 0
      %531 = vmatpush1.bf16.msra.mxu0 0
      %532 = vmatprep.subr.bf16.mxu0 0
      %533 = vmatpush1.bf16.msra.mxu0 0
      %534 = vmatprep.subr.bf16.mxu0 0
      %535 = vmatpush1.bf16.msra.mxu0 0
      %536 = vmatprep.mubr.bf16.mxu0 0
      %537 = vmatmul.mubr.bf16.gmra.mrb[0].mxu0 %v498
      %v538 = vpop.f32.mrb[0].mxu0
      %v539 = vadd.f32 0.0, %v538
      %v540 = vpop.f32.mrb[0].mxu0
      %v541 = vpop.f32.mrb[0].mxu0
      %v542 = vpop.f32.mrb[0].mxu0
      %543 = vdwg.mxu0
      %545 = vrot.lane.b32.xlu0 %v428, 120
      %v546 = vpop.permute.xlu0 %545
      %547 = vrot.lane.b32.xlu0 %v429, 88
      %v548 = vpop.permute.xlu0 %547
      %v550 = vsel %vm433, %v546, 0
      %v553 = vsel %vm433, %v548, 0
      %555 = vmatprep.subr.bf16.mxu0 0
      %556 = vmatpush1.bf16.xpose.msra.mxu0 %v553
      %557 = vmatprep.subr.bf16.mxu0 0
      %558 = vmatpush1.bf16.xpose.msra.mxu0 0
      %559 = vmatprep.subr.bf16.mxu0 0
      %560 = vmatpush1.bf16.xpose.msra.mxu0 0
      %561 = vmatprep.subr.bf16.mxu0 0
      %562 = vmatpush1.bf16.xpose.msra.mxu0 0
      %563 = vmatprep.subr.bf16.mxu0 0
      %564 = vmatpush1.bf16.xpose.msra.mxu0 0
      %565 = vmatprep.subr.bf16.mxu0 0
      %566 = vmatpush1.bf16.xpose.msra.mxu0 0
      %567 = vmatprep.subr.bf16.mxu0 0
      %568 = vmatpush1.bf16.xpose.msra.mxu0 0
      %569 = vmatprep.subr.bf16.mxu0 0
      %570 = vmatpush1.bf16.xpose.msra.mxu0 0
      %571 = vmatprep.subr.bf16.mxu0 0
      %572 = vmatpush1.bf16.xpose.msra.mxu0 0
      %573 = vmatprep.subr.bf16.mxu0 0
      %574 = vmatpush1.bf16.xpose.msra.mxu0 0
      %575 = vmatprep.subr.bf16.mxu0 0
      %576 = vmatpush1.bf16.xpose.msra.mxu0 0
      %577 = vmatprep.subr.bf16.mxu0 0
      %578 = vmatpush1.bf16.xpose.msra.mxu0 0
      %579 = vmatprep.subr.bf16.mxu0 0
      %580 = vmatpush1.bf16.xpose.msra.mxu0 0
      %581 = vmatprep.subr.bf16.mxu0 0
      %582 = vmatpush1.bf16.xpose.msra.mxu0 0
      %583 = vmatprep.subr.bf16.mxu0 0
      %584 = vmatpush1.bf16.xpose.msra.mxu0 0
      %585 = vmatprep.subr.bf16.mxu0 0
      %586 = vmatpush1.bf16.xpose.msra.mxu0 0
      %587 = vmatprep.mubr.bf16.mxu0 0
      %588 = vmatmul.mubr.bf16.gmra.mrb[0].mxu0 %v550
      %v589 = vpop.f32.mrb[0].mxu0
      %v590 = vadd.f32 0.0, %v589
      %v591 = vpop.f32.mrb[0].mxu0
      %v592 = vpop.f32.mrb[0].mxu0
      %v593 = vpop.f32.mrb[0].mxu0
      %594 = vdwg.mxu0
      %v595 = vsel %vm480, -1e+09, %v590
      %v596 = vsel %vm433, %v595, -inf
      %597 = vmax.xlane.f32.xlu0 %v596
      %v598 = vpop.xlane.xlu0 %597
      %v599 = vsub.f32 %v595, %v598
      %v600 = vmul.f32 %v599, 1.442695
      %v601 = vpow.pop %v600
      %v602 = vsel %vm433, %v601, 0.0
      %603 = vadd.xlane.f32.xlu0 %v602
      %v604 = vpop.xlane.xlu0 %603
      %v605 = vrcp.pop %v604
      %v606 = vmul.f32 1.0, %v605
      %v607 = vmul.f32 %v601, %v606
      %v608 = vpack.c.bf16 %v607, %v607
      %609 = vrot.lane.b32.xlu0 %v429, 56
      %v610 = vpop.permute.xlu0 %609
      %v612 = vsel %vm433, %v608, 0
      %v615 = vsel %vm500, %v610, 0
      %617 = vmatprep.subr.bf16.mxu0 0
      %618 = vmatpush1.bf16.msra.mxu0 %v615
      %619 = vmatprep.subr.bf16.mxu0 0
      %620 = vmatpush1.bf16.msra.mxu0 0
      %621 = vmatprep.subr.bf16.mxu0 0
      %622 = vmatpush1.bf16.msra.mxu0 0
      %623 = vmatprep.subr.bf16.mxu0 0
      %624 = vmatpush1.bf16.msra.mxu0 0
      %625 = vmatprep.subr.bf16.mxu0 0
      %626 = vmatpush1.bf16.msra.mxu0 0
      %627 = vmatprep.subr.bf16.mxu0 0
      %628 = vmatpush1.bf16.msra.mxu0 0
      %629 = vmatprep.subr.bf16.mxu0 0
      %630 = vmatpush1.bf16.msra.mxu0 0
      %631 = vmatprep.subr.bf16.mxu0 0
      %632 = vmatpush1.bf16.msra.mxu0 0
      %633 = vmatprep.subr.bf16.mxu0 0
      %634 = vmatpush1.bf16.msra.mxu0 0
      %635 = vmatprep.subr.bf16.mxu0 0
      %636 = vmatpush1.bf16.msra.mxu0 0
      %637 = vmatprep.subr.bf16.mxu0 0
      %638 = vmatpush1.bf16.msra.mxu0 0
      %639 = vmatprep.subr.bf16.mxu0 0
      %640 = vmatpush1.bf16.msra.mxu0 0
      %641 = vmatprep.subr.bf16.mxu0 0
      %642 = vmatpush1.bf16.msra.mxu0 0
      %643 = vmatprep.subr.bf16.mxu0 0
      %644 = vmatpush1.bf16.msra.mxu0 0
      %645 = vmatprep.subr.bf16.mxu0 0
      %646 = vmatpush1.bf16.msra.mxu0 0
      %647 = vmatprep.subr.bf16.mxu0 0
      %648 = vmatpush1.bf16.msra.mxu0 0
      %649 = vmatprep.mubr.bf16.mxu0 0
      %650 = vmatmul.mubr.bf16.gmra.mrb[0].mxu0 %v612
      %v651 = vpop.f32.mrb[0].mxu0
      %v652 = vadd.f32 0.0, %v651
      %v653 = vpop.f32.mrb[0].mxu0
      %v654 = vpop.f32.mrb[0].mxu0
      %v655 = vpop.f32.mrb[0].mxu0
      %656 = vdwg.mxu0
      %657 = vrot.lane.b32.xlu0 %v428, 112
      %v658 = vpop.permute.xlu0 %657
      %659 = vrot.lane.b32.xlu0 %v429, 80
      %v660 = vpop.permute.xlu0 %659
      %v662 = vsel %vm433, %v658, 0
      %v665 = vsel %vm433, %v660, 0
      %667 = vmatprep.subr.bf16.mxu0 0
      %668 = vmatpush1.bf16.xpose.msra.mxu0 %v665
      %669 = vmatprep.subr.bf16.mxu0 0
      %670 = vmatpush1.bf16.xpose.msra.mxu0 0
      %671 = vmatprep.subr.bf16.mxu0 0
      %672 = vmatpush1.bf16.xpose.msra.mxu0 0
      %673 = vmatprep.subr.bf16.mxu0 0
      %674 = vmatpush1.bf16.xpose.msra.mxu0 0
      %675 = vmatprep.subr.bf16.mxu0 0
      %676 = vmatpush1.bf16.xpose.msra.mxu0 0
      %677 = vmatprep.subr.bf16.mxu0 0
      %678 = vmatpush1.bf16.xpose.msra.mxu0 0
      %679 = vmatprep.subr.bf16.mxu0 0
      %680 = vmatpush1.bf16.xpose.msra.mxu0 0
      %681 = vmatprep.subr.bf16.mxu0 0
      %682 = vmatpush1.bf16.xpose.msra.mxu0 0
      %683 = vmatprep.subr.bf16.mxu0 0
      %684 = vmatpush1.bf16.xpose.msra.mxu0 0
      %685 = vmatprep.subr.bf16.mxu0 0
      %686 = vmatpush1.bf16.xpose.msra.mxu0 0
      %687 = vmatprep.subr.bf16.mxu0 0
      %688 = vmatpush1.bf16.xpose.msra.mxu0 0
      %689 = vmatprep.subr.bf16.mxu0 0
      %690 = vmatpush1.bf16.xpose.msra.mxu0 0
      %691 = vmatprep.subr.bf16.mxu0 0
      %692 = vmatpush1.bf16.xpose.msra.mxu0 0
      %693 = vmatprep.subr.bf16.mxu0 0
      %694 = vmatpush1.bf16.xpose.msra.mxu0 0
      %695 = vmatprep.subr.bf16.mxu0 0
      %696 = vmatpush1.bf16.xpose.msra.mxu0 0
      %697 = vmatprep.subr.bf16.mxu0 0
      %698 = vmatpush1.bf16.xpose.msra.mxu0 0
      %699 = vmatprep.mubr.bf16.mxu0 0
      %700 = vmatmul.mubr.bf16.gmra.mrb[0].mxu0 %v662
      %v701 = vpop.f32.mrb[0].mxu0
      %v702 = vadd.f32 0.0, %v701
      %v703 = vpop.f32.mrb[0].mxu0
      %v704 = vpop.f32.mrb[0].mxu0
      %v705 = vpop.f32.mrb[0].mxu0
      %706 = vdwg.mxu0
      %v707 = vsel %vm480, -1e+09, %v702
      %v708 = vsel %vm433, %v707, -inf
      %709 = vmax.xlane.f32.xlu0 %v708
      %v710 = vpop.xlane.xlu0 %709
      %v711 = vsub.f32 %v707, %v710
      %v712 = vmul.f32 %v711, 1.442695
      %v713 = vpow.pop %v712
      %v714 = vsel %vm433, %v713, 0.0
      %715 = vadd.xlane.f32.xlu0 %v714
      %v716 = vpop.xlane.xlu0 %715
      %v717 = vrcp.pop %v716
      %v718 = vmul.f32 1.0, %v717
      %v719 = vmul.f32 %v713, %v718
      %v720 = vpack.c.bf16 %v719, %v719
      %721 = vrot.lane.b32.xlu0 %v429, 48
      %v722 = vpop.permute.xlu0 %721
      %v724 = vsel %vm433, %v720, 0
      %v727 = vsel %vm500, %v722, 0
      %729 = vmatprep.subr.bf16.mxu0 0
      %730 = vmatpush1.bf16.msra.mxu0 %v727
      %731 = vmatprep.subr.bf16.mxu0 0
      %732 = vmatpush1.bf16.msra.mxu0 0
      %733 = vmatprep.subr.bf16.mxu0 0
      %734 = vmatpush1.bf16.msra.mxu0 0
      %735 = vmatprep.subr.bf16.mxu0 0
      %736 = vmatpush1.bf16.msra.mxu0 0
      %737 = vmatprep.subr.bf16.mxu0 0
      %738 = vmatpush1.bf16.msra.mxu0 0
      %739 = vmatprep.subr.bf16.mxu0 0
      %740 = vmatpush1.bf16.msra.mxu0 0
      %741 = vmatprep.subr.bf16.mxu0 0
      %742 = vmatpush1.bf16.msra.mxu0 0
      %743 = vmatprep.subr.bf16.mxu0 0
      %744 = vmatpush1.bf16.msra.mxu0 0
      %745 = vmatprep.subr.bf16.mxu0 0
      %746 = vmatpush1.bf16.msra.mxu0 0
      %747 = vmatprep.subr.bf16.mxu0 0
      %748 = vmatpush1.bf16.msra.mxu0 0
      %749 = vmatprep.subr.bf16.mxu0 0
      %750 = vmatpush1.bf16.msra.mxu0 0
      %751 = vmatprep.subr.bf16.mxu0 0
      %752 = vmatpush1.bf16.msra.mxu0 0
      %753 = vmatprep.subr.bf16.mxu0 0
      %754 = vmatpush1.bf16.msra.mxu0 0
      %755 = vmatprep.subr.bf16.mxu0 0
      %756 = vmatpush1.bf16.msra.mxu0 0
      %757 = vmatprep.subr.bf16.mxu0 0
      %758 = vmatpush1.bf16.msra.mxu0 0
      %759 = vmatprep.subr.bf16.mxu0 0
      %760 = vmatpush1.bf16.msra.mxu0 0
      %761 = vmatprep.mubr.bf16.mxu0 0
      %762 = vmatmul.mubr.bf16.gmra.mrb[0].mxu0 %v724
      %v763 = vpop.f32.mrb[0].mxu0
      %v764 = vadd.f32 0.0, %v763
      %v765 = vpop.f32.mrb[0].mxu0
      %v766 = vpop.f32.mrb[0].mxu0
      %v767 = vpop.f32.mrb[0].mxu0
      %768 = vdwg.mxu0
      %769 = vrot.lane.b32.xlu0 %v428, 104
      %v770 = vpop.permute.xlu0 %769
      %771 = vrot.lane.b32.xlu0 %v429, 72
      %v772 = vpop.permute.xlu0 %771
      %v774 = vsel %vm433, %v770, 0
      %v777 = vsel %vm433, %v772, 0
      %779 = vmatprep.subr.bf16.mxu0 0
      %780 = vmatpush1.bf16.xpose.msra.mxu0 %v777
      %781 = vmatprep.subr.bf16.mxu0 0
      %782 = vmatpush1.bf16.xpose.msra.mxu0 0
      %783 = vmatprep.subr.bf16.mxu0 0
      %784 = vmatpush1.bf16.xpose.msra.mxu0 0
      %785 = vmatprep.subr.bf16.mxu0 0
      %786 = vmatpush1.bf16.xpose.msra.mxu0 0
      %787 = vmatprep.subr.bf16.mxu0 0
      %788 = vmatpush1.bf16.xpose.msra.mxu0 0
      %789 = vmatprep.subr.bf16.mxu0 0
      %790 = vmatpush1.bf16.xpose.msra.mxu0 0
      %791 = vmatprep.subr.bf16.mxu0 0
      %792 = vmatpush1.bf16.xpose.msra.mxu0 0
      %793 = vmatprep.subr.bf16.mxu0 0
      %794 = vmatpush1.bf16.xpose.msra.mxu0 0
      %795 = vmatprep.subr.bf16.mxu0 0
      %796 = vmatpush1.bf16.xpose.msra.mxu0 0
      %797 = vmatprep.subr.bf16.mxu0 0
      %798 = vmatpush1.bf16.xpose.msra.mxu0 0
      %799 = vmatprep.subr.bf16.mxu0 0
      %800 = vmatpush1.bf16.xpose.msra.mxu0 0
      %801 = vmatprep.subr.bf16.mxu0 0
      %802 = vmatpush1.bf16.xpose.msra.mxu0 0
      %803 = vmatprep.subr.bf16.mxu0 0
      %804 = vmatpush1.bf16.xpose.msra.mxu0 0
      %805 = vmatprep.subr.bf16.mxu0 0
      %806 = vmatpush1.bf16.xpose.msra.mxu0 0
      %807 = vmatprep.subr.bf16.mxu0 0
      %808 = vmatpush1.bf16.xpose.msra.mxu0 0
      %809 = vmatprep.subr.bf16.mxu0 0
      %810 = vmatpush1.bf16.xpose.msra.mxu0 0
      %811 = vmatprep.mubr.bf16.mxu0 0
      %812 = vmatmul.mubr.bf16.gmra.mrb[0].mxu0 %v774
      %v813 = vpop.f32.mrb[0].mxu0
      %v814 = vadd.f32 0.0, %v813
      %v815 = vpop.f32.mrb[0].mxu0
      %v816 = vpop.f32.mrb[0].mxu0
      %v817 = vpop.f32.mrb[0].mxu0
      %818 = vdwg.mxu0
      %v819 = vsel %vm480, -1e+09, %v814
      %v820 = vsel %vm433, %v819, -inf
      %821 = vmax.xlane.f32.xlu0 %v820
      %v822 = vpop.xlane.xlu0 %821
      %v823 = vsub.f32 %v819, %v822
      %v824 = vmul.f32 %v823, 1.442695
      %v825 = vpow.pop %v824
      %v826 = vsel %vm433, %v825, 0.0
      %827 = vadd.xlane.f32.xlu0 %v826
      %v828 = vpop.xlane.xlu0 %827
      %v829 = vrcp.pop %v828
      %v830 = vmul.f32 1.0, %v829
      %v831 = vmul.f32 %v825, %v830
      %v832 = vpack.c.bf16 %v831, %v831
      %833 = vrot.lane.b32.xlu0 %v429, 40
      %v834 = vpop.permute.xlu0 %833
      %v836 = vsel %vm433, %v832, 0
      %v839 = vsel %vm500, %v834, 0
      %841 = vmatprep.subr.bf16.mxu0 0
      %842 = vmatpush1.bf16.msra.mxu0 %v839
      %843 = vmatprep.subr.bf16.mxu0 0
      %844 = vmatpush1.bf16.msra.mxu0 0
      %845 = vmatprep.subr.bf16.mxu0 0
      %846 = vmatpush1.bf16.msra.mxu0 0
      %847 = vmatprep.subr.bf16.mxu0 0
      %848 = vmatpush1.bf16.msra.mxu0 0
      %849 = vmatprep.subr.bf16.mxu0 0
      %850 = vmatpush1.bf16.msra.mxu0 0
      %851 = vmatprep.subr.bf16.mxu0 0
      %852 = vmatpush1.bf16.msra.mxu0 0
      %853 = vmatprep.subr.bf16.mxu0 0
      %854 = vmatpush1.bf16.msra.mxu0 0
      %855 = vmatprep.subr.bf16.mxu0 0
      %856 = vmatpush1.bf16.msra.mxu0 0
      %857 = vmatprep.subr.bf16.mxu0 0
      %858 = vmatpush1.bf16.msra.mxu0 0
      %859 = vmatprep.subr.bf16.mxu0 0
      %860 = vmatpush1.bf16.msra.mxu0 0
      %861 = vmatprep.subr.bf16.mxu0 0
      %862 = vmatpush1.bf16.msra.mxu0 0
      %863 = vmatprep.subr.bf16.mxu0 0
      %864 = vmatpush1.bf16.msra.mxu0 0
      %865 = vmatprep.subr.bf16.mxu0 0
      %866 = vmatpush1.bf16.msra.mxu0 0
      %867 = vmatprep.subr.bf16.mxu0 0
      %868 = vmatpush1.bf16.msra.mxu0 0
      %869 = vmatprep.subr.bf16.mxu0 0
      %870 = vmatpush1.bf16.msra.mxu0 0
      %871 = vmatprep.subr.bf16.mxu0 0
      %872 = vmatpush1.bf16.msra.mxu0 0
      %873 = vmatprep.mubr.bf16.mxu0 0
      %874 = vmatmul.mubr.bf16.gmra.mrb[0].mxu0 %v836
      %v875 = vpop.f32.mrb[0].mxu0
      %v876 = vadd.f32 0.0, %v875
      %v877 = vpop.f32.mrb[0].mxu0
      %v878 = vpop.f32.mrb[0].mxu0
      %v879 = vpop.f32.mrb[0].mxu0
      %880 = vdwg.mxu0
      %882 = vrot.lane.b32.xlu0 %v652, 8
      %v883 = vpop.permute.xlu0 %882
      %886 = vrot.lane.b32.xlu0 %v764, 16
      %v887 = vpop.permute.xlu0 %886
      %890 = vrot.lane.b32.xlu0 %v876, 24
      %v891 = vpop.permute.xlu0 %890
      %v893 = vsel %vm433, %v539, %v883
      %vm894 = vcmask 130048
      %v895 = vsel %vm894, %v893, %v887
      %vm896 = vcmask 195584
      %v897 = vsel %vm896, %v895, %v891
      %v898 = vld [vmem:[%s6] sm:$0xf]
      %v899 = vld [vmem:[%s6 + $0x4] sm:$0xf]
      %v900 = vld [vmem:[%s6 + $0x8] sm:$0xf]
      %v901 = vld [vmem:[%s6 + $0xc] sm:$0xf]
      %v902 = vpack.c.bf16 %v897, %v897
      %v903 = vld [vmem:[%s7] sm:$0x1]
      %v905 = vlaneseq
      %v906 = vshrl.u32 %v905, 7
      %v907 = vsub.s32 0, %v906
      %v908 = vrot.slane %v903, %v907
      %v914 = vunpack.c.l.b16 %v898
      %v915 = vunpack.c.l.b16 %v899
      %v916 = vunpack.c.l.b16 %v900
      %v917 = vunpack.c.l.b16 %v901
      %v918 = vpack.c.b16 %v915, %v914
      %v919 = vpack.c.b16 %v917, %v916
      %v923 = vsel %vm322, %v902, 0
      %925 = vmatprep.subr.bf16.mxu0 0
      %926 = vmatpush1.bf16.msra.mxu0 %v918
      %927 = vmatprep.subr.bf16.mxu0 0
      %928 = vmatpush1.bf16.msra.mxu0 %v919
      %929 = vmatprep.subr.bf16.mxu0 0
      %930 = vmatpush1.bf16.msra.mxu0 0
      %931 = vmatprep.subr.bf16.mxu0 0
      %932 = vmatpush1.bf16.msra.mxu0 0
      %933 = vmatprep.subr.bf16.mxu0 0
      %934 = vmatpush1.bf16.msra.mxu0 0
      %935 = vmatprep.subr.bf16.mxu0 0
      %936 = vmatpush1.bf16.msra.mxu0 0
      %937 = vmatprep.subr.bf16.mxu0 0
      %938 = vmatpush1.bf16.msra.mxu0 0
      %939 = vmatprep.subr.bf16.mxu0 0
      %940 = vmatpush1.bf16.msra.mxu0 0
      %941 = vmatprep.subr.bf16.mxu0 0
      %942 = vmatpush1.bf16.msra.mxu0 0
      %943 = vmatprep.subr.bf16.mxu0 0
      %944 = vmatpush1.bf16.msra.mxu0 0
      %945 = vmatprep.subr.bf16.mxu0 0
      %946 = vmatpush1.bf16.msra.mxu0 0
      %947 = vmatprep.subr.bf16.mxu0 0
      %948 = vmatpush1.bf16.msra.mxu0 0
      %949 = vmatprep.subr.bf16.mxu0 0
      %950 = vmatpush1.bf16.msra.mxu0 0
      %951 = vmatprep.subr.bf16.mxu0 0
      %952 = vmatpush1.bf16.msra.mxu0 0
      %953 = vmatprep.subr.bf16.mxu0 0
      %954 = vmatpush1.bf16.msra.mxu0 0
      %955 = vmatprep.subr.bf16.mxu0 0
      %956 = vmatpush1.bf16.msra.mxu0 0
      %957 = vmatprep.mubr.bf16.mxu0 0
      %958 = vmatmul.mubr.bf16.gmra.mrb[0].mxu0 %v923
      %v959 = vpop.f32.mrb[0].mxu0
      %v960 = vadd.f32 %v908, %v959
      %v961 = vpop.f32.mrb[0].mxu0
      %v962 = vpop.f32.mrb[0].mxu0
      %v963 = vpop.f32.mrb[0].mxu0
      %964 = vdwg.mxu0
      %v965 = vadd.f32 %v319, %v960
      %966 = vst.msk [vmem:[%s317] sm:$0xff] %vm322, %v965
      %p967 = scmp.lt.s32.totalorder %s19, 1
      %s968 = scalar_select %p967, %s19, 1
      %s969 = smul.addr %s968, 8
      %s970 = scalar_lea.vmem %s8, %s969
      // Predicated region
      $region53: #{decoder_forward.7} parent=51 // pred_check
        %p971 = pneg %p215
      $region54: #{decoder_forward.7} parent=51 // pred_check_branch
        %973 = sbr.rel (%p971) target = $region56
      $region55: #{decoder_forward.7} parent=51 // pred_region
        _
      $region56: #{decoder_forward.7} parent=51 // pred_fallthru
        _
    $region52: #{decoder_forward.7} parent=5 // pred_fallthru
      _
    %p974 = scmp.le.s32.totalorder 2, %s14
    // Predicated region
    $region57: #{decoder_forward.7} parent=5 // pred_check
      %p975 = pneg %p974
    $region58: #{decoder_forward.7} parent=5 // pred_check_branch
      %977 = sbr.rel (%p975) target = $region60
    $region59: #{decoder_forward.7} parent=5 // pred_region
      %s978 = ssub.s32 %s14, 2
      // Predicated region
      $region61: #{decoder_forward.7} parent=59 // pred_check
        %p979 = pneg %p221
      $region62: #{decoder_forward.7} parent=59 // pred_check_branch
        %981 = sbr.rel (%p979) target = $region64
      $region63: #{decoder_forward.7} parent=59 // pred_region
        %p982 = scmp.lt.s32.totalorder %s20, 1
        %s983 = scalar_select %p982, %s20, 1
        %s984 = smul.addr %s983, 8
        %s985 = scalar_lea.vmem %s8, %s984
      $region64: #{decoder_forward.7} parent=59 // pred_fallthru
        _
    $region60: #{decoder_forward.7} parent=5 // pred_fallthru
      _
  $region6: #{decoder_forward.7} parent=0 // loop_footer
    %s18 = sadd.s32 1, %s14
  $region7: #{decoder_forward.7} parent=0 // loop_footer_branch
    %13 = sbr.rel target = $region3
  $region8: #{decoder_forward.7} parent=0 // loop_exit
    _

// kernel: decoder_forward.8
$region0: #{decoder_forward.8}
  #allocation0 [shape = 'u32[]', space=smem, size = 0x4, offset = 0x4, fixed_abs, tag = 'smem constant byte address 0x4 - core index']
  #allocation1 [shape = 'u32[144,128]{1,0:T(1,128)}', space=vmem, size = 0x12000, scoped, tag = 'internal scratch']
  %s0 = inlined_call_operand.vmem [shape: f32[2,8,32], index: 0, kind: input, shape index: {}]
  %s1 = inlined_call_operand.vmem [shape: f32[2,8,32], index: 1, kind: input, shape index: {}]
  %s2 = inlined_call_operand.vmem [shape: f32[2,1,8], index: 2, kind: input, shape index: {}]
  %s3 = inlined_call_operand.vmem [shape: f32[1,32], index: 3, kind: input, shape index: {}]
  %s4 = inlined_call_operand.vmem [shape: f32[1,32], index: 4, kind: input, shape index: {}, may-alias: {4,8}]
  %s5 = inlined_call_operand.vmem [shape: bf16[32,96], index: 5, kind: input, shape index: {}]
  %s6 = inlined_call_operand.vmem [shape: f32[1,96], index: 6, kind: input, shape index: {}]
  %s7 = inlined_call_operand.vmem [shape: bf16[32,32], index: 7, kind: input, shape index: {}]
  %s8 = inlined_call_operand.vmem [shape: f32[1,32], index: 8, kind: input, shape index: {}, may-alias: {4,8}]
  %s9 = inlined_call_operand.vmem [shape: f32[2,8,32], index: 9, kind: output, shape index: {}]
  %s10 = sld [smem:[#allocation0]]
  $region69: #{decoder_forward.8} parent=0
    _
  %s12 = ssub.s32 1, %s10
  %s13 = scalar_select 0, %s12, %s10
  loop: start=0, step=1, limit=4
  $region2: #{decoder_forward.8} parent=0 // loop_pre_header
    _
  $region3: #{decoder_forward.8} parent=0 // loop_header
    %s15 = sphi 0, %s19
    %p16 = scmp.ge.s32.totalorder %s15, 4
    %s25 = sphi 0, %s27
    %s28 = sphi 0, %s25
    %s29 = sphi 0, %s28
    %s45 = sphi 0, %s29
    %s51 = sphi 0, %s53
    %s54 = sphi 0, %s51
    %s55 = sphi 0, %s54
    %s71 = sphi 0, %s55
    %s77 = sphi 0, %s79
    %s80 = sphi 0, %s77
    %s81 = sphi 0, %s80
    %s97 = sphi 0, %s81
    %s101 = sphi 0, %s101
    %s103 = sphi 0, %s101
    %s104 = sphi 0, %s103
    %s118 = sphi 0, %s104
    %s122 = sphi 0, %s122
    %s124 = sphi 0, %s122
    %s125 = sphi 0, %s124
    %s139 = sphi 0, %s125
    %s143 = sphi 0, %s143
    %s145 = sphi 0, %s143
    %s146 = sphi 0, %s145
    %s160 = sphi 0, %s146
    %s164 = sphi 0, %s164
    %s166 = sphi 0, %s164
    %s167 = sphi 0, %s166
    %s181 = sphi 0, %s167
    %s185 = sphi 0, %s185
    %s187 = sphi 0, %s185
    %s188 = sphi 0, %s187
    %s202 = sphi 0, %s188
    %s206 = sphi 0, %s206
    %s208 = sphi 0, %s206
    %s209 = sphi 0, %s208
    %s223 = sphi 0, %s209
    %s229 = sphi 0, %s231
    %s232 = sphi 0, %s229
    %s233 = sphi 0, %s232
    %s249 = sphi 0, %s233
  $region4: #{decoder_forward.8} parent=0 // loop_header_branch
    %18 = sbr.rel (%p16) target = $region8
  $region5: #{decoder_forward.8} parent=0 // loop_body
    %s20 = ssub.s32 %s15, 1
    %s21 = ssub.s32 %s15, 2
    %s22 = sadd.s32 %s15, 1
    %s23 = ssub.s32 %s15, %s22
    %p24 = scmp.eq.s32.totalorder %s23, 0
    %s26 = sadd.s32 %s25, 1
    %s27 = scalar_select %p24, %s25, %s26
    %p30 = pneg %p24
    %p31 = scmp.eq.s32.totalorder %s15, 1
    %p32 = por %p30, %p31
    %p33 = scmp.ne.s32.totalorder %s25, %s28
    %p34 = scmp.eq.s32.totalorder %s15, 0
    %p35 = por %p33, %p34
    %p36 = scmp.ne.s32.totalorder %s25, %s28
    %p37 = scmp.eq.s32.totalorder %s20, 1
    %p38 = por %p36, %p37
    %p39 = scmp.ne.s32.totalorder %s28, %s29
    %p40 = scmp.eq.s32.totalorder %s20, 0
    %p41 = por %p39, %p40
    %p42 = scmp.ne.s32.totalorder %s28, %s29
    %p43 = scmp.eq.s32.totalorder %s21, 1
    %p44 = por %p42, %p43
    %p46 = scmp.ne.s32.totalorder %s29, %s45
    %p47 = scmp.eq.s32.totalorder %s21, 0
    %p48 = por %p46, %p47
    %s49 = ssub.s32 %s15, %s22
    %p50 = scmp.eq.s32.totalorder %s49, 0
    %s52 = sadd.s32 %s51, 1
    %s53 = scalar_select %p50, %s51, %s52
    %p56 = pneg %p50
    %p57 = scmp.eq.s32.totalorder %s15, 1
    %p58 = por %p56, %p57
    %p59 = scmp.ne.s32.totalorder %s51, %s54
    %p60 = scmp.eq.s32.totalorder %s15, 0
    %p61 = por %p59, %p60
    %p62 = scmp.ne.s32.totalorder %s51, %s54
    %p63 = scmp.eq.s32.totalorder %s20, 1
    %p64 = por %p62, %p63
    %p65 = scmp.ne.s32.totalorder %s54, %s55
    %p66 = scmp.eq.s32.totalorder %s20, 0
    %p67 = por %p65, %p66
    %p68 = scmp.ne.s32.totalorder %s54, %s55
    %p69 = scmp.eq.s32.totalorder %s21, 1
    %p70 = por %p68, %p69
    %p72 = scmp.ne.s32.totalorder %s55, %s71
    %p73 = scmp.eq.s32.totalorder %s21, 0
    %p74 = por %p72, %p73
    %s75 = ssub.s32 %s15, %s22
    %p76 = scmp.eq.s32.totalorder %s75, 0
    %s78 = sadd.s32 %s77, 1
    %s79 = scalar_select %p76, %s77, %s78
    %p82 = pneg %p76
    %p83 = scmp.eq.s32.totalorder %s15, 1
    %p84 = por %p82, %p83
    %p85 = scmp.ne.s32.totalorder %s77, %s80
    %p86 = scmp.eq.s32.totalorder %s15, 0
    %p87 = por %p85, %p86
    %p88 = scmp.ne.s32.totalorder %s77, %s80
    %p89 = scmp.eq.s32.totalorder %s20, 1
    %p90 = por %p88, %p89
    %p91 = scmp.ne.s32.totalorder %s80, %s81
    %p92 = scmp.eq.s32.totalorder %s20, 0
    %p93 = por %p91, %p92
    %p94 = scmp.ne.s32.totalorder %s80, %s81
    %p95 = scmp.eq.s32.totalorder %s21, 1
    %p96 = por %p94, %p95
    %p98 = scmp.ne.s32.totalorder %s81, %s97
    %p99 = scmp.eq.s32.totalorder %s21, 0
    %p100 = por %p98, %p99
    %s102 = sadd.s32 %s101, 1
    %p105 = scmp.eq.s32.totalorder %s15, 1
    %p106 = scmp.ne.s32.totalorder %s101, %s103
    %p107 = scmp.eq.s32.totalorder %s15, 0
    %p108 = por %p106, %p107
    %p109 = scmp.ne.s32.totalorder %s101, %s103
    %p110 = scmp.eq.s32.totalorder %s20, 1
    %p111 = por %p109, %p110
    %p112 = scmp.ne.s32.totalorder %s103, %s104
    %p113 = scmp.eq.s32.totalorder %s20, 0
    %p114 = por %p112, %p113
    %p115 = scmp.ne.s32.totalorder %s103, %s104
    %p116 = scmp.eq.s32.totalorder %s21, 1
    %p117 = por %p115, %p116
    %p119 = scmp.ne.s32.totalorder %s104, %s118
    %p120 = scmp.eq.s32.totalorder %s21, 0
    %p121 = por %p119, %p120
    %s123 = sadd.s32 %s122, 1
    %p126 = scmp.eq.s32.totalorder %s15, 1
    %p127 = scmp.ne.s32.totalorder %s122, %s124
    %p128 = scmp.eq.s32.totalorder %s15, 0
    %p129 = por %p127, %p128
    %p130 = scmp.ne.s32.totalorder %s122, %s124
    %p131 = scmp.eq.s32.totalorder %s20, 1
    %p132 = por %p130, %p131
    %p133 = scmp.ne.s32.totalorder %s124, %s125
    %p134 = scmp.eq.s32.totalorder %s20, 0
    %p135 = por %p133, %p134
    %p136 = scmp.ne.s32.totalorder %s124, %s125
    %p137 = scmp.eq.s32.totalorder %s21, 1
    %p138 = por %p136, %p137
    %p140 = scmp.ne.s32.totalorder %s125, %s139
    %p141 = scmp.eq.s32.totalorder %s21, 0
    %p142 = por %p140, %p141
    %s144 = sadd.s32 %s143, 1
    %p147 = scmp.eq.s32.totalorder %s15, 1
    %p148 = scmp.ne.s32.totalorder %s143, %s145
    %p149 = scmp.eq.s32.totalorder %s15, 0
    %p150 = por %p148, %p149
    %p151 = scmp.ne.s32.totalorder %s143, %s145
    %p152 = scmp.eq.s32.totalorder %s20, 1
    %p153 = por %p151, %p152
    %p154 = scmp.ne.s32.totalorder %s145, %s146
    %p155 = scmp.eq.s32.totalorder %s20, 0
    %p156 = por %p154, %p155
    %p157 = scmp.ne.s32.totalorder %s145, %s146
    %p158 = scmp.eq.s32.totalorder %s21, 1
    %p159 = por %p157, %p158
    %p161 = scmp.ne.s32.totalorder %s146, %s160
    %p162 = scmp.eq.s32.totalorder %s21, 0
    %p163 = por %p161, %p162
    %s165 = sadd.s32 %s164, 1
    %p168 = scmp.eq.s32.totalorder %s15, 1
    %p169 = scmp.ne.s32.totalorder %s164, %s166
    %p170 = scmp.eq.s32.totalorder %s15, 0
    %p171 = por %p169, %p170
    %p172 = scmp.ne.s32.totalorder %s164, %s166
    %p173 = scmp.eq.s32.totalorder %s20, 1
    %p174 = por %p172, %p173
    %p175 = scmp.ne.s32.totalorder %s166, %s167
    %p176 = scmp.eq.s32.totalorder %s20, 0
    %p177 = por %p175, %p176
    %p178 = scmp.ne.s32.totalorder %s166, %s167
    %p179 = scmp.eq.s32.totalorder %s21, 1
    %p180 = por %p178, %p179
    %p182 = scmp.ne.s32.totalorder %s167, %s181
    %p183 = scmp.eq.s32.totalorder %s21, 0
    %p184 = por %p182, %p183
    %s186 = sadd.s32 %s185, 1
    %p189 = scmp.eq.s32.totalorder %s15, 1
    %p190 = scmp.ne.s32.totalorder %s185, %s187
    %p191 = scmp.eq.s32.totalorder %s15, 0
    %p192 = por %p190, %p191
    %p193 = scmp.ne.s32.totalorder %s185, %s187
    %p194 = scmp.eq.s32.totalorder %s20, 1
    %p195 = por %p193, %p194
    %p196 = scmp.ne.s32.totalorder %s187, %s188
    %p197 = scmp.eq.s32.totalorder %s20, 0
    %p198 = por %p196, %p197
    %p199 = scmp.ne.s32.totalorder %s187, %s188
    %p200 = scmp.eq.s32.totalorder %s21, 1
    %p201 = por %p199, %p200
    %p203 = scmp.ne.s32.totalorder %s188, %s202
    %p204 = scmp.eq.s32.totalorder %s21, 0
    %p205 = por %p203, %p204
    %s207 = sadd.s32 %s206, 1
    %p210 = scmp.eq.s32.totalorder %s15, 1
    %p211 = scmp.ne.s32.totalorder %s206, %s208
    %p212 = scmp.eq.s32.totalorder %s15, 0
    %p213 = por %p211, %p212
    %p214 = scmp.ne.s32.totalorder %s206, %s208
    %p215 = scmp.eq.s32.totalorder %s20, 1
    %p216 = por %p214, %p215
    %p217 = scmp.ne.s32.totalorder %s208, %s209
    %p218 = scmp.eq.s32.totalorder %s20, 0
    %p219 = por %p217, %p218
    %p220 = scmp.ne.s32.totalorder %s208, %s209
    %p221 = scmp.eq.s32.totalorder %s21, 1
    %p222 = por %p220, %p221
    %p224 = scmp.ne.s32.totalorder %s209, %s223
    %p225 = scmp.eq.s32.totalorder %s21, 0
    %p226 = por %p224, %p225
    %s227 = ssub.s32 %s15, %s22
    %p228 = scmp.eq.s32.totalorder %s227, 0
    %s230 = sadd.s32 %s229, 1
    %s231 = scalar_select %p228, %s229, %s230
    %p234 = pneg %p228
    %p235 = scmp.eq.s32.totalorder %s15, 1
    %p236 = por %p234, %p235
    %p237 = scmp.ne.s32.totalorder %s229, %s232
    %p238 = scmp.eq.s32.totalorder %s15, 0
    %p239 = por %p237, %p238
    %p240 = scmp.ne.s32.totalorder %s229, %s232
    %p241 = scmp.eq.s32.totalorder %s20, 1
    %p242 = por %p240, %p241
    %p243 = scmp.ne.s32.totalorder %s232, %s233
    %p244 = scmp.eq.s32.totalorder %s20, 0
    %p245 = por %p243, %p244
    %p246 = scmp.ne.s32.totalorder %s232, %s233
    %p247 = scmp.eq.s32.totalorder %s21, 1
    %p248 = por %p246, %p247
    %p250 = scmp.ne.s32.totalorder %s233, %s249
    %p251 = scmp.eq.s32.totalorder %s21, 0
    %p252 = por %p250, %p251
    %p253 = scmp.le.s32.totalorder 1, %s15
    %p254 = scmp.lt.s32.totalorder %s15, 3
    %p255 = pnand %p253, %p254
    %p256 = pneg %p255
    // Predicated region
    $region9: #{decoder_forward.8} parent=5 // pred_check
      _
    $region10: #{decoder_forward.8} parent=5 // pred_check_branch
      %258 = sbr.rel (%p255) target = $region12
    $region11: #{decoder_forward.8} parent=5 // pred_region
      %s259 = ssub.s32 %s15, 1
      // Predicated region
      $region13: #{decoder_forward.8} parent=11 // pred_check
        %p260 = pneg %p114
      $region14: #{decoder_forward.8} parent=11 // pred_check_branch
        %262 = sbr.rel (%p260) target = $region16
      $region15: #{decoder_forward.8} parent=11 // pred_region
        _
      $region16: #{decoder_forward.8} parent=11 // pred_fallthru
        _
      // Predicated region
      $region17: #{decoder_forward.8} parent=11 // pred_check
        %p263 = pneg %p135
      $region18: #{decoder_forward.8} parent=11 // pred_check_branch
        %265 = sbr.rel (%p263) target = $region20
      $region19: #{decoder_forward.8} parent=11 // pred_region
        _
      $region20: #{decoder_forward.8} parent=11 // pred_fallthru
        _
      // Predicated region
      $region21: #{decoder_forward.8} parent=11 // pred_check
        %p266 = pneg %p156
      $region22: #{decoder_forward.8} parent=11 // pred_check_branch
        %268 = sbr.rel (%p266) target = $region24
      $region23: #{decoder_forward.8} parent=11 // pred_region
        _
      $region24: #{decoder_forward.8} parent=11 // pred_fallthru
        _
      // Predicated region
      $region25: #{decoder_forward.8} parent=11 // pred_check
        %p269 = pneg %p177
      $region26: #{decoder_forward.8} parent=11 // pred_check_branch
        %271 = sbr.rel (%p269) target = $region28
      $region27: #{decoder_forward.8} parent=11 // pred_region
        _
      $region28: #{decoder_forward.8} parent=11 // pred_fallthru
        _
      // Predicated region
      $region29: #{decoder_forward.8} parent=11 // pred_check
        %p272 = pneg %p198
      $region30: #{decoder_forward.8} parent=11 // pred_check_branch
        %274 = sbr.rel (%p272) target = $region32
      $region31: #{decoder_forward.8} parent=11 // pred_region
        _
      $region32: #{decoder_forward.8} parent=11 // pred_fallthru
        _
      // Predicated region
      $region33: #{decoder_forward.8} parent=11 // pred_check
        %p275 = pneg %p219
      $region34: #{decoder_forward.8} parent=11 // pred_check_branch
        %277 = sbr.rel (%p275) target = $region36
      $region35: #{decoder_forward.8} parent=11 // pred_region
        _
      $region36: #{decoder_forward.8} parent=11 // pred_fallthru
        _
    $region12: #{decoder_forward.8} parent=5 // pred_fallthru
      _
    %p278 = scmp.lt.s32.totalorder %s15, 2
    // Predicated region
    $region37: #{decoder_forward.8} parent=5 // pred_check
      %p279 = pneg %p278
    $region38: #{decoder_forward.8} parent=5 // pred_check_branch
      %281 = sbr.rel (%p279) target = $region40
    $region39: #{decoder_forward.8} parent=5 // pred_region
      // Predicated region
      $region41: #{decoder_forward.8} parent=39 // pred_check
        %p282 = pneg %p35
      $region42: #{decoder_forward.8} parent=39 // pred_check_branch
        %284 = sbr.rel (%p282) target = $region44
      $region43: #{decoder_forward.8} parent=39 // pred_region
        %p285 = scmp.lt.s32.totalorder %s15, 1
        %s286 = scalar_select %p285, %s15, 1
        %s287 = smul.addr %s286, 8
        %s288 = scalar_lea.vmem %s0, %s287
      $region44: #{decoder_forward.8} parent=39 // pred_fallthru
        _
      // Predicated region
      $region45: #{decoder_forward.8} parent=39 // pred_check
        %p289 = pneg %p61
      $region46: #{decoder_forward.8} parent=39 // pred_check_branch
        %291 = sbr.rel (%p289) target = $region48
      $region47: #{decoder_forward.8} parent=39 // pred_region
        %p292 = scmp.lt.s32.totalorder %s15, 1
        %s293 = scalar_select %p292, %s15, 1
        %s294 = smul.addr %s293, 8
        %s295 = scalar_lea.vmem %s1, %s294
      $region48: #{decoder_forward.8} parent=39 // pred_fallthru
        _
      // Predicated region
      $region49: #{decoder_forward.8} parent=39 // pred_check
        %p296 = pneg %p87
      $region50: #{decoder_forward.8} parent=39 // pred_check_branch
        %298 = sbr.rel (%p296) target = $region52
      $region51: #{decoder_forward.8} parent=39 // pred_region
        %p299 = scmp.lt.s32.totalorder %s15, 1
        %s300 = scalar_select %p299, %s15, 1
        %s301 = scalar_lea.vmem %s2, %s300
      $region52: #{decoder_forward.8} parent=39 // pred_fallthru
        _
    $region40: #{decoder_forward.8} parent=5 // pred_fallthru
      _
    %p302 = scmp.le.s32.totalorder 1, %s15
    %p303 = scmp.lt.s32.totalorder %s15, 3
    %p304 = pnand %p302, %p303
    %p305 = pneg %p304
    // Predicated region
    $region53: #{decoder_forward.8} parent=5 // pred_check
      _
    $region54: #{decoder_forward.8} parent=5 // pred_check_branch
      %307 = sbr.rel (%p304) target = $region56
    $region55: #{decoder_forward.8} parent=5 // pred_region
      %s308 = ssub.s32 %s15, 1
      %p309 = scmp.lt.s32.totalorder %s20, 1
      %s310 = scalar_select %p309, %s20, 1
      %s311 = smul.addr %s310, 8
      %s312 = scalar_lea.vmem %s0, %s311
      %p313 = pneg %p41
      %p314 = pneg %p38
      %p315 = scmp.lt.s32.totalorder %s20, 1
      %s316 = scalar_select %p315, %s20, 1
      %s317 = smul.addr %s316, 8
      %s318 = scalar_lea.vmem %s1, %s317
      %p319 = pneg %p67
      %p320 = pneg %p64
      %p321 = scmp.lt.s32.totalorder %s20, 1
      %s322 = scalar_select %p321, %s20, 1
      %s323 = scalar_lea.vmem %s2, %s322
      %p324 = pneg %p93
      %p325 = pneg %p90
      %p326 = pneg %p114
      %p327 = pneg %p111
      %p328 = pneg %p135
      %p329 = pneg %p132
      %p330 = pneg %p156
      %p331 = pneg %p153
      %p332 = pneg %p177
      %p333 = pneg %p174
      %p334 = pneg %p198
      %p335 = pneg %p195
      %p336 = pneg %p219
      %p337 = pneg %p216
      %p338 = pneg %p245
      %p339 = pneg %p242
      %p340 = scmp.lt.s32.totalorder %s20, 1
      %s341 = scalar_select %p340, %s20, 1
      %s342 = smul.addr %s341, 8
      %s343 = scalar_lea.vmem %s9, %s342
      %p344 = scmp.lt.s32.totalorder %s20, 1
      %s345 = scalar_select %p344, %s20, 1
      %s346 = smul.addr %s345, 8
      %s347 = scalar_lea.vmem %s0, %s346
      %p348 = scmp.lt.s32.totalorder %s20, 1
      %s349 = scalar_select %p348, %s20, 1
      %s350 = smul.addr %s349, 8
      %s351 = scalar_lea.vmem %s1, %s350
      %p352 = scmp.lt.s32.totalorder %s20, 1
      %s353 = scalar_select %p352, %s20, 1
      %s354 = scalar_lea.vmem %s2, %s353
      %p355 = scmp.lt.s32.totalorder %s20, 1
      %s356 = scalar_select %p355, %s20, 1
      %s357 = smul.addr %s356, 8
      %s358 = scalar_lea.vmem %s9, %s357
      %v360 = vld [vmem:[%s347] sm:$0xff]
      %v361 = vld [vmem:[%s351] sm:$0xff]
      %v362 = vld [vmem:[%s3] sm:$0x1]
      %v363 = vld [vmem:[%s4] sm:$0x1]
      %vm364 = vcmask 261120
      %v365 = vsel %vm364, %v360, 0.0
      %366 = vadd.xlane.f32.xlu0 %v365
      %v367 = vpop.xlane.xlu0 %366
      %v368 = vrcp.pop 32.0
      %v369 = vmul.f32 %v367, %v368
      %v370 = vsub.f32 %v360, %v369
      %v371 = vmul.f32 %v370, %v370
      %v372 = vsel %vm364, %v371, 0.0
      %373 = vadd.xlane.f32.xlu0 %v372
      %v374 = vpop.xlane.xlu0 %373
      %v375 = vmul.f32 %v374, 0.032258064
      %v376 = vrsqrt.pop %v375
      %v377 = vmul.f32 %v375, %v376
      %vm378 = vcmp.eq.f32.partialorder %v375, inf
      %v379 = vsel %vm378, %v375, %v377
      %vm380 = vcmp.eq.f32.partialorder %v375, 0.0
      %v381 = vand.u32 %v375, 2147483648
      %v382 = vsel %vm380, %v381, %v379
      %v383 = vadd.f32 %v382, 1e-06
      %v384 = vrcp.pop %v383
      %v385 = vmul.f32 1.0, %v384
      %v386 = vmul.f32 %v370, %v385
      %v388 = vlaneseq
      %v389 = vshrl.u32 %v388, 7
      %v390 = vsub.s32 0, %v389
      %v391 = vrot.slane %v362, %v390
      %v393 = vmul.f32 %v386, %v391
      %v395 = vlaneseq
      %v396 = vshrl.u32 %v395, 7
      %v397 = vsub.s32 0, %v396
      %v398 = vrot.slane %v363, %v397
      %v400 = vadd.f32 %v393, %v398
      %v401 = vld [vmem:[%s5] sm:$0xf]
      %v402 = vld [vmem:[%s5 + $0x4] sm:$0xf]
      %v403 = vld [vmem:[%s5 + $0x8] sm:$0xf]
      %v404 = vld [vmem:[%s5 + $0xc] sm:$0xf]
      %v405 = vld [vmem:[%s6] sm:$0x1]
      %v406 = vpack.c.bf16 %v400, %v400
      %v408 = vlaneseq
      %v409 = vshrl.u32 %v408, 7
      %v410 = vsub.s32 0, %v409
      %v411 = vrot.slane %v405, %v410
      %v417 = vunpack.c.l.b16 %v401
      %v418 = vunpack.c.l.b16 %v402
      %v419 = vunpack.c.l.b16 %v403
      %v420 = vunpack.c.l.b16 %v404
      %v421 = vpack.c.b16 %v418, %v417
      %v422 = vpack.c.b16 %v420, %v419
      %v426 = vsel %vm364, %v406, 0
      %428 = vmatprep.subr.bf16.mxu0 0
      %429 = vmatpush1.bf16.msra.mxu0 %v421
      %430 = vmatprep.subr.bf16.mxu0 0
      %431 = vmatpush1.bf16.msra.mxu0 %v422
      %432 = vmatprep.subr.bf16.mxu0 0
      %433 = vmatpush1.bf16.msra.mxu0 0
      %434 = vmatprep.subr.bf16.mxu0 0
      %435 = vmatpush1.bf16.msra.mxu0 0
      %436 = vmatprep.subr.bf16.mxu0 0
      %437 = vmatpush1.bf16.msra.mxu0 0
      %438 = vmatprep.subr.bf16.mxu0 0
      %439 = vmatpush1.bf16.msra.mxu0 0
      %440 = vmatprep.subr.bf16.mxu0 0
      %441 = vmatpush1.bf16.msra.mxu0 0
      %442 = vmatprep.subr.bf16.mxu0 0
      %443 = vmatpush1.bf16.msra.mxu0 0
      %444 = vmatprep.subr.bf16.mxu0 0
      %445 = vmatpush1.bf16.msra.mxu0 0
      %446 = vmatprep.subr.bf16.mxu0 0
      %447 = vmatpush1.bf16.msra.mxu0 0
      %448 = vmatprep.subr.bf16.mxu0 0
      %449 = vmatpush1.bf16.msra.mxu0 0
      %450 = vmatprep.subr.bf16.mxu0 0
      %451 = vmatpush1.bf16.msra.mxu0 0
      %452 = vmatprep.subr.bf16.mxu0 0
      %453 = vmatpush1.bf16.msra.mxu0 0
      %454 = vmatprep.subr.bf16.mxu0 0
      %455 = vmatpush1.bf16.msra.mxu0 0
      %456 = vmatprep.subr.bf16.mxu0 0
      %457 = vmatpush1.bf16.msra.mxu0 0
      %458 = vmatprep.subr.bf16.mxu0 0
      %459 = vmatpush1.bf16.msra.mxu0 0
      %460 = vmatprep.mubr.bf16.mxu0 0
      %461 = vmatmul.mubr.bf16.gmra.mrb[0].mxu0 %v426
      %v462 = vpop.f32.mrb[0].mxu0
      %v463 = vadd.f32 %v411, %v462
      %v464 = vpop.f32.mrb[0].mxu0
      %v465 = vpop.f32.mrb[0].mxu0
      %v466 = vpop.f32.mrb[0].mxu0
      %467 = vdwg.mxu0
      %v468 = vpack.c.bf16 %v361, %v361
      %469 = vrot.lane.b32.xlu0 %v421, 96
      %v470 = vpop.permute.xlu0 %469
      %471 = vrot.lane.b32.xlu0 %v422, 96
      %v472 = vpop.permute.xlu0 %471
      %475 = vrot.lane.b32.xlu0 %v411, 96
      %v476 = vpop.permute.xlu0 %475
      %v479 = vsel %vm364, %v468, 0
      %481 = vmatprep.subr.bf16.mxu0 0
      %482 = vmatpush1.bf16.msra.mxu0 %v470
      %483 = vmatprep.subr.bf16.mxu0 0
      %484 = vmatpush1.bf16.msra.mxu0 %v472
      %485 = vmatprep.subr.bf16.mxu0 0
      %486 = vmatpush1.bf16.msra.mxu0 0
      %487 = vmatprep.subr.bf16.mxu0 0
      %488 = vmatpush1.bf16.msra.mxu0 0
      %489 = vmatprep.subr.bf16.mxu0 0
      %490 = vmatpush1.bf16.msra.mxu0 0
      %491 = vmatprep.subr.bf16.mxu0 0
      %492 = vmatpush1.bf16.msra.mxu0 0
      %493 = vmatprep.subr.bf16.mxu0 0
      %494 = vmatpush1.bf16.msra.mxu0 0
      %495 = vmatprep.subr.bf16.mxu0 0
      %496 = vmatpush1.bf16.msra.mxu0 0
      %497 = vmatprep.subr.bf16.mxu0 0
      %498 = vmatpush1.bf16.msra.mxu0 0
      %499 = vmatprep.subr.bf16.mxu0 0
      %500 = vmatpush1.bf16.msra.mxu0 0
      %501 = vmatprep.subr.bf16.mxu0 0
      %502 = vmatpush1.bf16.msra.mxu0 0
      %503 = vmatprep.subr.bf16.mxu0 0
      %504 = vmatpush1.bf16.msra.mxu0 0
      %505 = vmatprep.subr.bf16.mxu0 0
      %506 = vmatpush1.bf16.msra.mxu0 0
      %507 = vmatprep.subr.bf16.mxu0 0
      %508 = vmatpush1.bf16.msra.mxu0 0
      %509 = vmatprep.subr.bf16.mxu0 0
      %510 = vmatpush1.bf16.msra.mxu0 0
      %511 = vmatprep.subr.bf16.mxu0 0
      %512 = vmatpush1.bf16.msra.mxu0 0
      %513 = vmatprep.mubr.bf16.mxu0 0
      %514 = vmatmul.mubr.bf16.gmra.mrb[0].mxu0 %v479
      %v515 = vpop.f32.mrb[0].mxu0
      %v516 = vadd.f32 %v476, %v515
      %v517 = vpop.f32.mrb[0].mxu0
      %v518 = vpop.f32.mrb[0].mxu0
      %v519 = vpop.f32.mrb[0].mxu0
      %520 = vdwg.mxu0
      %v521 = vmul.f32 %v463, 0.35355338
      %v522 = vld [vmem:[%s354] sm:$0x1]
      %v523 = vpack.c.bf16 %v521, %v521
      %v524 = vpack.c.bf16 %v516, %v516
      %vm525 = vcmask 64512
      %v527 = vsel %vm525, %v523, 0
      %v530 = vsel %vm525, %v524, 0
      %532 = vmatprep.subr.bf16.mxu0 0
      %533 = vmatpush1.bf16.xpose.msra.mxu0 %v530
      %534 = vmatprep.subr.bf16.mxu0 0
      %535 = vmatpush1.bf16.xpose.msra.mxu0 0
      %536 = vmatprep.subr.bf16.mxu0 0
      %537 = vmatpush1.bf16.xpose.msra.mxu0 0
      %538 = vmatprep.subr.bf16.mxu0 0
      %539 = vmatpush1.bf16.xpose.msra.mxu0 0
      %540 = vmatprep.subr.bf16.mxu0 0
      %541 = vmatpush1.bf16.xpose.msra.mxu0 0
      %542 = vmatprep.subr.bf16.mxu0 0
      %543 = vmatpush1.bf16.xpose.msra.mxu0 0
      %544 = vmatprep.subr.bf16.mxu0 0
      %545 = vmatpush1.bf16.xpose.msra.mxu0 0
      %546 = vmatprep.subr.bf16.mxu0 0
      %547 = vmatpush1.bf16.xpose.msra.mxu0 0
      %548 = vmatprep.subr.bf16.mxu0 0
      %549 = vmatpush1.bf16.xpose.msra.mxu0 0
      %550 = vmatprep.subr.bf16.mxu0 0
      %551 = vmatpush1.bf16.xpose.msra.mxu0 0
      %552 = vmatprep.subr.bf16.mxu0 0
      %553 = vmatpush1.bf16.xpose.msra.mxu0 0
      %554 = vmatprep.subr.bf16.mxu0 0
      %555 = vmatpush1.bf16.xpose.msra.mxu0 0
      %556 = vmatprep.subr.bf16.mxu0 0
      %557 = vmatpush1.bf16.xpose.msra.mxu0 0
      %558 = vmatprep.subr.bf16.mxu0 0
      %559 = vmatpush1.bf16.xpose.msra.mxu0 0
      %560 = vmatprep.subr.bf16.mxu0 0
      %561 = vmatpush1.bf16.xpose.msra.mxu0 0
      %562 = vmatprep.subr.bf16.mxu0 0
      %563 = vmatpush1.bf16.xpose.msra.mxu0 0
      %564 = vmatprep.mubr.bf16.mxu0 0
      %565 = vmatmul.mubr.bf16.gmra.mrb[0].mxu0 %v527
      %v566 = vpop.f32.mrb[0].mxu0
      %v567 = vadd.f32 0.0, %v566
      %v568 = vpop.f32.mrb[0].mxu0
      %v569 = vpop.f32.mrb[0].mxu0
      %v570 = vpop.f32.mrb[0].mxu0
      %571 = vdwg.mxu0
      %vm572 = vcmp.eq.f32.partialorder %v522, 0.0
      %v573 = vsel %vm572, 1, 0
      %v574 = vlaneseq
      %v575 = vshrl.u32 %v574, 7
      %v576 = vsub.s32 0, %v575
      %v577 = vrot.slane %v573, %v576
      %vm578 = vcmp.eq.s32.totalorder %v577, 1
      %v579 = vsel %vm578, -1e+09, %v567
      %v580 = vsel %vm525, %v579, -inf
      %581 = vmax.xlane.f32.xlu0 %v580
      %v582 = vpop.xlane.xlu0 %581
      %v583 = vsub.f32 %v579, %v582
      %v584 = vmul.f32 %v583, 1.442695
      %v585 = vpow.pop %v584
      %v586 = vsel %vm525, %v585, 0.0
      %587 = vadd.xlane.f32.xlu0 %v586
      %v588 = vpop.xlane.xlu0 %587
      %v589 = vrcp.pop %v588
      %v590 = vmul.f32 1.0, %v589
      %v591 = vmul.f32 %v585, %v590
      %v592 = vpack.c.bf16 %v591, %v591
      %594 = vrot.lane.b32.xlu0 %v524, 96
      %v595 = vpop.permute.xlu0 %594
      %v597 = vsel %vm525, %v592, 0
      %vm599 = vcmask 1043456
      %v601 = vsel %vm599, %v595, 0
      %603 = vmatprep.subr.bf16.mxu0 0
      %604 = vmatpush1.bf16.msra.mxu0 %v601
      %605 = vmatprep.subr.bf16.mxu0 0
      %606 = vmatpush1.bf16.msra.mxu0 0
      %607 = vmatprep.subr.bf16.mxu0 0
      %608 = vmatpush1.bf16.msra.mxu0 0
      %609 = vmatprep.subr.bf16.mxu0 0
      %610 = vmatpush1.bf16.msra.mxu0 0
      %611 = vmatprep.subr.bf16.mxu0 0
      %612 = vmatpush1.bf16.msra.mxu0 0
      %613 = vmatprep.subr.bf16.mxu0 0
      %614 = vmatpush1.bf16.msra.mxu0 0
      %615 = vmatprep.subr.bf16.mxu0 0
      %616 = vmatpush1.bf16.msra.mxu0 0
      %617 = vmatprep.subr.bf16.mxu0 0
      %618 = vmatpush1.bf16.msra.mxu0 0
      %619 = vmatprep.subr.bf16.mxu0 0
      %620 = vmatpush1.bf16.msra.mxu0 0
      %621 = vmatprep.subr.bf16.mxu0 0
      %622 = vmatpush1.bf16.msra.mxu0 0
      %623 = vmatprep.subr.bf16.mxu0 0
      %624 = vmatpush1.bf16.msra.mxu0 0
      %625 = vmatprep.subr.bf16.mxu0 0
      %626 = vmatpush1.bf16.msra.mxu0 0
      %627 = vmatprep.subr.bf16.mxu0 0
      %628 = vmatpush1.bf16.msra.mxu0 0
      %629 = vmatprep.subr.bf16.mxu0 0
      %630 = vmatpush1.bf16.msra.mxu0 0
      %631 = vmatprep.subr.bf16.mxu0 0
      %632 = vmatpush1.bf16.msra.mxu0 0
      %633 = vmatprep.subr.bf16.mxu0 0
      %634 = vmatpush1.bf16.msra.mxu0 0
      %635 = vmatprep.mubr.bf16.mxu0 0
      %636 = vmatmul.mubr.bf16.gmra.mrb[0].mxu0 %v597
      %v637 = vpop.f32.mrb[0].mxu0
      %v638 = vadd.f32 0.0, %v637
      %v639 = vpop.f32.mrb[0].mxu0
      %v640 = vpop.f32.mrb[0].mxu0
      %v641 = vpop.f32.mrb[0].mxu0
      %642 = vdwg.mxu0
      %644 = vrot.lane.b32.xlu0 %v523, 120
      %v645 = vpop.permute.xlu0 %644
      %646 = vrot.lane.b32.xlu0 %v524, 120
      %v647 = vpop.permute.xlu0 %646
      %v649 = vsel %vm525, %v645, 0
      %v652 = vsel %vm525, %v647, 0
      %654 = vmatprep.subr.bf16.mxu0 0
      %655 = vmatpush1.bf16.xpose.msra.mxu0 %v652
      %656 = vmatprep.subr.bf16.mxu0 0
      %657 = vmatpush1.bf16.xpose.msra.mxu0 0
      %658 = vmatprep.subr.bf16.mxu0 0
      %659 = vmatpush1.bf16.xpose.msra.mxu0 0
      %660 = vmatprep.subr.bf16.mxu0 0
      %661 = vmatpush1.bf16.xpose.msra.mxu0 0
      %662 = vmatprep.subr.bf16.mxu0 0
      %663 = vmatpush1.bf16.xpose.msra.mxu0 0
      %664 = vmatprep.subr.bf16.mxu0 0
      %665 = vmatpush1.bf16.xpose.msra.mxu0 0
      %666 = vmatprep.subr.bf16.mxu0 0
      %667 = vmatpush1.bf16.xpose.msra.mxu0 0
      %668 = vmatprep.subr.bf16.mxu0 0
      %669 = vmatpush1.bf16.xpose.msra.mxu0 0
      %670 = vmatprep.subr.bf16.mxu0 0
      %671 = vmatpush1.bf16.xpose.msra.mxu0 0
      %672 = vmatprep.subr.bf16.mxu0 0
      %673 = vmatpush1.bf16.xpose.msra.mxu0 0
      %674 = vmatprep.subr.bf16.mxu0 0
      %675 = vmatpush1.bf16.xpose.msra.mxu0 0
      %676 = vmatprep.subr.bf16.mxu0 0
      %677 = vmatpush1.bf16.xpose.msra.mxu0 0
      %678 = vmatprep.subr.bf16.mxu0 0
      %679 = vmatpush1.bf16.xpose.msra.mxu0 0
      %680 = vmatprep.subr.bf16.mxu0 0
      %681 = vmatpush1.bf16.xpose.msra.mxu0 0
      %682 = vmatprep.subr.bf16.mxu0 0
      %683 = vmatpush1.bf16.xpose.msra.mxu0 0
      %684 = vmatprep.subr.bf16.mxu0 0
      %685 = vmatpush1.bf16.xpose.msra.mxu0 0
      %686 = vmatprep.mubr.bf16.mxu0 0
      %687 = vmatmul.mubr.bf16.gmra.mrb[0].mxu0 %v649
      %v688 = vpop.f32.mrb[0].mxu0
      %v689 = vadd.f32 0.0, %v688
      %v690 = vpop.f32.mrb[0].mxu0
      %v691 = vpop.f32.mrb[0].mxu0
      %v692 = vpop.f32.mrb[0].mxu0
      %693 = vdwg.mxu0
      %v694 = vsel %vm578, -1e+09, %v689
      %v695 = vsel %vm525, %v694, -inf
      %696 = vmax.xlane.f32.xlu0 %v695
      %v697 = vpop.xlane.xlu0 %696
      %v698 = vsub.f32 %v694, %v697
      %v699 = vmul.f32 %v698, 1.442695
      %v700 = vpow.pop %v699
      %v701 = vsel %vm525, %v700, 0.0
      %702 = vadd.xlane.f32.xlu0 %v701
      %v703 = vpop.xlane.xlu0 %702
      %v704 = vrcp.pop %v703
      %v705 = vmul.f32 1.0, %v704
      %v706 = vmul.f32 %v700, %v705
      %v707 = vpack.c.bf16 %v706, %v706
      %708 = vrot.lane.b32.xlu0 %v524, 88
      %v709 = vpop.permute.xlu0 %708
      %v711 = vsel %vm525, %v707, 0
      %v714 = vsel %vm599, %v709, 0
      %716 = vmatprep.subr.bf16.mxu0 0
      %717 = vmatpush1.bf16.msra.mxu0 %v714
      %718 = vmatprep.subr.bf16.mxu0 0
      %719 = vmatpush1.bf16.msra.mxu0 0
      %720 = vmatprep.subr.bf16.mxu0 0
      %721 = vmatpush1.bf16.msra.mxu0 0
      %722 = vmatprep.subr.bf16.mxu0 0
      %723 = vmatpush1.bf16.msra.mxu0 0
      %724 = vmatprep.subr.bf16.mxu0 0
      %725 = vmatpush1.bf16.msra.mxu0 0
      %726 = vmatprep.subr.bf16.mxu0 0
      %727 = vmatpush1.bf16.msra.mxu0 0
      %728 = vmatprep.subr.bf16.mxu0 0
      %729 = vmatpush1.bf16.msra.mxu0 0
      %730 = vmatprep.subr.bf16.mxu0 0
      %731 = vmatpush1.bf16.msra.mxu0 0
      %732 = vmatprep.subr.bf16.mxu0 0
      %733 = vmatpush1.bf16.msra.mxu0 0
      %734 = vmatprep.subr.bf16.mxu0 0
      %735 = vmatpush1.bf16.msra.mxu0 0
      %736 = vmatprep.subr.bf16.mxu0 0
      %737 = vmatpush1.bf16.msra.mxu0 0
      %738 = vmatprep.subr.bf16.mxu0 0
      %739 = vmatpush1.bf16.msra.mxu0 0
      %740 = vmatprep.subr.bf16.mxu0 0
      %741 = vmatpush1.bf16.msra.mxu0 0
      %742 = vmatprep.subr.bf16.mxu0 0
      %743 = vmatpush1.bf16.msra.mxu0 0
      %744 = vmatprep.subr.bf16.mxu0 0
      %745 = vmatpush1.bf16.msra.mxu0 0
      %746 = vmatprep.subr.bf16.mxu0 0
      %747 = vmatpush1.bf16.msra.mxu0 0
      %748 = vmatprep.mubr.bf16.mxu0 0
      %749 = vmatmul.mubr.bf16.gmra.mrb[0].mxu0 %v711
      %v750 = vpop.f32.mrb[0].mxu0
      %v751 = vadd.f32 0.0, %v750
      %v752 = vpop.f32.mrb[0].mxu0
      %v753 = vpop.f32.mrb[0].mxu0
      %v754 = vpop.f32.mrb[0].mxu0
      %755 = vdwg.mxu0
      %756 = vrot.lane.b32.xlu0 %v523, 112
      %v757 = vpop.permute.xlu0 %756
      %758 = vrot.lane.b32.xlu0 %v524, 112
      %v759 = vpop.permute.xlu0 %758
      %v761 = vsel %vm525, %v757, 0
      %v764 = vsel %vm525, %v759, 0
      %766 = vmatprep.subr.bf16.mxu0 0
      %767 = vmatpush1.bf16.xpose.msra.mxu0 %v764
      %768 = vmatprep.subr.bf16.mxu0 0
      %769 = vmatpush1.bf16.xpose.msra.mxu0 0
      %770 = vmatprep.subr.bf16.mxu0 0
      %771 = vmatpush1.bf16.xpose.msra.mxu0 0
      %772 = vmatprep.subr.bf16.mxu0 0
      %773 = vmatpush1.bf16.xpose.msra.mxu0 0
      %774 = vmatprep.subr.bf16.mxu0 0
      %775 = vmatpush1.bf16.xpose.msra.mxu0 0
      %776 = vmatprep.subr.bf16.mxu0 0
      %777 = vmatpush1.bf16.xpose.msra.mxu0 0
      %778 = vmatprep.subr.bf16.mxu0 0
      %779 = vmatpush1.bf16.xpose.msra.mxu0 0
      %780 = vmatprep.subr.bf16.mxu0 0
      %781 = vmatpush1.bf16.xpose.msra.mxu0 0
      %782 = vmatprep.subr.bf16.mxu0 0
      %783 = vmatpush1.bf16.xpose.msra.mxu0 0
      %784 = vmatprep.subr.bf16.mxu0 0
      %785 = vmatpush1.bf16.xpose.msra.mxu0 0
      %786 = vmatprep.subr.bf16.mxu0 0
      %787 = vmatpush1.bf16.xpose.msra.mxu0 0
      %788 = vmatprep.subr.bf16.mxu0 0
      %789 = vmatpush1.bf16.xpose.msra.mxu0 0
      %790 = vmatprep.subr.bf16.mxu0 0
      %791 = vmatpush1.bf16.xpose.msra.mxu0 0
      %792 = vmatprep.subr.bf16.mxu0 0
      %793 = vmatpush1.bf16.xpose.msra.mxu0 0
      %794 = vmatprep.subr.bf16.mxu0 0
      %795 = vmatpush1.bf16.xpose.msra.mxu0 0
      %796 = vmatprep.subr.bf16.mxu0 0
      %797 = vmatpush1.bf16.xpose.msra.mxu0 0
      %798 = vmatprep.mubr.bf16.mxu0 0
      %799 = vmatmul.mubr.bf16.gmra.mrb[0].mxu0 %v761
      %v800 = vpop.f32.mrb[0].mxu0
      %v801 = vadd.f32 0.0, %v800
      %v802 = vpop.f32.mrb[0].mxu0
      %v803 = vpop.f32.mrb[0].mxu0
      %v804 = vpop.f32.mrb[0].mxu0
      %805 = vdwg.mxu0
      %v806 = vsel %vm578, -1e+09, %v801
      %v807 = vsel %vm525, %v806, -inf
      %808 = vmax.xlane.f32.xlu0 %v807
      %v809 = vpop.xlane.xlu0 %808
      %v810 = vsub.f32 %v806, %v809
      %v811 = vmul.f32 %v810, 1.442695
      %v812 = vpow.pop %v811
      %v813 = vsel %vm525, %v812, 0.0
      %814 = vadd.xlane.f32.xlu0 %v813
      %v815 = vpop.xlane.xlu0 %814
      %v816 = vrcp.pop %v815
      %v817 = vmul.f32 1.0, %v816
      %v818 = vmul.f32 %v812, %v817
      %v819 = vpack.c.bf16 %v818, %v818
      %820 = vrot.lane.b32.xlu0 %v524, 80
      %v821 = vpop.permute.xlu0 %820
      %v823 = vsel %vm525, %v819, 0
      %v826 = vsel %vm599, %v821, 0
      %828 = vmatprep.subr.bf16.mxu0 0
      %829 = vmatpush1.bf16.msra.mxu0 %v826
      %830 = vmatprep.subr.bf16.mxu0 0
      %831 = vmatpush1.bf16.msra.mxu0 0
      %832 = vmatprep.subr.bf16.mxu0 0
      %833 = vmatpush1.bf16.msra.mxu0 0
      %834 = vmatprep.subr.bf16.mxu0 0
      %835 = vmatpush1.bf16.msra.mxu0 0
      %836 = vmatprep.subr.bf16.mxu0 0
      %837 = vmatpush1.bf16.msra.mxu0 0
      %838 = vmatprep.subr.bf16.mxu0 0
      %839 = vmatpush1.bf16.msra.mxu0 0
      %840 = vmatprep.subr.bf16.mxu0 0
      %841 = vmatpush1.bf16.msra.mxu0 0
      %842 = vmatprep.subr.bf16.mxu0 0
      %843 = vmatpush1.bf16.msra.mxu0 0
      %844 = vmatprep.subr.bf16.mxu0 0
      %845 = vmatpush1.bf16.msra.mxu0 0
      %846 = vmatprep.subr.bf16.mxu0 0
      %847 = vmatpush1.bf16.msra.mxu0 0
      %848 = vmatprep.subr.bf16.mxu0 0
      %849 = vmatpush1.bf16.msra.mxu0 0
      %850 = vmatprep.subr.bf16.mxu0 0
      %851 = vmatpush1.bf16.msra.mxu0 0
      %852 = vmatprep.subr.bf16.mxu0 0
      %853 = vmatpush1.bf16.msra.mxu0 0
      %854 = vmatprep.subr.bf16.mxu0 0
      %855 = vmatpush1.bf16.msra.mxu0 0
      %856 = vmatprep.subr.bf16.mxu0 0
      %857 = vmatpush1.bf16.msra.mxu0 0
      %858 = vmatprep.subr.bf16.mxu0 0
      %859 = vmatpush1.bf16.msra.mxu0 0
      %860 = vmatprep.mubr.bf16.mxu0 0
      %861 = vmatmul.mubr.bf16.gmra.mrb[0].mxu0 %v823
      %v862 = vpop.f32.mrb[0].mxu0
      %v863 = vadd.f32 0.0, %v862
      %v864 = vpop.f32.mrb[0].mxu0
      %v865 = vpop.f32.mrb[0].mxu0
      %v866 = vpop.f32.mrb[0].mxu0
      %867 = vdwg.mxu0
      %868 = vrot.lane.b32.xlu0 %v523, 104
      %v869 = vpop.permute.xlu0 %868
      %870 = vrot.lane.b32.xlu0 %v524, 104
      %v871 = vpop.permute.xlu0 %870
      %v873 = vsel %vm525, %v869, 0
      %v876 = vsel %vm525, %v871, 0
      %878 = vmatprep.subr.bf16.mxu0 0
      %879 = vmatpush1.bf16.xpose.msra.mxu0 %v876
      %880 = vmatprep.subr.bf16.mxu0 0
      %881 = vmatpush1.bf16.xpose.msra.mxu0 0
      %882 = vmatprep.subr.bf16.mxu0 0
      %883 = vmatpush1.bf16.xpose.msra.mxu0 0
      %884 = vmatprep.subr.bf16.mxu0 0
      %885 = vmatpush1.bf16.xpose.msra.mxu0 0
      %886 = vmatprep.subr.bf16.mxu0 0
      %887 = vmatpush1.bf16.xpose.msra.mxu0 0
      %888 = vmatprep.subr.bf16.mxu0 0
      %889 = vmatpush1.bf16.xpose.msra.mxu0 0
      %890 = vmatprep.subr.bf16.mxu0 0
      %891 = vmatpush1.bf16.xpose.msra.mxu0 0
      %892 = vmatprep.subr.bf16.mxu0 0
      %893 = vmatpush1.bf16.xpose.msra.mxu0 0
      %894 = vmatprep.subr.bf16.mxu0 0
      %895 = vmatpush1.bf16.xpose.msra.mxu0 0
      %896 = vmatprep.subr.bf16.mxu0 0
      %897 = vmatpush1.bf16.xpose.msra.mxu0 0
      %898 = vmatprep.subr.bf16.mxu0 0
      %899 = vmatpush1.bf16.xpose.msra.mxu0 0
      %900 = vmatprep.subr.bf16.mxu0 0
      %901 = vmatpush1.bf16.xpose.msra.mxu0 0
      %902 = vmatprep.subr.bf16.mxu0 0
      %903 = vmatpush1.bf16.xpose.msra.mxu0 0
      %904 = vmatprep.subr.bf16.mxu0 0
      %905 = vmatpush1.bf16.xpose.msra.mxu0 0
      %906 = vmatprep.subr.bf16.mxu0 0
      %907 = vmatpush1.bf16.xpose.msra.mxu0 0
      %908 = vmatprep.subr.bf16.mxu0 0
      %909 = vmatpush1.bf16.xpose.msra.mxu0 0
      %910 = vmatprep.mubr.bf16.mxu0 0
      %911 = vmatmul.mubr.bf16.gmra.mrb[0].mxu0 %v873
      %v912 = vpop.f32.mrb[0].mxu0
      %v913 = vadd.f32 0.0, %v912
      %v914 = vpop.f32.mrb[0].mxu0
      %v915 = vpop.f32.mrb[0].mxu0
      %v916 = vpop.f32.mrb[0].mxu0
      %917 = vdwg.mxu0
      %v918 = vsel %vm578, -1e+09, %v913
      %v919 = vsel %vm525, %v918, -inf
      %920 = vmax.xlane.f32.xlu0 %v919
      %v921 = vpop.xlane.xlu0 %920
      %v922 = vsub.f32 %v918, %v921
      %v923 = vmul.f32 %v922, 1.442695
      %v924 = vpow.pop %v923
      %v925 = vsel %vm525, %v924, 0.0
      %926 = vadd.xlane.f32.xlu0 %v925
      %v927 = vpop.xlane.xlu0 %926
      %v928 = vrcp.pop %v927
      %v929 = vmul.f32 1.0, %v928
      %v930 = vmul.f32 %v924, %v929
      %v931 = vpack.c.bf16 %v930, %v930
      %932 = vrot.lane.b32.xlu0 %v524, 72
      %v933 = vpop.permute.xlu0 %932
      %v935 = vsel %vm525, %v931, 0
      %v938 = vsel %vm599, %v933, 0
      %940 = vmatprep.subr.bf16.mxu0 0
      %941 = vmatpush1.bf16.msra.mxu0 %v938
      %942 = vmatprep.subr.bf16.mxu0 0
      %943 = vmatpush1.bf16.msra.mxu0 0
      %944 = vmatprep.subr.bf16.mxu0 0
      %945 = vmatpush1.bf16.msra.mxu0 0
      %946 = vmatprep.subr.bf16.mxu0 0
      %947 = vmatpush1.bf16.msra.mxu0 0
      %948 = vmatprep.subr.bf16.mxu0 0
      %949 = vmatpush1.bf16.msra.mxu0 0
      %950 = vmatprep.subr.bf16.mxu0 0
      %951 = vmatpush1.bf16.msra.mxu0 0
      %952 = vmatprep.subr.bf16.mxu0 0
      %953 = vmatpush1.bf16.msra.mxu0 0
      %954 = vmatprep.subr.bf16.mxu0 0
      %955 = vmatpush1.bf16.msra.mxu0 0
      %956 = vmatprep.subr.bf16.mxu0 0
      %957 = vmatpush1.bf16.msra.mxu0 0
      %958 = vmatprep.subr.bf16.mxu0 0
      %959 = vmatpush1.bf16.msra.mxu0 0
      %960 = vmatprep.subr.bf16.mxu0 0
      %961 = vmatpush1.bf16.msra.mxu0 0
      %962 = vmatprep.subr.bf16.mxu0 0
      %963 = vmatpush1.bf16.msra.mxu0 0
      %964 = vmatprep.subr.bf16.mxu0 0
      %965 = vmatpush1.bf16.msra.mxu0 0
      %966 = vmatprep.subr.bf16.mxu0 0
      %967 = vmatpush1.bf16.msra.mxu0 0
      %968 = vmatprep.subr.bf16.mxu0 0
      %969 = vmatpush1.bf16.msra.mxu0 0
      %970 = vmatprep.subr.bf16.mxu0 0
      %971 = vmatpush1.bf16.msra.mxu0 0
      %972 = vmatprep.mubr.bf16.mxu0 0
      %973 = vmatmul.mubr.bf16.gmra.mrb[0].mxu0 %v935
      %v974 = vpop.f32.mrb[0].mxu0
      %v975 = vadd.f32 0.0, %v974
      %v976 = vpop.f32.mrb[0].mxu0
      %v977 = vpop.f32.mrb[0].mxu0
      %v978 = vpop.f32.mrb[0].mxu0
      %979 = vdwg.mxu0
      %981 = vrot.lane.b32.xlu0 %v751, 8
      %v982 = vpop.permute.xlu0 %981
      %985 = vrot.lane.b32.xlu0 %v863, 16
      %v986 = vpop.permute.xlu0 %985
      %989 = vrot.lane.b32.xlu0 %v975, 24
      %v990 = vpop.permute.xlu0 %989
      %v992 = vsel %vm525, %v638, %v982
      %vm993 = vcmask 130048
      %v994 = vsel %vm993, %v992, %v986
      %vm995 = vcmask 195584
      %v996 = vsel %vm995, %v994, %v990
      %v997 = vld [vmem:[%s7] sm:$0xf]
      %v998 = vld [vmem:[%s7 + $0x4] sm:$0xf]
      %v999 = vld [vmem:[%s7 + $0x8] sm:$0xf]
      %v1000 = vld [vmem:[%s7 + $0xc] sm:$0xf]
      %v1001 = vpack.c.bf16 %v996, %v996
      %v1002 = vld [vmem:[%s8] sm:$0x1]
      %v1004 = vlaneseq
      %v1005 = vshrl.u32 %v1004, 7
      %v1006 = vsub.s32 0, %v1005
      %v1007 = vrot.slane %v1002, %v1006
      %v1013 = vunpack.c.l.b16 %v997
      %v1014 = vunpack.c.l.b16 %v998
      %v1015 = vunpack.c.l.b16 %v999
      %v1016 = vunpack.c.l.b16 %v1000
      %v1017 = vpack.c.b16 %v1014, %v1013
      %v1018 = vpack.c.b16 %v1016, %v1015
      %v1022 = vsel %vm364, %v1001, 0
      %1024 = vmatprep.subr.bf16.mxu0 0
      %1025 = vmatpush1.bf16.msra.mxu0 %v1017
      %1026 = vmatprep.subr.bf16.mxu0 0
      %1027 = vmatpush1.bf16.msra.mxu0 %v1018
      %1028 = vmatprep.subr.bf16.mxu0 0
      %1029 = vmatpush1.bf16.msra.mxu0 0
      %1030 = vmatprep.subr.bf16.mxu0 0
      %1031 = vmatpush1.bf16.msra.mxu0 0
      %1032 = vmatprep.subr.bf16.mxu0 0
      %1033 = vmatpush1.bf16.msra.mxu0 0
      %1034 = vmatprep.subr.bf16.mxu0 0
      %1035 = vmatpush1.bf16.msra.mxu0 0
      %1036 = vmatprep.subr.bf16.mxu0 0
      %1037 = vmatpush1.bf16.msra.mxu0 0
      %1038 = vmatprep.subr.bf16.mxu0 0
      %1039 = vmatpush1.bf16.msra.mxu0 0
      %1040 = vmatprep.subr.bf16.mxu0 0
      %1041 = vmatpush1.bf16.msra.mxu0 0
      %1042 = vmatprep.subr.bf16.mxu0 0
      %1043 = vmatpush1.bf16.msra.mxu0 0
      %1044 = vmatprep.subr.bf16.mxu0 0
      %1045 = vmatpush1.bf16.msra.mxu0 0
      %1046 = vmatprep.subr.bf16.mxu0 0
      %1047 = vmatpush1.bf16.msra.mxu0 0
      %1048 = vmatprep.subr.bf16.mxu0 0
      %1049 = vmatpush1.bf16.msra.mxu0 0
      %1050 = vmatprep.subr.bf16.mxu0 0
      %1051 = vmatpush1.bf16.msra.mxu0 0
      %1052 = vmatprep.subr.bf16.mxu0 0
      %1053 = vmatpush1.bf16.msra.mxu0 0
      %1054 = vmatprep.subr.bf16.mxu0 0
      %1055 = vmatpush1.bf16.msra.mxu0 0
      %1056 = vmatprep.mubr.bf16.mxu0 0
      %1057 = vmatmul.mubr.bf16.gmra.mrb[0].mxu0 %v1022
      %v1058 = vpop.f32.mrb[0].mxu0
      %v1059 = vadd.f32 %v1007, %v1058
      %v1060 = vpop.f32.mrb[0].mxu0
      %v1061 = vpop.f32.mrb[0].mxu0
      %v1062 = vpop.f32.mrb[0].mxu0
      %1063 = vdwg.mxu0
      %v1064 = vadd.f32 %v360, %v1059
      %1065 = vst.msk [vmem:[%s358] sm:$0xff] %vm364, %v1064
      %p1066 = scmp.lt.s32.totalorder %s20, 1
      %s1067 = scalar_select %p1066, %s20, 1
      %s1068 = smul.addr %s1067, 8
      %s1069 = scalar_lea.vmem %s9, %s1068
      // Predicated region
      $region57: #{decoder_forward.8} parent=55 // pred_check
        %p1070 = pneg %p242
      $region58: #{decoder_forward.8} parent=55 // pred_check_branch
        %1072 = sbr.rel (%p1070) target = $region60
      $region59: #{decoder_forward.8} parent=55 // pred_region
        _
      $region60: #{decoder_forward.8} parent=55 // pred_fallthru
        _
    $region56: #{decoder_forward.8} parent=5 // pred_fallthru
      _
    %p1073 = scmp.le.s32.totalorder 2, %s15
    // Predicated region
    $region61: #{decoder_forward.8} parent=5 // pred_check
      %p1074 = pneg %p1073
    $region62: #{decoder_forward.8} parent=5 // pred_check_branch
      %1076 = sbr.rel (%p1074) target = $region64
    $region63: #{decoder_forward.8} parent=5 // pred_region
      %s1077 = ssub.s32 %s15, 2
      // Predicated region
      $region65: #{decoder_forward.8} parent=63 // pred_check
        %p1078 = pneg %p248
      $region66: #{decoder_forward.8} parent=63 // pred_check_branch
        %1080 = sbr.rel (%p1078) target = $region68
      $region67: #{decoder_forward.8} parent=63 // pred_region
        %p1081 = scmp.lt.s32.totalorder %s21, 1
        %s1082 = scalar_select %p1081, %s21, 1
        %s1083 = smul.addr %s1082, 8
        %s1084 = scalar_lea.vmem %s9, %s1083
      $region68: #{decoder_forward.8} parent=63 // pred_fallthru
        _
    $region64: #{decoder_forward.8} parent=5 // pred_fallthru
      _
  $region6: #{decoder_forward.8} parent=0 // loop_footer
    %s19 = sadd.s32 1, %s15
  $region7: #{decoder_forward.8} parent=0 // loop_footer_branch
    %14 = sbr.rel target = $region3
  $region8: #{decoder_forward.8} parent=0 // loop_exit
    _

</llo_original>
